<compile_context>
chip_gen: v7x
topology: tpu7x:2x2x1
jax: 0.10.0
libtpu: 0.0.40
codegen_flags: <defaults>
</compile_context>

<pallas_src>
from functools import partial

import numpy as np
import jax
import jax.numpy as jnp
from jax.experimental import pallas as pl
from jax.experimental.pallas import tpu as pltpu


CPAD = 128        # lane width: every channel / feature axis is zero-padded to this
BATCH_BLOCK = 8   # batch elements per grid step (keeps all row counts % 8 == 0)


# ----------------------------------------------------------------------------
# Static (trace-time) layout planning: choose the storage order of each
# activation's spatial positions so that every (tap, output-row) gather of the
# *next* conv layer is a unit-stride run along the stored position axis.
# ----------------------------------------------------------------------------
def _position_order(h, w, s_next):
    """Rows in natural order; within each row, columns grouped by (w % s_next)."""
    order = []
    for i in range(h):
        for g in range(s_next):
            for j in range(g, w, s_next):
                order.append((i, j))
    return order


def _unit_runs(srcs):
    """Split an index list into maximal runs of consecutive (+1) indices."""
    runs = []
    start = prev = srcs[0]
    for v in srcs[1:]:
        if v == prev + 1:
            prev = v
        else:
            runs.append((start, prev - start + 1))
            start = prev = v
    runs.append((start, prev - start + 1))
    return runs


def _plan_conv(order_in, order_out, k, s):
    """Per tap (kh,kw): list of (start, length) unit-stride runs into the input's
    stored position axis which, concatenated, enumerate output positions in
    `order_out` order.  Correct for any orderings; orderings only affect the
    number of runs."""
    idx_in = {p: i for i, p in enumerate(order_in)}
    plans = []
    for kh in range(k):
        for kw in range(k):
            srcs = [idx_in[(s * oh + kh, s * ow + kw)] for (oh, ow) in order_out]
            plans.append(_unit_runs(srcs))
    return plans


# ----------------------------------------------------------------------------
# Fused kernel: conv1 (im2col matmul) -> conv2 -> conv3 -> fc.
# Activation rows are (position * bb + batch), channels on the 128 lanes.
# Only full ref reads/writes, static unit-stride value slices, concatenates
# along sublanes and 2-D MXU matmuls are used.
# ----------------------------------------------------------------------------
def _pnn_fused_kernel(cols1_ref, w1_ref, b1_ref, w2_ref, b2_ref, w3_ref, b3_ref,
                      wfc_ref, bfc_ref, o1_ref, o2_ref, o3_ref, ofc_ref,
                      *, bb, plans2, plans3, p3):
    f32, bf16 = jnp.float32, jnp.bfloat16

    # ---- conv1: im2col was done in the wrapper -> one matmul, M = bb*h1*w1.
    y1 = jnp.dot(cols1_ref[...], w1_ref[...], preferred_element_type=f32)
    a1 = jnp.maximum(y1 + b1_ref[...], 0.0).astype(bf16)
    o1_ref[...] = a1

    # ---- generic conv layer: one matmul per (kh,kw) tap, batch folded into M.
    def conv_taps(a_in, plans, w_ref, b_ref):
        acc = None
        for t, runs in enumerate(plans):
            parts = [a_in[a * bb:(a + ln) * bb, :] for a, ln in runs]
            lhs = parts[0] if len(parts) == 1 else jnp.concatenate(parts, axis=0)
            term = jnp.dot(lhs, w_ref[t], preferred_element_type=f32)
            acc = term if acc is None else acc + term
        return jnp.maximum(acc + b_ref[...], 0.0).astype(bf16)

    a2 = conv_taps(a1, plans2, w2_ref, b2_ref)
    o2_ref[...] = a2
    a3 = conv_taps(a2, plans3, w3_ref, b3_ref)
    o3_ref[...] = a3

    # ---- fc (linear, no ReLU): M = bb, one matmul per conv3 spatial position.
    acc = jnp.dot(a3[0:bb, :], wfc_ref[0], preferred_element_type=f32)
    for p in range(1, p3):
        acc = acc + jnp.dot(a3[p * bb:(p + 1) * bb, :], wfc_ref[p],
                            preferred_element_type=f32)
    ofc_ref[...] = acc + bfc_ref[...]


# ----------------------------------------------------------------------------
# Wrapper glue (pure data movement, XLA ops around the single kernel).
# ----------------------------------------------------------------------------
def _im2col_nhwc(x_nhwc, k, stride):
    """(N, H, W, C) -> (N, Ho*Wo, k*k*C), patch order (kh, kw, cin)."""
    n, h, w, c = x_nhwc.shape
    ho = (h - k) // stride + 1
    wo = (w - k) // stride + 1
    patches = []
    for kh in range(k):
        for kw in range(k):
            patches.append(
                x_nhwc[:, kh:kh + stride * ho:stride, kw:kw + stride * wo:stride, :])
    p = jnp.stack(patches, axis=3)                  # (N, Ho, Wo, k*k, C)
    return p.reshape(n, ho * wo, k * k * c)


@partial(jax.jit, static_argnums=(0,))
def pnnbase_forward(topo, params, x_nchw):
    """Returns [conv1_out, conv2_out, conv3_out, fc_out] in PyTorch layouts."""
    (c1i, c1o, k1, s1), (c2i, c2o, k2, s2), (c3i, c3o, k3, s3), (fci, fco) = topo
    n, cin, h, w = x_nchw.shape
    assert cin == c1i
    h1, w1 = (h - k1) // s1 + 1, (w - k1) // s1 + 1
    h2, w2 = (h1 - k2) // s2 + 1, (w1 - k2) // s2 + 1
    h3, w3 = (h2 - k3) // s3 + 1, (w2 - k3) // s3 + 1
    assert fci == c3o * h3 * w3, "fc input size inconsistent with conv stack"
    kdim = k1 * k1 * c1i
    assert kdim <= CPAD and max(c1o, c2o, c3o, fco) <= CPAD

    bb = BATCH_BLOCK
    npad = -(-n // bb) * bb
    nb = npad // bb
    p1, p2, p3 = h1 * w1, h2 * w2, h3 * w3

    # -------- static layout / gather planning (pure Python, trace time) -----
    order1 = _position_order(h1, w1, s2)    # conv1 out, grouped for conv2's stride
    order2 = _position_order(h2, w2, s3)    # conv2 out, grouped for conv3's stride
    order3 = _position_order(h3, w3, 1)     # conv3 out, natural (fc consumes it)
    plans2 = _plan_conv(order1, order2, k2, s2)
    plans3 = _plan_conv(order2, order3, k3, s3)
    perm1 = np.array([i * w1 + j for i, j in order1])
    perm2 = np.array([i * w2 + j for i, j in order2])
    perm3 = np.array([i * w3 + j for i, j in order3])
    inv1, inv2, inv3 = np.argsort(perm1), np.argsort(perm2), np.argsort(perm3)

    # -------- conv1 im2col (wrapper-side), permute positions to order1, pad K
    # to 128 lanes + batch to a multiple of bb, cast bf16, then rearrange each
    # batch block to position-major / batch-minor rows.
    x_nhwc = jnp.transpose(x_nchw, (0, 2, 3, 1))
    cols1 = _im2col_nhwc(x_nhwc, k1, s1)                       # (n, p1, kdim)
    cols1 = cols1[:, perm1, :]
    cols1 = jnp.pad(cols1, ((0, npad - n), (0, 0), (0, CPAD - kdim)))
    cols1 = cols1.astype(jnp.bfloat16)
    cols1 = cols1.reshape(nb, bb, p1, CPAD).transpose(0, 2, 1, 3)
    cols1 = cols1.reshape(nb, p1 * bb, CPAD)

    out_shape = (
        jax.ShapeDtypeStruct((nb, p1 * bb, CPAD), jnp.bfloat16),
        jax.ShapeDtypeStruct((nb, p2 * bb, CPAD), jnp.bfloat16),
        jax.ShapeDtypeStruct((nb, p3 * bb, CPAD), jnp.bfloat16),
        jax.ShapeDtypeStruct((nb, bb, CPAD), jnp.float32),
    )

    in_arrays = (cols1, params["w1"], params["b1"], params["w2"], params["b2"],
                 params["w3"], params["b3"], params["wfc"], params["bfc"])

    # advisory cost estimate: real (unpadded) FLOPs
    flops = 2 * n * (p1 * k1 * k1 * c1i * c1o + p2 * k2 * k2 * c2i * c2o
                     + p3 * k3 * k3 * c3i * c3o + fci * fco)
    bytes_accessed = int(sum(a.size * a.dtype.itemsize for a in in_arrays)
                         + sum(int(np.prod(s.shape)) * s.dtype.itemsize
                               for s in out_shape))

    kernel = partial(_pnn_fused_kernel, bb=bb, plans2=plans2, plans3=plans3, p3=p3)

    o1, o2, o3, ofc = pl.pallas_call(
        kernel,
        out_shape=out_shape,
        grid=(nb,),
        in_specs=[
            pl.BlockSpec((None, p1 * bb, CPAD), lambda b: (b, 0, 0)),     # cols1
            pl.BlockSpec((CPAD, CPAD), lambda b: (0, 0)),                 # w1
            pl.BlockSpec((1, CPAD), lambda b: (0, 0)),                    # b1
            pl.BlockSpec((k2 * k2, CPAD, CPAD), lambda b: (0, 0, 0)),     # w2
            pl.BlockSpec((1, CPAD), lambda b: (0, 0)),                    # b2
            pl.BlockSpec((k3 * k3, CPAD, CPAD), lambda b: (0, 0, 0)),     # w3
            pl.BlockSpec((1, CPAD), lambda b: (0, 0)),                    # b3
            pl.BlockSpec((p3, CPAD, CPAD), lambda b: (0, 0, 0)),          # wfc
            pl.BlockSpec((1, CPAD), lambda b: (0, 0)),                    # bfc
        ],
        out_specs=[
            pl.BlockSpec((None, p1 * bb, CPAD), lambda b: (b, 0, 0)),
            pl.BlockSpec((None, p2 * bb, CPAD), lambda b: (b, 0, 0)),
            pl.BlockSpec((None, p3 * bb, CPAD), lambda b: (b, 0, 0)),
            pl.BlockSpec((None, bb, CPAD), lambda b: (b, 0, 0)),
        ],
        compiler_params=pltpu.CompilerParams(
            dimension_semantics=("parallel",),            # 2 TCs on v7x if nb >= 2
            vmem_limit_bytes=32 * 1024 * 1024),
        cost_estimate=pl.CostEstimate(flops=flops, transcendentals=0,
                                      bytes_accessed=bytes_accessed),
    )(*in_arrays)

    # -------- un-block, un-permute, un-pad back to PyTorch layouts -----------
    def unblock(o, p, inv, cout, hh, ww):
        o = o.reshape(nb, p, bb, CPAD).transpose(0, 2, 1, 3).reshape(npad, p, CPAD)
        o = o[:n, inv, :cout].astype(jnp.float32)
        return jnp.transpose(o.reshape(n, hh, ww, cout), (0, 3, 1, 2))

    conv1_out = unblock(o1, p1, inv1, c1o, h1, w1)
    conv2_out = unblock(o2, p2, inv2, c2o, h2, w2)
    conv3_out = unblock(o3, p3, inv3, c3o, h3, w3)
    fc_out = ofc.reshape(npad, CPAD)[:n, :fco]
    return [conv1_out, conv2_out, conv3_out, fc_out]


# ----------------------------------------------------------------------------
# Parameter init: orthogonal, gain sqrt(2) (relu gain), bias 0, matching
# PNNBase.__init__'s init_(...).  Returns both kernel-layout (padded /
# reordered / bf16) params and raw PyTorch-layout weights for the reference.
# ----------------------------------------------------------------------------
def orthogonal_init(key, shape, gain):
    rows = shape[0]
    cols = int(np.prod(shape[1:]))
    a = jax.random.normal(key, (max(rows, cols), min(rows, cols)), dtype=jnp.float32)
    q, r = jnp.linalg.qr(a)
    q = q * jnp.sign(jnp.diagonal(r))               # deterministic sign
    if rows < cols:
        q = q.T
    return (gain * q[:rows, :cols]).reshape(shape).astype(jnp.float32)


def make_pnnbase_params(key, topo):
    gain = float(np.sqrt(2.0))                      # nn.init.calculate_gain('relu')
    (c1i, c1o, k1, s1), (c2i, c2o, k2, s2), (c3i, c3o, k3, s3), (fci, fco) = topo
    keys = jax.random.split(key, 4)

    # raw PyTorch-layout weights / biases
    w1_t = orthogonal_init(keys[0], (c1o, c1i, k1, k1), gain)
    w2_t = orthogonal_init(keys[1], (c2o, c2i, k2, k2), gain)
    w3_t = orthogonal_init(keys[2], (c3o, c3i, k3, k3), gain)
    wfc_t = orthogonal_init(keys[3], (fco, fci), gain)
    raw = dict(conv1_w=w1_t, conv1_b=jnp.zeros((c1o,), jnp.float32),
               conv2_w=w2_t, conv2_b=jnp.zeros((c2o,), jnp.float32),
               conv3_w=w3_t, conv3_b=jnp.zeros((c3o,), jnp.float32),
               fc_w=wfc_t, fc_b=jnp.zeros((fco,), jnp.float32))

    # conv1: single im2col matmul weight (k*k*cin, cout), zero-padded to 128x128
    assert k1 * k1 * c1i <= CPAD and c1o <= CPAD
    w1m = jnp.transpose(w1_t, (2, 3, 1, 0)).reshape(k1 * k1 * c1i, c1o)
    w1p = jnp.zeros((CPAD, CPAD), jnp.float32).at[:k1 * k1 * c1i, :c1o].set(w1m)

    # conv2/conv3: per-tap (cin, cout) matrices, zero-padded to 128x128
    def conv_taps_w(w_t, cin, cout, k):
        assert cin <= CPAD and cout <= CPAD
        wt = jnp.transpose(w_t, (2, 3, 1, 0))                       # (kh,kw,ci,co)
        wp = jnp.zeros((k, k, CPAD, CPAD), jnp.float32).at[:, :, :cin, :cout].set(wt)
        return wp.reshape(k * k, CPAD, CPAD).astype(jnp.bfloat16)

    # fc: reorder rows from PyTorch's (c, h, w) flatten to (h*w, c) so the
    # kernel consumes conv3's natural-order rows directly; pad to (hw, 128, 128).
    hw3 = fci // c3o
    assert hw3 * c3o == fci and fco <= CPAD
    wfc = jnp.transpose(wfc_t.reshape(fco, c3o, hw3), (2, 1, 0))   # (hw, ci, co)
    wfcp = jnp.zeros((hw3, CPAD, CPAD), jnp.float32).at[:, :c3o, :fco].set(wfc)

    zb = jnp.zeros((1, CPAD), jnp.float32)
    params = dict(w1=w1p.astype(jnp.bfloat16), b1=zb,
                  w2=conv_taps_w(w2_t, c2i, c2o, k2), b2=zb,
                  w3=conv_taps_w(w3_t, c3i, c3o, k3), b3=zb,
                  wfc=wfcp.astype(jnp.bfloat16), bfc=zb)
    return params, raw


# ----------------------------------------------------------------------------
# Pure-JAX reference of PNNBase.forward (correctness sanity check).
# ----------------------------------------------------------------------------
def _reference_forward(raw, topo, x_nchw):
    outs = []
    x = x_nchw
    for i in range(3):
        w_t = raw[f"conv{i + 1}_w"]
        b = raw[f"conv{i + 1}_b"]
        s = topo[i][3]
        y = jax.lax.conv_general_dilated(
            x, w_t, window_strides=(s, s), padding="VALID",
            dimension_numbers=("NCHW", "OIHW", "NCHW"),
            precision=jax.lax.Precision.HIGHEST)
        y = jnp.maximum(y + b.reshape(1, -1, 1, 1), 0.0)
        outs.append(y)
        x = y
    flat = x.reshape(x.shape[0], -1)
    y = jnp.dot(flat, raw["fc_w"].T, precision=jax.lax.Precision.HIGHEST) + raw["fc_b"]
    outs.append(y)
    return outs


if __name__ == "__main__":
    # Topology `t` consistent with the module's constructor argument:
    #   conv1: (4 -> 8,  k=3, stride=2)   16x16 -> 7x7
    #   conv2: (8 -> 16, k=3, stride=2)    7x7  -> 3x3
    #   conv3: (16 -> 16, k=3, stride=1)   3x3  -> 1x1
    #   fc   : (16*1*1 -> 32)
    t = ((4, 8, 3, 2), (8, 16, 3, 2), (16, 16, 3, 1), (16, 32))

    key = jax.random.PRNGKey(0)
    pkey, xkey = jax.random.split(key)
    params, raw = make_pnnbase_params(pkey, t)

    x = jax.random.normal(xkey, (2, 4, 16, 16), dtype=jnp.float32)  # NCHW input

    outs = pnnbase_forward(t, params, x)
    outs = jax.block_until_ready(outs)

    # shape checks (PyTorch layouts)
    assert outs[0].shape == (2, 8, 7, 7)
    assert outs[1].shape == (2, 16, 3, 3)
    assert outs[2].shape == (2, 16, 1, 1)
    assert outs[3].shape == (2, 32)

    # numerical check against a pure-JAX f32 reference (kernel uses bf16 MXU
    # operands / bf16 intermediate storage with f32 accumulation, so a loose
    # tolerance is expected).
    refs = jax.block_until_ready(_reference_forward(raw, t, x))
    for got, want in zip(outs, refs):
        np.testing.assert_allclose(np.asarray(got), np.asarray(want),
                                   rtol=0.1, atol=0.1)

    print("KERNEL_OK")
</pallas_src>

<mosaic_0001>
module attributes {stable_mosaic.version = 11 : i64} {
  func.func @_pnn_fused_kernel(%arg0: i32, %arg1: memref<1x392x128xbf16, #tpu.memory_space<vmem>>, %arg2: memref<128x128xbf16, #tpu.memory_space<vmem>>, %arg3: memref<1x128xf32, #tpu.memory_space<vmem>>, %arg4: memref<9x128x128xbf16, #tpu.memory_space<vmem>>, %arg5: memref<1x128xf32, #tpu.memory_space<vmem>>, %arg6: memref<9x128x128xbf16, #tpu.memory_space<vmem>>, %arg7: memref<1x128xf32, #tpu.memory_space<vmem>>, %arg8: memref<1x128x128xbf16, #tpu.memory_space<vmem>>, %arg9: memref<1x128xf32, #tpu.memory_space<vmem>>, %arg10: memref<1x392x128xbf16, #tpu.memory_space<vmem>>, %arg11: memref<1x72x128xbf16, #tpu.memory_space<vmem>>, %arg12: memref<1x8x128xbf16, #tpu.memory_space<vmem>>, %arg13: memref<1x8x128xf32, #tpu.memory_space<vmem>>) attributes {dimension_semantics = [#tpu.dimension_semantics<parallel>], iteration_bounds = array<i64: 1>, scalar_prefetch = 0 : i64, scratch_operands = 0 : i64, tpu.core_type = #tpu.core_type<tc>, window_params = [{transform_indices = @transform_0, window_bounds = array<i64: 1, 392, 128>}, {pipeline_mode = #tpu.pipeline_mode<synchronous>, transform_indices = @transform_1, window_bounds = array<i64: 128, 128>}, {pipeline_mode = #tpu.pipeline_mode<synchronous>, transform_indices = @transform_2, window_bounds = array<i64: 1, 128>}, {pipeline_mode = #tpu.pipeline_mode<synchronous>, transform_indices = @transform_3, window_bounds = array<i64: 9, 128, 128>}, {pipeline_mode = #tpu.pipeline_mode<synchronous>, transform_indices = @transform_4, window_bounds = array<i64: 1, 128>}, {pipeline_mode = #tpu.pipeline_mode<synchronous>, transform_indices = @transform_5, window_bounds = array<i64: 9, 128, 128>}, {pipeline_mode = #tpu.pipeline_mode<synchronous>, transform_indices = @transform_6, window_bounds = array<i64: 1, 128>}, {pipeline_mode = #tpu.pipeline_mode<synchronous>, transform_indices = @transform_7, window_bounds = array<i64: 1, 128, 128>}, {pipeline_mode = #tpu.pipeline_mode<synchronous>, transform_indices = @transform_8, window_bounds = array<i64: 1, 128>}, {transform_indices = @transform_9, window_bounds = array<i64: 1, 392, 128>}, {transform_indices = @transform_10, window_bounds = array<i64: 1, 72, 128>}, {transform_indices = @transform_11, window_bounds = array<i64: 1, 8, 128>}, {transform_indices = @transform_12, window_bounds = array<i64: 1, 8, 128>}]} {
    %c0 = arith.constant 0 : index
    %c0_0 = arith.constant 0 : index
    %c0_1 = arith.constant 0 : index
    %0 = vector.load %arg1[%c0, %c0_0, %c0_1] : memref<1x392x128xbf16, #tpu.memory_space<vmem>>, vector<1x392x128xbf16>
    %1 = vector.shape_cast %0 : vector<1x392x128xbf16> to vector<392x128xbf16>
    %c0_2 = arith.constant 0 : index
    %c0_3 = arith.constant 0 : index
    %2 = vector.load %arg2[%c0_2, %c0_3] : memref<128x128xbf16, #tpu.memory_space<vmem>>, vector<128x128xbf16>
    %cst = arith.constant dense<0.000000e+00> : vector<392x128xf32>
    %3 = tpu.matmul %1, %2, %cst {dimension_numbers = #tpu.dot_dimension_numbers<[1], [0], [0], [1], [0, 0, 1, 1], [], []>} : vector<392x128xbf16>, vector<128x128xbf16>, vector<392x128xf32> -> vector<392x128xf32>
    %c0_4 = arith.constant 0 : index
    %c0_5 = arith.constant 0 : index
    %4 = vector.load %arg3[%c0_4, %c0_5] : memref<1x128xf32, #tpu.memory_space<vmem>>, vector<1x128xf32>
    %5 = vector.broadcast %4 : vector<1x128xf32> to vector<392x128xf32>
    %6 = arith.addf %3, %5 : vector<392x128xf32>
    %cst_6 = arith.constant 0.000000e+00 : f32
    %7 = vector.broadcast %cst_6 : f32 to vector<392x128xf32>
    %8 = arith.maximumf %6, %7 : vector<392x128xf32>
    %9 = arith.truncf %8 : vector<392x128xf32> to vector<392x128xbf16>
    %c0_7 = arith.constant 0 : index
    %c0_8 = arith.constant 0 : index
    %c0_9 = arith.constant 0 : index
    %10 = vector.load %arg10[%c0_7, %c0_8, %c0_9] : memref<1x392x128xbf16, #tpu.memory_space<vmem>>, vector<1x392x128xbf16>
    %11 = vector.shape_cast %10 : vector<1x392x128xbf16> to vector<392x128xbf16>
    %12 = vector.shape_cast %9 : vector<392x128xbf16> to vector<1x392x128xbf16>
    tpu.vector_store %arg10[%c0_7, %c0_8, %c0_9], %12 {strides = array<i32>} : memref<1x392x128xbf16, #tpu.memory_space<vmem>>, vector<1x392x128xbf16>,
    %13 = vector.extract_strided_slice %9 {offsets = [0, 0], sizes = [24, 128], strides = [1, 1]} : vector<392x128xbf16> to vector<24x128xbf16>
    %14 = vector.extract_strided_slice %9 {offsets = [112, 0], sizes = [24, 128], strides = [1, 1]} : vector<392x128xbf16> to vector<24x128xbf16>
    %15 = vector.extract_strided_slice %9 {offsets = [224, 0], sizes = [24, 128], strides = [1, 1]} : vector<392x128xbf16> to vector<24x128xbf16>
    %16 = tpu.concatenate %13, %14, %15 in 0 : vector<24x128xbf16>, vector<24x128xbf16>, vector<24x128xbf16> -> vector<72x128xbf16>
    %c0_10 = arith.constant 0 : index
    %c0_11 = arith.constant 0 : index
    %c0_12 = arith.constant 0 : index
    %17 = vector.load %arg4[%c0_10, %c0_11, %c0_12] : memref<9x128x128xbf16, #tpu.memory_space<vmem>>, vector<1x128x128xbf16>
    %18 = vector.shape_cast %17 : vector<1x128x128xbf16> to vector<128x128xbf16>
    %cst_13 = arith.constant dense<0.000000e+00> : vector<72x128xf32>
    %19 = tpu.matmul %16, %18, %cst_13 {dimension_numbers = #tpu.dot_dimension_numbers<[1], [0], [0], [1], [0, 0, 1, 1], [], []>} : vector<72x128xbf16>, vector<128x128xbf16>, vector<72x128xf32> -> vector<72x128xf32>
    %20 = vector.extract_strided_slice %9 {offsets = [32, 0], sizes = [24, 128], strides = [1, 1]} : vector<392x128xbf16> to vector<24x128xbf16>
    %21 = vector.extract_strided_slice %9 {offsets = [144, 0], sizes = [24, 128], strides = [1, 1]} : vector<392x128xbf16> to vector<24x128xbf16>
    %22 = vector.extract_strided_slice %9 {offsets = [256, 0], sizes = [24, 128], strides = [1, 1]} : vector<392x128xbf16> to vector<24x128xbf16>
    %23 = tpu.concatenate %20, %21, %22 in 0 : vector<24x128xbf16>, vector<24x128xbf16>, vector<24x128xbf16> -> vector<72x128xbf16>
    %c1 = arith.constant 1 : index
    %c0_14 = arith.constant 0 : index
    %c0_15 = arith.constant 0 : index
    %24 = vector.load %arg4[%c1, %c0_14, %c0_15] : memref<9x128x128xbf16, #tpu.memory_space<vmem>>, vector<1x128x128xbf16>
    %25 = vector.shape_cast %24 : vector<1x128x128xbf16> to vector<128x128xbf16>
    %cst_16 = arith.constant dense<0.000000e+00> : vector<72x128xf32>
    %26 = tpu.matmul %23, %25, %cst_16 {dimension_numbers = #tpu.dot_dimension_numbers<[1], [0], [0], [1], [0, 0, 1, 1], [], []>} : vector<72x128xbf16>, vector<128x128xbf16>, vector<72x128xf32> -> vector<72x128xf32>
    %27 = arith.addf %19, %26 : vector<72x128xf32>
    %28 = vector.extract_strided_slice %9 {offsets = [8, 0], sizes = [24, 128], strides = [1, 1]} : vector<392x128xbf16> to vector<24x128xbf16>
    %29 = vector.extract_strided_slice %9 {offsets = [120, 0], sizes = [24, 128], strides = [1, 1]} : vector<392x128xbf16> to vector<24x128xbf16>
    %30 = vector.extract_strided_slice %9 {offsets = [232, 0], sizes = [24, 128], strides = [1, 1]} : vector<392x128xbf16> to vector<24x128xbf16>
    %31 = tpu.concatenate %28, %29, %30 in 0 : vector<24x128xbf16>, vector<24x128xbf16>, vector<24x128xbf16> -> vector<72x128xbf16>
    %c2 = arith.constant 2 : index
    %c0_17 = arith.constant 0 : index
    %c0_18 = arith.constant 0 : index
    %32 = vector.load %arg4[%c2, %c0_17, %c0_18] : memref<9x128x128xbf16, #tpu.memory_space<vmem>>, vector<1x128x128xbf16>
    %33 = vector.shape_cast %32 : vector<1x128x128xbf16> to vector<128x128xbf16>
    %cst_19 = arith.constant dense<0.000000e+00> : vector<72x128xf32>
    %34 = tpu.matmul %31, %33, %cst_19 {dimension_numbers = #tpu.dot_dimension_numbers<[1], [0], [0], [1], [0, 0, 1, 1], [], []>} : vector<72x128xbf16>, vector<128x128xbf16>, vector<72x128xf32> -> vector<72x128xf32>
    %35 = arith.addf %27, %34 : vector<72x128xf32>
    %36 = vector.extract_strided_slice %9 {offsets = [56, 0], sizes = [24, 128], strides = [1, 1]} : vector<392x128xbf16> to vector<24x128xbf16>
    %37 = vector.extract_strided_slice %9 {offsets = [168, 0], sizes = [24, 128], strides = [1, 1]} : vector<392x128xbf16> to vector<24x128xbf16>
    %38 = vector.extract_strided_slice %9 {offsets = [280, 0], sizes = [24, 128], strides = [1, 1]} : vector<392x128xbf16> to vector<24x128xbf16>
    %39 = tpu.concatenate %36, %37, %38 in 0 : vector<24x128xbf16>, vector<24x128xbf16>, vector<24x128xbf16> -> vector<72x128xbf16>
    %c3 = arith.constant 3 : index
    %c0_20 = arith.constant 0 : index
    %c0_21 = arith.constant 0 : index
    %40 = vector.load %arg4[%c3, %c0_20, %c0_21] : memref<9x128x128xbf16, #tpu.memory_space<vmem>>, vector<1x128x128xbf16>
    %41 = vector.shape_cast %40 : vector<1x128x128xbf16> to vector<128x128xbf16>
    %cst_22 = arith.constant dense<0.000000e+00> : vector<72x128xf32>
    %42 = tpu.matmul %39, %41, %cst_22 {dimension_numbers = #tpu.dot_dimension_numbers<[1], [0], [0], [1], [0, 0, 1, 1], [], []>} : vector<72x128xbf16>, vector<128x128xbf16>, vector<72x128xf32> -> vector<72x128xf32>
    %43 = arith.addf %35, %42 : vector<72x128xf32>
    %44 = vector.extract_strided_slice %9 {offsets = [88, 0], sizes = [24, 128], strides = [1, 1]} : vector<392x128xbf16> to vector<24x128xbf16>
    %45 = vector.extract_strided_slice %9 {offsets = [200, 0], sizes = [24, 128], strides = [1, 1]} : vector<392x128xbf16> to vector<24x128xbf16>
    %46 = vector.extract_strided_slice %9 {offsets = [312, 0], sizes = [24, 128], strides = [1, 1]} : vector<392x128xbf16> to vector<24x128xbf16>
    %47 = tpu.concatenate %44, %45, %46 in 0 : vector<24x128xbf16>, vector<24x128xbf16>, vector<24x128xbf16> -> vector<72x128xbf16>
    %c4 = arith.constant 4 : index
    %c0_23 = arith.constant 0 : index
    %c0_24 = arith.constant 0 : index
    %48 = vector.load %arg4[%c4, %c0_23, %c0_24] : memref<9x128x128xbf16, #tpu.memory_space<vmem>>, vector<1x128x128xbf16>
    %49 = vector.shape_cast %48 : vector<1x128x128xbf16> to vector<128x128xbf16>
    %cst_25 = arith.constant dense<0.000000e+00> : vector<72x128xf32>
    %50 = tpu.matmul %47, %49, %cst_25 {dimension_numbers = #tpu.dot_dimension_numbers<[1], [0], [0], [1], [0, 0, 1, 1], [], []>} : vector<72x128xbf16>, vector<128x128xbf16>, vector<72x128xf32> -> vector<72x128xf32>
    %51 = arith.addf %43, %50 : vector<72x128xf32>
    %52 = vector.extract_strided_slice %9 {offsets = [64, 0], sizes = [24, 128], strides = [1, 1]} : vector<392x128xbf16> to vector<24x128xbf16>
    %53 = vector.extract_strided_slice %9 {offsets = [176, 0], sizes = [24, 128], strides = [1, 1]} : vector<392x128xbf16> to vector<24x128xbf16>
    %54 = vector.extract_strided_slice %9 {offsets = [288, 0], sizes = [24, 128], strides = [1, 1]} : vector<392x128xbf16> to vector<24x128xbf16>
    %55 = tpu.concatenate %52, %53, %54 in 0 : vector<24x128xbf16>, vector<24x128xbf16>, vector<24x128xbf16> -> vector<72x128xbf16>
    %c5 = arith.constant 5 : index
    %c0_26 = arith.constant 0 : index
    %c0_27 = arith.constant 0 : index
    %56 = vector.load %arg4[%c5, %c0_26, %c0_27] : memref<9x128x128xbf16, #tpu.memory_space<vmem>>, vector<1x128x128xbf16>
    %57 = vector.shape_cast %56 : vector<1x128x128xbf16> to vector<128x128xbf16>
    %cst_28 = arith.constant dense<0.000000e+00> : vector<72x128xf32>
    %58 = tpu.matmul %55, %57, %cst_28 {dimension_numbers = #tpu.dot_dimension_numbers<[1], [0], [0], [1], [0, 0, 1, 1], [], []>} : vector<72x128xbf16>, vector<128x128xbf16>, vector<72x128xf32> -> vector<72x128xf32>
    %59 = arith.addf %51, %58 : vector<72x128xf32>
    %60 = vector.extract_strided_slice %9 {offsets = [112, 0], sizes = [24, 128], strides = [1, 1]} : vector<392x128xbf16> to vector<24x128xbf16>
    %61 = vector.extract_strided_slice %9 {offsets = [224, 0], sizes = [24, 128], strides = [1, 1]} : vector<392x128xbf16> to vector<24x128xbf16>
    %62 = vector.extract_strided_slice %9 {offsets = [336, 0], sizes = [24, 128], strides = [1, 1]} : vector<392x128xbf16> to vector<24x128xbf16>
    %63 = tpu.concatenate %60, %61, %62 in 0 : vector<24x128xbf16>, vector<24x128xbf16>, vector<24x128xbf16> -> vector<72x128xbf16>
    %c6 = arith.constant 6 : index
    %c0_29 = arith.constant 0 : index
    %c0_30 = arith.constant 0 : index
    %64 = vector.load %arg4[%c6, %c0_29, %c0_30] : memref<9x128x128xbf16, #tpu.memory_space<vmem>>, vector<1x128x128xbf16>
    %65 = vector.shape_cast %64 : vector<1x128x128xbf16> to vector<128x128xbf16>
    %cst_31 = arith.constant dense<0.000000e+00> : vector<72x128xf32>
    %66 = tpu.matmul %63, %65, %cst_31 {dimension_numbers = #tpu.dot_dimension_numbers<[1], [0], [0], [1], [0, 0, 1, 1], [], []>} : vector<72x128xbf16>, vector<128x128xbf16>, vector<72x128xf32> -> vector<72x128xf32>
    %67 = arith.addf %59, %66 : vector<72x128xf32>
    %68 = vector.extract_strided_slice %9 {offsets = [144, 0], sizes = [24, 128], strides = [1, 1]} : vector<392x128xbf16> to vector<24x128xbf16>
    %69 = vector.extract_strided_slice %9 {offsets = [256, 0], sizes = [24, 128], strides = [1, 1]} : vector<392x128xbf16> to vector<24x128xbf16>
    %70 = vector.extract_strided_slice %9 {offsets = [368, 0], sizes = [24, 128], strides = [1, 1]} : vector<392x128xbf16> to vector<24x128xbf16>
    %71 = tpu.concatenate %68, %69, %70 in 0 : vector<24x128xbf16>, vector<24x128xbf16>, vector<24x128xbf16> -> vector<72x128xbf16>
    %c7 = arith.constant 7 : index
    %c0_32 = arith.constant 0 : index
    %c0_33 = arith.constant 0 : index
    %72 = vector.load %arg4[%c7, %c0_32, %c0_33] : memref<9x128x128xbf16, #tpu.memory_space<vmem>>, vector<1x128x128xbf16>
    %73 = vector.shape_cast %72 : vector<1x128x128xbf16> to vector<128x128xbf16>
    %cst_34 = arith.constant dense<0.000000e+00> : vector<72x128xf32>
    %74 = tpu.matmul %71, %73, %cst_34 {dimension_numbers = #tpu.dot_dimension_numbers<[1], [0], [0], [1], [0, 0, 1, 1], [], []>} : vector<72x128xbf16>, vector<128x128xbf16>, vector<72x128xf32> -> vector<72x128xf32>
    %75 = arith.addf %67, %74 : vector<72x128xf32>
    %76 = vector.extract_strided_slice %9 {offsets = [120, 0], sizes = [24, 128], strides = [1, 1]} : vector<392x128xbf16> to vector<24x128xbf16>
    %77 = vector.extract_strided_slice %9 {offsets = [232, 0], sizes = [24, 128], strides = [1, 1]} : vector<392x128xbf16> to vector<24x128xbf16>
    %78 = vector.extract_strided_slice %9 {offsets = [344, 0], sizes = [24, 128], strides = [1, 1]} : vector<392x128xbf16> to vector<24x128xbf16>
    %79 = tpu.concatenate %76, %77, %78 in 0 : vector<24x128xbf16>, vector<24x128xbf16>, vector<24x128xbf16> -> vector<72x128xbf16>
    %c8 = arith.constant 8 : index
    %c0_35 = arith.constant 0 : index
    %c0_36 = arith.constant 0 : index
    %80 = vector.load %arg4[%c8, %c0_35, %c0_36] : memref<9x128x128xbf16, #tpu.memory_space<vmem>>, vector<1x128x128xbf16>
    %81 = vector.shape_cast %80 : vector<1x128x128xbf16> to vector<128x128xbf16>
    %cst_37 = arith.constant dense<0.000000e+00> : vector<72x128xf32>
    %82 = tpu.matmul %79, %81, %cst_37 {dimension_numbers = #tpu.dot_dimension_numbers<[1], [0], [0], [1], [0, 0, 1, 1], [], []>} : vector<72x128xbf16>, vector<128x128xbf16>, vector<72x128xf32> -> vector<72x128xf32>
    %83 = arith.addf %75, %82 : vector<72x128xf32>
    %c0_38 = arith.constant 0 : index
    %c0_39 = arith.constant 0 : index
    %84 = vector.load %arg5[%c0_38, %c0_39] : memref<1x128xf32, #tpu.memory_space<vmem>>, vector<1x128xf32>
    %85 = vector.broadcast %84 : vector<1x128xf32> to vector<72x128xf32>
    %86 = arith.addf %83, %85 : vector<72x128xf32>
    %cst_40 = arith.constant 0.000000e+00 : f32
    %87 = vector.broadcast %cst_40 : f32 to vector<72x128xf32>
    %88 = arith.maximumf %86, %87 : vector<72x128xf32>
    %89 = arith.truncf %88 : vector<72x128xf32> to vector<72x128xbf16>
    %c0_41 = arith.constant 0 : index
    %c0_42 = arith.constant 0 : index
    %c0_43 = arith.constant 0 : index
    %90 = vector.load %arg11[%c0_41, %c0_42, %c0_43] : memref<1x72x128xbf16, #tpu.memory_space<vmem>>, vector<1x72x128xbf16>
    %91 = vector.shape_cast %90 : vector<1x72x128xbf16> to vector<72x128xbf16>
    %92 = vector.shape_cast %89 : vector<72x128xbf16> to vector<1x72x128xbf16>
    tpu.vector_store %arg11[%c0_41, %c0_42, %c0_43], %92 {strides = array<i32>} : memref<1x72x128xbf16, #tpu.memory_space<vmem>>, vector<1x72x128xbf16>,
    %93 = vector.extract_strided_slice %89 {offsets = [0, 0], sizes = [8, 128], strides = [1, 1]} : vector<72x128xbf16> to vector<8x128xbf16>
    %c0_44 = arith.constant 0 : index
    %c0_45 = arith.constant 0 : index
    %c0_46 = arith.constant 0 : index
    %94 = vector.load %arg6[%c0_44, %c0_45, %c0_46] : memref<9x128x128xbf16, #tpu.memory_space<vmem>>, vector<1x128x128xbf16>
    %95 = vector.shape_cast %94 : vector<1x128x128xbf16> to vector<128x128xbf16>
    %cst_47 = arith.constant dense<0.000000e+00> : vector<8x128xf32>
    %96 = tpu.matmul %93, %95, %cst_47 {dimension_numbers = #tpu.dot_dimension_numbers<[1], [0], [0], [1], [0, 0, 1, 1], [], []>} : vector<8x128xbf16>, vector<128x128xbf16>, vector<8x128xf32> -> vector<8x128xf32>
    %97 = vector.extract_strided_slice %89 {offsets = [8, 0], sizes = [8, 128], strides = [1, 1]} : vector<72x128xbf16> to vector<8x128xbf16>
    %c1_48 = arith.constant 1 : index
    %c0_49 = arith.constant 0 : index
    %c0_50 = arith.constant 0 : index
    %98 = vector.load %arg6[%c1_48, %c0_49, %c0_50] : memref<9x128x128xbf16, #tpu.memory_space<vmem>>, vector<1x128x128xbf16>
    %99 = vector.shape_cast %98 : vector<1x128x128xbf16> to vector<128x128xbf16>
    %cst_51 = arith.constant dense<0.000000e+00> : vector<8x128xf32>
    %100 = tpu.matmul %97, %99, %cst_51 {dimension_numbers = #tpu.dot_dimension_numbers<[1], [0], [0], [1], [0, 0, 1, 1], [], []>} : vector<8x128xbf16>, vector<128x128xbf16>, vector<8x128xf32> -> vector<8x128xf32>
    %101 = arith.addf %96, %100 : vector<8x128xf32>
    %102 = vector.extract_strided_slice %89 {offsets = [16, 0], sizes = [8, 128], strides = [1, 1]} : vector<72x128xbf16> to vector<8x128xbf16>
    %c2_52 = arith.constant 2 : index
    %c0_53 = arith.constant 0 : index
    %c0_54 = arith.constant 0 : index
    %103 = vector.load %arg6[%c2_52, %c0_53, %c0_54] : memref<9x128x128xbf16, #tpu.memory_space<vmem>>, vector<1x128x128xbf16>
    %104 = vector.shape_cast %103 : vector<1x128x128xbf16> to vector<128x128xbf16>
    %cst_55 = arith.constant dense<0.000000e+00> : vector<8x128xf32>
    %105 = tpu.matmul %102, %104, %cst_55 {dimension_numbers = #tpu.dot_dimension_numbers<[1], [0], [0], [1], [0, 0, 1, 1], [], []>} : vector<8x128xbf16>, vector<128x128xbf16>, vector<8x128xf32> -> vector<8x128xf32>
    %106 = arith.addf %101, %105 : vector<8x128xf32>
    %107 = vector.extract_strided_slice %89 {offsets = [24, 0], sizes = [8, 128], strides = [1, 1]} : vector<72x128xbf16> to vector<8x128xbf16>
    %c3_56 = arith.constant 3 : index
    %c0_57 = arith.constant 0 : index
    %c0_58 = arith.constant 0 : index
    %108 = vector.load %arg6[%c3_56, %c0_57, %c0_58] : memref<9x128x128xbf16, #tpu.memory_space<vmem>>, vector<1x128x128xbf16>
    %109 = vector.shape_cast %108 : vector<1x128x128xbf16> to vector<128x128xbf16>
    %cst_59 = arith.constant dense<0.000000e+00> : vector<8x128xf32>
    %110 = tpu.matmul %107, %109, %cst_59 {dimension_numbers = #tpu.dot_dimension_numbers<[1], [0], [0], [1], [0, 0, 1, 1], [], []>} : vector<8x128xbf16>, vector<128x128xbf16>, vector<8x128xf32> -> vector<8x128xf32>
    %111 = arith.addf %106, %110 : vector<8x128xf32>
    %112 = vector.extract_strided_slice %89 {offsets = [32, 0], sizes = [8, 128], strides = [1, 1]} : vector<72x128xbf16> to vector<8x128xbf16>
    %c4_60 = arith.constant 4 : index
    %c0_61 = arith.constant 0 : index
    %c0_62 = arith.constant 0 : index
    %113 = vector.load %arg6[%c4_60, %c0_61, %c0_62] : memref<9x128x128xbf16, #tpu.memory_space<vmem>>, vector<1x128x128xbf16>
    %114 = vector.shape_cast %113 : vector<1x128x128xbf16> to vector<128x128xbf16>
    %cst_63 = arith.constant dense<0.000000e+00> : vector<8x128xf32>
    %115 = tpu.matmul %112, %114, %cst_63 {dimension_numbers = #tpu.dot_dimension_numbers<[1], [0], [0], [1], [0, 0, 1, 1], [], []>} : vector<8x128xbf16>, vector<128x128xbf16>, vector<8x128xf32> -> vector<8x128xf32>
    %116 = arith.addf %111, %115 : vector<8x128xf32>
    %117 = vector.extract_strided_slice %89 {offsets = [40, 0], sizes = [8, 128], strides = [1, 1]} : vector<72x128xbf16> to vector<8x128xbf16>
    %c5_64 = arith.constant 5 : index
    %c0_65 = arith.constant 0 : index
    %c0_66 = arith.constant 0 : index
    %118 = vector.load %arg6[%c5_64, %c0_65, %c0_66] : memref<9x128x128xbf16, #tpu.memory_space<vmem>>, vector<1x128x128xbf16>
    %119 = vector.shape_cast %118 : vector<1x128x128xbf16> to vector<128x128xbf16>
    %cst_67 = arith.constant dense<0.000000e+00> : vector<8x128xf32>
    %120 = tpu.matmul %117, %119, %cst_67 {dimension_numbers = #tpu.dot_dimension_numbers<[1], [0], [0], [1], [0, 0, 1, 1], [], []>} : vector<8x128xbf16>, vector<128x128xbf16>, vector<8x128xf32> -> vector<8x128xf32>
    %121 = arith.addf %116, %120 : vector<8x128xf32>
    %122 = vector.extract_strided_slice %89 {offsets = [48, 0], sizes = [8, 128], strides = [1, 1]} : vector<72x128xbf16> to vector<8x128xbf16>
    %c6_68 = arith.constant 6 : index
    %c0_69 = arith.constant 0 : index
    %c0_70 = arith.constant 0 : index
    %123 = vector.load %arg6[%c6_68, %c0_69, %c0_70] : memref<9x128x128xbf16, #tpu.memory_space<vmem>>, vector<1x128x128xbf16>
    %124 = vector.shape_cast %123 : vector<1x128x128xbf16> to vector<128x128xbf16>
    %cst_71 = arith.constant dense<0.000000e+00> : vector<8x128xf32>
    %125 = tpu.matmul %122, %124, %cst_71 {dimension_numbers = #tpu.dot_dimension_numbers<[1], [0], [0], [1], [0, 0, 1, 1], [], []>} : vector<8x128xbf16>, vector<128x128xbf16>, vector<8x128xf32> -> vector<8x128xf32>
    %126 = arith.addf %121, %125 : vector<8x128xf32>
    %127 = vector.extract_strided_slice %89 {offsets = [56, 0], sizes = [8, 128], strides = [1, 1]} : vector<72x128xbf16> to vector<8x128xbf16>
    %c7_72 = arith.constant 7 : index
    %c0_73 = arith.constant 0 : index
    %c0_74 = arith.constant 0 : index
    %128 = vector.load %arg6[%c7_72, %c0_73, %c0_74] : memref<9x128x128xbf16, #tpu.memory_space<vmem>>, vector<1x128x128xbf16>
    %129 = vector.shape_cast %128 : vector<1x128x128xbf16> to vector<128x128xbf16>
    %cst_75 = arith.constant dense<0.000000e+00> : vector<8x128xf32>
    %130 = tpu.matmul %127, %129, %cst_75 {dimension_numbers = #tpu.dot_dimension_numbers<[1], [0], [0], [1], [0, 0, 1, 1], [], []>} : vector<8x128xbf16>, vector<128x128xbf16>, vector<8x128xf32> -> vector<8x128xf32>
    %131 = arith.addf %126, %130 : vector<8x128xf32>
    %132 = vector.extract_strided_slice %89 {offsets = [64, 0], sizes = [8, 128], strides = [1, 1]} : vector<72x128xbf16> to vector<8x128xbf16>
    %c8_76 = arith.constant 8 : index
    %c0_77 = arith.constant 0 : index
    %c0_78 = arith.constant 0 : index
    %133 = vector.load %arg6[%c8_76, %c0_77, %c0_78] : memref<9x128x128xbf16, #tpu.memory_space<vmem>>, vector<1x128x128xbf16>
    %134 = vector.shape_cast %133 : vector<1x128x128xbf16> to vector<128x128xbf16>
    %cst_79 = arith.constant dense<0.000000e+00> : vector<8x128xf32>
    %135 = tpu.matmul %132, %134, %cst_79 {dimension_numbers = #tpu.dot_dimension_numbers<[1], [0], [0], [1], [0, 0, 1, 1], [], []>} : vector<8x128xbf16>, vector<128x128xbf16>, vector<8x128xf32> -> vector<8x128xf32>
    %136 = arith.addf %131, %135 : vector<8x128xf32>
    %c0_80 = arith.constant 0 : index
    %c0_81 = arith.constant 0 : index
    %137 = vector.load %arg7[%c0_80, %c0_81] : memref<1x128xf32, #tpu.memory_space<vmem>>, vector<1x128xf32>
    %138 = vector.broadcast %137 : vector<1x128xf32> to vector<8x128xf32>
    %139 = arith.addf %136, %138 : vector<8x128xf32>
    %cst_82 = arith.constant 0.000000e+00 : f32
    %140 = vector.broadcast %cst_82 : f32 to vector<8x128xf32>
    %141 = arith.maximumf %139, %140 : vector<8x128xf32>
    %142 = arith.truncf %141 : vector<8x128xf32> to vector<8x128xbf16>
    %c0_83 = arith.constant 0 : index
    %c0_84 = arith.constant 0 : index
    %c0_85 = arith.constant 0 : index
    %143 = vector.load %arg12[%c0_83, %c0_84, %c0_85] : memref<1x8x128xbf16, #tpu.memory_space<vmem>>, vector<1x8x128xbf16>
    %144 = vector.shape_cast %143 : vector<1x8x128xbf16> to vector<8x128xbf16>
    %145 = vector.shape_cast %142 : vector<8x128xbf16> to vector<1x8x128xbf16>
    tpu.vector_store %arg12[%c0_83, %c0_84, %c0_85], %145 {strides = array<i32>} : memref<1x8x128xbf16, #tpu.memory_space<vmem>>, vector<1x8x128xbf16>,
    %c0_86 = arith.constant 0 : index
    %c0_87 = arith.constant 0 : index
    %c0_88 = arith.constant 0 : index
    %146 = vector.load %arg8[%c0_86, %c0_87, %c0_88] : memref<1x128x128xbf16, #tpu.memory_space<vmem>>, vector<1x128x128xbf16>
    %147 = vector.shape_cast %146 : vector<1x128x128xbf16> to vector<128x128xbf16>
    %cst_89 = arith.constant dense<0.000000e+00> : vector<8x128xf32>
    %148 = tpu.matmul %142, %147, %cst_89 {dimension_numbers = #tpu.dot_dimension_numbers<[1], [0], [0], [1], [0, 0, 1, 1], [], []>} : vector<8x128xbf16>, vector<128x128xbf16>, vector<8x128xf32> -> vector<8x128xf32>
    %c0_90 = arith.constant 0 : index
    %c0_91 = arith.constant 0 : index
    %149 = vector.load %arg9[%c0_90, %c0_91] : memref<1x128xf32, #tpu.memory_space<vmem>>, vector<1x128xf32>
    %150 = vector.broadcast %149 : vector<1x128xf32> to vector<8x128xf32>
    %151 = arith.addf %148, %150 : vector<8x128xf32>
    %c0_92 = arith.constant 0 : index
    %c0_93 = arith.constant 0 : index
    %c0_94 = arith.constant 0 : index
    %152 = vector.load %arg13[%c0_92, %c0_93, %c0_94] : memref<1x8x128xf32, #tpu.memory_space<vmem>>, vector<1x8x128xf32>
    %153 = vector.shape_cast %152 : vector<1x8x128xf32> to vector<8x128xf32>
    %154 = vector.shape_cast %151 : vector<8x128xf32> to vector<1x8x128xf32>
    tpu.vector_store %arg13[%c0_92, %c0_93, %c0_94], %154 {strides = array<i32>} : memref<1x8x128xf32, #tpu.memory_space<vmem>>, vector<1x8x128xf32>,
    return
  }
  func.func @transform_0(%arg0: i32) -> (i32, i32, i32) {
    %c0_i32 = arith.constant 0 : i32
    %c0_i32_0 = arith.constant 0 : i32
    %c0_i32_1 = arith.constant 0 : i32
    return %arg0, %c0_i32, %c0_i32_0 : i32, i32, i32
  }
  func.func @transform_1(%arg0: i32) -> (i32, i32) {
    %c0_i32 = arith.constant 0 : i32
    %c0_i32_0 = arith.constant 0 : i32
    %c0_i32_1 = arith.constant 0 : i32
    return %c0_i32, %c0_i32_0 : i32, i32
  }
  func.func @transform_2(%arg0: i32) -> (i32, i32) {
    %c0_i32 = arith.constant 0 : i32
    %c0_i32_0 = arith.constant 0 : i32
    %c0_i32_1 = arith.constant 0 : i32
    return %c0_i32, %c0_i32_0 : i32, i32
  }
  func.func @transform_3(%arg0: i32) -> (i32, i32, i32) {
    %c0_i32 = arith.constant 0 : i32
    %c0_i32_0 = arith.constant 0 : i32
    %c0_i32_1 = arith.constant 0 : i32
    %c0_i32_2 = arith.constant 0 : i32
    return %c0_i32, %c0_i32_0, %c0_i32_1 : i32, i32, i32
  }
  func.func @transform_4(%arg0: i32) -> (i32, i32) {
    %c0_i32 = arith.constant 0 : i32
    %c0_i32_0 = arith.constant 0 : i32
    %c0_i32_1 = arith.constant 0 : i32
    return %c0_i32, %c0_i32_0 : i32, i32
  }
  func.func @transform_5(%arg0: i32) -> (i32, i32, i32) {
    %c0_i32 = arith.constant 0 : i32
    %c0_i32_0 = arith.constant 0 : i32
    %c0_i32_1 = arith.constant 0 : i32
    %c0_i32_2 = arith.constant 0 : i32
    return %c0_i32, %c0_i32_0, %c0_i32_1 : i32, i32, i32
  }
  func.func @transform_6(%arg0: i32) -> (i32, i32) {
    %c0_i32 = arith.constant 0 : i32
    %c0_i32_0 = arith.constant 0 : i32
    %c0_i32_1 = arith.constant 0 : i32
    return %c0_i32, %c0_i32_0 : i32, i32
  }
  func.func @transform_7(%arg0: i32) -> (i32, i32, i32) {
    %c0_i32 = arith.constant 0 : i32
    %c0_i32_0 = arith.constant 0 : i32
    %c0_i32_1 = arith.constant 0 : i32
    %c0_i32_2 = arith.constant 0 : i32
    return %c0_i32, %c0_i32_0, %c0_i32_1 : i32, i32, i32
  }
  func.func @transform_8(%arg0: i32) -> (i32, i32) {
    %c0_i32 = arith.constant 0 : i32
    %c0_i32_0 = arith.constant 0 : i32
    %c0_i32_1 = arith.constant 0 : i32
    return %c0_i32, %c0_i32_0 : i32, i32
  }
  func.func @transform_9(%arg0: i32) -> (i32, i32, i32) {
    %c0_i32 = arith.constant 0 : i32
    %c0_i32_0 = arith.constant 0 : i32
    %c0_i32_1 = arith.constant 0 : i32
    return %arg0, %c0_i32, %c0_i32_0 : i32, i32, i32
  }
  func.func @transform_10(%arg0: i32) -> (i32, i32, i32) {
    %c0_i32 = arith.constant 0 : i32
    %c0_i32_0 = arith.constant 0 : i32
    %c0_i32_1 = arith.constant 0 : i32
    return %arg0, %c0_i32, %c0_i32_0 : i32, i32, i32
  }
  func.func @transform_11(%arg0: i32) -> (i32, i32, i32) {
    %c0_i32 = arith.constant 0 : i32
    %c0_i32_0 = arith.constant 0 : i32
    %c0_i32_1 = arith.constant 0 : i32
    return %arg0, %c0_i32, %c0_i32_0 : i32, i32, i32
  }
  func.func @transform_12(%arg0: i32) -> (i32, i32, i32) {
    %c0_i32 = arith.constant 0 : i32
    %c0_i32_0 = arith.constant 0 : i32
    %c0_i32_1 = arith.constant 0 : i32
    return %arg0, %c0_i32, %c0_i32_0 : i32, i32, i32
  }
}

</mosaic_0001>

<llo_original>
// kernel: custom-call.3
$region0: #{custom-call.3}
  %s0 = inlined_call_operand.vmem [shape: bf16[49,2,8], index: 0, kind: output, shape index: {}]

// kernel: custom-call.4
$region0: #{custom-call.4}
  %s0 = inlined_call_operand.vmem [shape: bf16[9,2,16], index: 0, kind: output, shape index: {}]

// kernel: pnnbase_forward.1
$region0: #{pnnbase_forward.1}
  #allocation0 [shape = 'u32[]', space=smem, size = 0x4, offset = 0x4, fixed_abs, tag = 'smem constant byte address 0x4 - core index']
  #allocation1 [shape = 'u32[144,128]{1,0:T(1,128)}', space=vmem, size = 0x12000, scoped, tag = 'internal scratch']
  %s0 = inlined_call_operand.vmem [shape: bf16[1,392,128], index: 0, kind: input, shape index: {}]
  %s1 = inlined_call_operand.vmem [shape: bf16[128,128], index: 1, kind: input, shape index: {}]
  %s2 = inlined_call_operand.vmem [shape: f32[1,128], index: 2, kind: input, shape index: {}]
  %s3 = inlined_call_operand.vmem [shape: bf16[9,128,128], index: 3, kind: input, shape index: {}]
  %s4 = inlined_call_operand.vmem [shape: f32[1,128], index: 4, kind: input, shape index: {}]
  %s5 = inlined_call_operand.vmem [shape: bf16[9,128,128], index: 5, kind: input, shape index: {}]
  %s6 = inlined_call_operand.vmem [shape: f32[1,128], index: 6, kind: input, shape index: {}]
  %s7 = inlined_call_operand.vmem [shape: bf16[1,128,128], index: 7, kind: input, shape index: {}]
  %s8 = inlined_call_operand.vmem [shape: f32[1,128], index: 8, kind: input, shape index: {}]
  %s9 = inlined_call_operand.vmem [shape: bf16[1,392,128], index: 9, kind: output, shape index: {0}]
  %s10 = inlined_call_operand.vmem [shape: bf16[1,72,128], index: 10, kind: output, shape index: {1}]
  %s11 = inlined_call_operand.vmem [shape: bf16[1,8,128], index: 11, kind: output, shape index: {2}]
  %s12 = inlined_call_operand.vmem [shape: f32[1,8,128], index: 12, kind: output, shape index: {3}]
  %13 = xla_tuple %s9, %s10, %s11, %s12
  %s14 = sld [smem:[#allocation0]]
  $region70: #{pnnbase_forward.1} parent=0
    _
  %s16 = ssub.s32 1, %s14
  %s17 = scalar_select 0, %s16, %s14
  // Predicated region
  $region2: #{pnnbase_forward.1} parent=0 // pred_check
    _
  $region3: #{pnnbase_forward.1} parent=0 // pred_check_branch
    %19 = sbr.rel (0) target = $region5
  $region4: #{pnnbase_forward.1} parent=0 // pred_region
    _
  $region5: #{pnnbase_forward.1} parent=0 // pred_fallthru
    _
  // Predicated region
  $region6: #{pnnbase_forward.1} parent=0 // pred_check
    _
  $region7: #{pnnbase_forward.1} parent=0 // pred_check_branch
    %21 = sbr.rel (0) target = $region9
  $region8: #{pnnbase_forward.1} parent=0 // pred_region
    _
  $region9: #{pnnbase_forward.1} parent=0 // pred_fallthru
    _
  // Predicated region
  $region10: #{pnnbase_forward.1} parent=0 // pred_check
    _
  $region11: #{pnnbase_forward.1} parent=0 // pred_check_branch
    %23 = sbr.rel (0) target = $region13
  $region12: #{pnnbase_forward.1} parent=0 // pred_region
    _
  $region13: #{pnnbase_forward.1} parent=0 // pred_fallthru
    _
  // Predicated region
  $region14: #{pnnbase_forward.1} parent=0 // pred_check
    _
  $region15: #{pnnbase_forward.1} parent=0 // pred_check_branch
    %25 = sbr.rel (0) target = $region17
  $region16: #{pnnbase_forward.1} parent=0 // pred_region
    _
  $region17: #{pnnbase_forward.1} parent=0 // pred_fallthru
    _
  // Predicated region
  $region18: #{pnnbase_forward.1} parent=0 // pred_check
    _
  $region19: #{pnnbase_forward.1} parent=0 // pred_check_branch
    %27 = sbr.rel (0) target = $region21
  $region20: #{pnnbase_forward.1} parent=0 // pred_region
    _
  $region21: #{pnnbase_forward.1} parent=0 // pred_fallthru
    _
  // Predicated region
  $region22: #{pnnbase_forward.1} parent=0 // pred_check
    _
  $region23: #{pnnbase_forward.1} parent=0 // pred_check_branch
    %29 = sbr.rel (0) target = $region25
  $region24: #{pnnbase_forward.1} parent=0 // pred_region
    _
  $region25: #{pnnbase_forward.1} parent=0 // pred_fallthru
    _
  // Predicated region
  $region26: #{pnnbase_forward.1} parent=0 // pred_check
    _
  $region27: #{pnnbase_forward.1} parent=0 // pred_check_branch
    %31 = sbr.rel (0) target = $region29
  $region28: #{pnnbase_forward.1} parent=0 // pred_region
    _
  $region29: #{pnnbase_forward.1} parent=0 // pred_fallthru
    _
  // Predicated region
  $region30: #{pnnbase_forward.1} parent=0 // pred_check
    _
  $region31: #{pnnbase_forward.1} parent=0 // pred_check_branch
    %33 = sbr.rel (0) target = $region33
  $region32: #{pnnbase_forward.1} parent=0 // pred_region
    _
  $region33: #{pnnbase_forward.1} parent=0 // pred_fallthru
    _
  // Predicated region
  $region34: #{pnnbase_forward.1} parent=0 // pred_check
    _
  $region35: #{pnnbase_forward.1} parent=0 // pred_check_branch
    %35 = sbr.rel (0) target = $region37
  $region36: #{pnnbase_forward.1} parent=0 // pred_region
    _
  $region37: #{pnnbase_forward.1} parent=0 // pred_fallthru
    _
  %v37 = vld [vmem:[%s0] sm:$0xf]
  %v38 = vld [vmem:[%s0 + $0x4] sm:$0xf]
  %v39 = vld [vmem:[%s0 + $0x8] sm:$0xf]
  %v40 = vld [vmem:[%s0 + $0xc] sm:$0xf]
  %v41 = vld [vmem:[%s0 + $0x10] sm:$0xf]
  %v42 = vld [vmem:[%s0 + $0x14] sm:$0xf]
  %v43 = vld [vmem:[%s0 + $0x18] sm:$0xf]
  %v44 = vld [vmem:[%s0 + $0x1c] sm:$0xf]
  %v45 = vld [vmem:[%s0 + $0x20] sm:$0xf]
  %v46 = vld [vmem:[%s0 + $0x24] sm:$0xf]
  %v47 = vld [vmem:[%s0 + $0x28] sm:$0xf]
  %v48 = vld [vmem:[%s0 + $0x2c] sm:$0xf]
  %v49 = vld [vmem:[%s0 + $0x30] sm:$0xf]
  %v50 = vld [vmem:[%s0 + $0x34] sm:$0xf]
  %v51 = vld [vmem:[%s0 + $0x38] sm:$0xf]
  %v52 = vld [vmem:[%s0 + $0x3c] sm:$0xf]
  %v53 = vld [vmem:[%s0 + $0x40] sm:$0xf]
  %v54 = vld [vmem:[%s0 + $0x44] sm:$0xf]
  %v55 = vld [vmem:[%s0 + $0x48] sm:$0xf]
  %v56 = vld [vmem:[%s0 + $0x4c] sm:$0xf]
  %v57 = vld [vmem:[%s0 + $0x50] sm:$0xf]
  %v58 = vld [vmem:[%s0 + $0x54] sm:$0xf]
  %v59 = vld [vmem:[%s0 + $0x58] sm:$0xf]
  %v60 = vld [vmem:[%s0 + $0x5c] sm:$0xf]
  %v61 = vld [vmem:[%s0 + $0x60] sm:$0xf]
  %v62 = vld [vmem:[%s0 + $0x64] sm:$0xf]
  %v63 = vld [vmem:[%s0 + $0x68] sm:$0xf]
  %v64 = vld [vmem:[%s0 + $0x6c] sm:$0xf]
  %v65 = vld [vmem:[%s0 + $0x70] sm:$0xf]
  %v66 = vld [vmem:[%s0 + $0x74] sm:$0xf]
  %v67 = vld [vmem:[%s0 + $0x78] sm:$0xf]
  %v68 = vld [vmem:[%s0 + $0x7c] sm:$0xf]
  %v69 = vld [vmem:[%s0 + $0x80] sm:$0xf]
  %v70 = vld [vmem:[%s0 + $0x84] sm:$0xf]
  %v71 = vld [vmem:[%s0 + $0x88] sm:$0xf]
  %v72 = vld [vmem:[%s0 + $0x8c] sm:$0xf]
  %v73 = vld [vmem:[%s0 + $0x90] sm:$0xf]
  %v74 = vld [vmem:[%s0 + $0x94] sm:$0xf]
  %v75 = vld [vmem:[%s0 + $0x98] sm:$0xf]
  %v76 = vld [vmem:[%s0 + $0x9c] sm:$0xf]
  %v77 = vld [vmem:[%s0 + $0xa0] sm:$0xf]
  %v78 = vld [vmem:[%s0 + $0xa4] sm:$0xf]
  %v79 = vld [vmem:[%s0 + $0xa8] sm:$0xf]
  %v80 = vld [vmem:[%s0 + $0xac] sm:$0xf]
  %v81 = vld [vmem:[%s0 + $0xb0] sm:$0xf]
  %v82 = vld [vmem:[%s0 + $0xb4] sm:$0xf]
  %v83 = vld [vmem:[%s0 + $0xb8] sm:$0xf]
  %v84 = vld [vmem:[%s0 + $0xbc] sm:$0xf]
  %v85 = vld [vmem:[%s0 + $0xc0] sm:$0xf]
  %v86 = vld [vmem:[%s1] sm:$0xf]
  %v87 = vld [vmem:[%s1 + $0x4] sm:$0xf]
  %v88 = vld [vmem:[%s1 + $0x8] sm:$0xf]
  %v89 = vld [vmem:[%s1 + $0xc] sm:$0xf]
  %v90 = vld [vmem:[%s1 + $0x10] sm:$0xf]
  %v91 = vld [vmem:[%s1 + $0x14] sm:$0xf]
  %v92 = vld [vmem:[%s1 + $0x18] sm:$0xf]
  %v93 = vld [vmem:[%s1 + $0x1c] sm:$0xf]
  %v94 = vld [vmem:[%s1 + $0x20] sm:$0xf]
  %v95 = vld [vmem:[%s1 + $0x24] sm:$0xf]
  %v96 = vld [vmem:[%s1 + $0x28] sm:$0xf]
  %v97 = vld [vmem:[%s1 + $0x2c] sm:$0xf]
  %v98 = vld [vmem:[%s1 + $0x30] sm:$0xf]
  %v99 = vld [vmem:[%s1 + $0x34] sm:$0xf]
  %v100 = vld [vmem:[%s1 + $0x38] sm:$0xf]
  %v101 = vld [vmem:[%s1 + $0x3c] sm:$0xf]
  %v102 = vld [vmem:[%s2] sm:$0x1]
  %v104 = vlaneseq
  %v105 = vshrl.u32 %v104, 7
  %v106 = vsub.s32 0, %v105
  %v107 = vrot.slane %v102, %v106
  %v158 = vunpack.c.l.b16 %v37
  %v159 = vunpack.c.l.b16 %v38
  %v160 = vunpack.c.l.b16 %v39
  %v161 = vunpack.c.l.b16 %v40
  %v162 = vunpack.c.l.b16 %v41
  %v163 = vunpack.c.l.b16 %v42
  %v164 = vunpack.c.l.b16 %v43
  %v165 = vunpack.c.l.b16 %v44
  %v166 = vunpack.c.l.b16 %v45
  %v167 = vunpack.c.l.b16 %v46
  %v168 = vunpack.c.l.b16 %v47
  %v169 = vunpack.c.l.b16 %v48
  %v170 = vunpack.c.l.b16 %v49
  %v171 = vunpack.c.l.b16 %v50
  %v172 = vunpack.c.l.b16 %v51
  %v173 = vunpack.c.l.b16 %v52
  %v174 = vunpack.c.l.b16 %v53
  %v175 = vunpack.c.l.b16 %v54
  %v176 = vunpack.c.l.b16 %v55
  %v177 = vunpack.c.l.b16 %v56
  %v178 = vunpack.c.l.b16 %v57
  %v179 = vunpack.c.l.b16 %v58
  %v180 = vunpack.c.l.b16 %v59
  %v181 = vunpack.c.l.b16 %v60
  %v182 = vunpack.c.l.b16 %v61
  %v183 = vunpack.c.l.b16 %v62
  %v184 = vunpack.c.l.b16 %v63
  %v185 = vunpack.c.l.b16 %v64
  %v186 = vunpack.c.l.b16 %v65
  %v187 = vunpack.c.l.b16 %v66
  %v188 = vunpack.c.l.b16 %v67
  %v189 = vunpack.c.l.b16 %v68
  %v190 = vunpack.c.l.b16 %v69
  %v191 = vunpack.c.l.b16 %v70
  %v192 = vunpack.c.l.b16 %v71
  %v193 = vunpack.c.l.b16 %v72
  %v194 = vunpack.c.l.b16 %v73
  %v195 = vunpack.c.l.b16 %v74
  %v196 = vunpack.c.l.b16 %v75
  %v197 = vunpack.c.l.b16 %v76
  %v198 = vunpack.c.l.b16 %v77
  %v199 = vunpack.c.l.b16 %v78
  %v200 = vunpack.c.l.b16 %v79
  %v201 = vunpack.c.l.b16 %v80
  %v202 = vunpack.c.l.b16 %v81
  %v203 = vunpack.c.l.b16 %v82
  %v204 = vunpack.c.l.b16 %v83
  %v205 = vunpack.c.l.b16 %v84
  %v206 = vunpack.c.l.b16 %v85
  %v207 = vpack.c.b16 %v159, %v158
  %v208 = vpack.c.b16 %v161, %v160
  %v209 = vpack.c.b16 %v163, %v162
  %v210 = vpack.c.b16 %v165, %v164
  %v211 = vpack.c.b16 %v167, %v166
  %v212 = vpack.c.b16 %v169, %v168
  %v213 = vpack.c.b16 %v171, %v170
  %v214 = vpack.c.b16 %v173, %v172
  %v215 = vpack.c.b16 %v175, %v174
  %v216 = vpack.c.b16 %v177, %v176
  %v217 = vpack.c.b16 %v179, %v178
  %v218 = vpack.c.b16 %v181, %v180
  %v219 = vpack.c.b16 %v183, %v182
  %v220 = vpack.c.b16 %v185, %v184
  %v221 = vpack.c.b16 %v187, %v186
  %v222 = vpack.c.b16 %v189, %v188
  %v223 = vpack.c.b16 %v191, %v190
  %v224 = vpack.c.b16 %v193, %v192
  %v225 = vpack.c.b16 %v195, %v194
  %v226 = vpack.c.b16 %v197, %v196
  %v227 = vpack.c.b16 %v199, %v198
  %v228 = vpack.c.b16 %v201, %v200
  %v229 = vpack.c.b16 %v203, %v202
  %v230 = vpack.c.b16 %v205, %v204
  %v231 = vpack.c.b16 %v206, %v206
  %v273 = vunpack.c.l.b16 %v86
  %v274 = vunpack.c.l.b16 %v87
  %v275 = vunpack.c.l.b16 %v88
  %v276 = vunpack.c.l.b16 %v89
  %v277 = vunpack.c.l.b16 %v90
  %v278 = vunpack.c.l.b16 %v91
  %v279 = vunpack.c.l.b16 %v92
  %v280 = vunpack.c.l.b16 %v93
  %v281 = vunpack.c.l.b16 %v94
  %v282 = vunpack.c.l.b16 %v95
  %v283 = vunpack.c.l.b16 %v96
  %v284 = vunpack.c.l.b16 %v97
  %v285 = vunpack.c.l.b16 %v98
  %v286 = vunpack.c.l.b16 %v99
  %v287 = vunpack.c.l.b16 %v100
  %v288 = vunpack.c.l.b16 %v101
  %v289 = vpack.c.b16 %v274, %v273
  %v290 = vpack.c.b16 %v276, %v275
  %v291 = vpack.c.b16 %v278, %v277
  %v292 = vpack.c.b16 %v280, %v279
  %v293 = vpack.c.b16 %v282, %v281
  %v294 = vpack.c.b16 %v284, %v283
  %v295 = vpack.c.b16 %v286, %v285
  %v296 = vpack.c.b16 %v288, %v287
  %305 = vmatprep.subr.bf16.mxu0 0
  %306 = vmatpush1.bf16.msra.mxu0 %v289
  %307 = vmatprep.subr.bf16.mxu0 0
  %308 = vmatpush1.bf16.msra.mxu0 %v290
  %309 = vmatprep.subr.bf16.mxu0 0
  %310 = vmatpush1.bf16.msra.mxu0 %v291
  %311 = vmatprep.subr.bf16.mxu0 0
  %312 = vmatpush1.bf16.msra.mxu0 %v292
  %313 = vmatprep.subr.bf16.mxu0 0
  %314 = vmatpush1.bf16.msra.mxu0 %v293
  %315 = vmatprep.subr.bf16.mxu0 0
  %316 = vmatpush1.bf16.msra.mxu0 %v294
  %317 = vmatprep.subr.bf16.mxu0 0
  %318 = vmatpush1.bf16.msra.mxu0 %v295
  %319 = vmatprep.subr.bf16.mxu0 0
  %320 = vmatpush1.bf16.msra.mxu0 %v296
  %321 = vmatprep.subr.bf16.mxu0 0
  %322 = vmatpush1.bf16.msra.mxu0 0
  %323 = vmatprep.subr.bf16.mxu0 0
  %324 = vmatpush1.bf16.msra.mxu0 0
  %325 = vmatprep.subr.bf16.mxu0 0
  %326 = vmatpush1.bf16.msra.mxu0 0
  %327 = vmatprep.subr.bf16.mxu0 0
  %328 = vmatpush1.bf16.msra.mxu0 0
  %329 = vmatprep.subr.bf16.mxu0 0
  %330 = vmatpush1.bf16.msra.mxu0 0
  %331 = vmatprep.subr.bf16.mxu0 0
  %332 = vmatpush1.bf16.msra.mxu0 0
  %333 = vmatprep.subr.bf16.mxu0 0
  %334 = vmatpush1.bf16.msra.mxu0 0
  %335 = vmatprep.subr.bf16.mxu0 0
  %336 = vmatpush1.bf16.msra.mxu0 0
  %337 = vmatprep.mubr.bf16.mxu0 0
  %338 = vmatmul.mubr.bf16.gmra.mrb[0].mxu0 %v207
  %v339 = vpop.f32.mrb[0].mxu0
  %v340 = vadd.f32 %v107, %v339
  %v341 = vpop.f32.mrb[0].mxu0
  %v342 = vpop.f32.mrb[0].mxu0
  %v343 = vadd.f32 %v107, %v342
  %v344 = vpop.f32.mrb[0].mxu0
  %345 = vmatprep.mubr.bf16.mxu0 0
  %346 = vmatmul.mubr.bf16.gmra.mrb[0].mxu0 %v208
  %v347 = vpop.f32.mrb[0].mxu0
  %v348 = vadd.f32 %v107, %v347
  %v349 = vpop.f32.mrb[0].mxu0
  %v350 = vpop.f32.mrb[0].mxu0
  %v351 = vadd.f32 %v107, %v350
  %v352 = vpop.f32.mrb[0].mxu0
  %353 = vmatprep.mubr.bf16.mxu0 0
  %354 = vmatmul.mubr.bf16.gmra.mrb[0].mxu0 %v209
  %v355 = vpop.f32.mrb[0].mxu0
  %v356 = vadd.f32 %v107, %v355
  %v357 = vpop.f32.mrb[0].mxu0
  %v358 = vpop.f32.mrb[0].mxu0
  %v359 = vadd.f32 %v107, %v358
  %v360 = vpop.f32.mrb[0].mxu0
  %361 = vmatprep.mubr.bf16.mxu0 0
  %362 = vmatmul.mubr.bf16.gmra.mrb[0].mxu0 %v210
  %v363 = vpop.f32.mrb[0].mxu0
  %v364 = vadd.f32 %v107, %v363
  %v365 = vpop.f32.mrb[0].mxu0
  %v366 = vpop.f32.mrb[0].mxu0
  %v367 = vadd.f32 %v107, %v366
  %v368 = vpop.f32.mrb[0].mxu0
  %369 = vmatprep.mubr.bf16.mxu0 0
  %370 = vmatmul.mubr.bf16.gmra.mrb[0].mxu0 %v211
  %v371 = vpop.f32.mrb[0].mxu0
  %v372 = vadd.f32 %v107, %v371
  %v373 = vpop.f32.mrb[0].mxu0
  %v374 = vpop.f32.mrb[0].mxu0
  %v375 = vadd.f32 %v107, %v374
  %v376 = vpop.f32.mrb[0].mxu0
  %377 = vmatprep.mubr.bf16.mxu0 0
  %378 = vmatmul.mubr.bf16.gmra.mrb[0].mxu0 %v212
  %v379 = vpop.f32.mrb[0].mxu0
  %v380 = vadd.f32 %v107, %v379
  %v381 = vpop.f32.mrb[0].mxu0
  %v382 = vpop.f32.mrb[0].mxu0
  %v383 = vadd.f32 %v107, %v382
  %v384 = vpop.f32.mrb[0].mxu0
  %385 = vmatprep.mubr.bf16.mxu0 0
  %386 = vmatmul.mubr.bf16.gmra.mrb[0].mxu0 %v213
  %v387 = vpop.f32.mrb[0].mxu0
  %v388 = vadd.f32 %v107, %v387
  %v389 = vpop.f32.mrb[0].mxu0
  %v390 = vpop.f32.mrb[0].mxu0
  %v391 = vadd.f32 %v107, %v390
  %v392 = vpop.f32.mrb[0].mxu0
  %393 = vmatprep.mubr.bf16.mxu0 0
  %394 = vmatmul.mubr.bf16.gmra.mrb[0].mxu0 %v214
  %v395 = vpop.f32.mrb[0].mxu0
  %v396 = vadd.f32 %v107, %v395
  %v397 = vpop.f32.mrb[0].mxu0
  %v398 = vpop.f32.mrb[0].mxu0
  %v399 = vadd.f32 %v107, %v398
  %v400 = vpop.f32.mrb[0].mxu0
  %401 = vmatprep.mubr.bf16.mxu0 0
  %402 = vmatmul.mubr.bf16.gmra.mrb[0].mxu0 %v215
  %v403 = vpop.f32.mrb[0].mxu0
  %v404 = vadd.f32 %v107, %v403
  %v405 = vpop.f32.mrb[0].mxu0
  %v406 = vpop.f32.mrb[0].mxu0
  %v407 = vadd.f32 %v107, %v406
  %v408 = vpop.f32.mrb[0].mxu0
  %409 = vmatprep.mubr.bf16.mxu0 0
  %410 = vmatmul.mubr.bf16.gmra.mrb[0].mxu0 %v216
  %v411 = vpop.f32.mrb[0].mxu0
  %v412 = vadd.f32 %v107, %v411
  %v413 = vpop.f32.mrb[0].mxu0
  %v414 = vpop.f32.mrb[0].mxu0
  %v415 = vadd.f32 %v107, %v414
  %v416 = vpop.f32.mrb[0].mxu0
  %417 = vmatprep.mubr.bf16.mxu0 0
  %418 = vmatmul.mubr.bf16.gmra.mrb[0].mxu0 %v217
  %v419 = vpop.f32.mrb[0].mxu0
  %v420 = vadd.f32 %v107, %v419
  %v421 = vpop.f32.mrb[0].mxu0
  %v422 = vpop.f32.mrb[0].mxu0
  %v423 = vadd.f32 %v107, %v422
  %v424 = vpop.f32.mrb[0].mxu0
  %425 = vmatprep.mubr.bf16.mxu0 0
  %426 = vmatmul.mubr.bf16.gmra.mrb[0].mxu0 %v218
  %v427 = vpop.f32.mrb[0].mxu0
  %v428 = vadd.f32 %v107, %v427
  %v429 = vpop.f32.mrb[0].mxu0
  %v430 = vpop.f32.mrb[0].mxu0
  %v431 = vadd.f32 %v107, %v430
  %v432 = vpop.f32.mrb[0].mxu0
  %433 = vmatprep.mubr.bf16.mxu0 0
  %434 = vmatmul.mubr.bf16.gmra.mrb[0].mxu0 %v219
  %v435 = vpop.f32.mrb[0].mxu0
  %v436 = vadd.f32 %v107, %v435
  %v437 = vpop.f32.mrb[0].mxu0
  %v438 = vpop.f32.mrb[0].mxu0
  %v439 = vadd.f32 %v107, %v438
  %v440 = vpop.f32.mrb[0].mxu0
  %441 = vmatprep.mubr.bf16.mxu0 0
  %442 = vmatmul.mubr.bf16.gmra.mrb[0].mxu0 %v220
  %v443 = vpop.f32.mrb[0].mxu0
  %v444 = vadd.f32 %v107, %v443
  %v445 = vpop.f32.mrb[0].mxu0
  %v446 = vpop.f32.mrb[0].mxu0
  %v447 = vadd.f32 %v107, %v446
  %v448 = vpop.f32.mrb[0].mxu0
  %449 = vmatprep.mubr.bf16.mxu0 0
  %450 = vmatmul.mubr.bf16.gmra.mrb[0].mxu0 %v221
  %v451 = vpop.f32.mrb[0].mxu0
  %v452 = vadd.f32 %v107, %v451
  %v453 = vpop.f32.mrb[0].mxu0
  %v454 = vpop.f32.mrb[0].mxu0
  %v455 = vadd.f32 %v107, %v454
  %v456 = vpop.f32.mrb[0].mxu0
  %457 = vmatprep.mubr.bf16.mxu0 0
  %458 = vmatmul.mubr.bf16.gmra.mrb[0].mxu0 %v222
  %v459 = vpop.f32.mrb[0].mxu0
  %v460 = vadd.f32 %v107, %v459
  %v461 = vpop.f32.mrb[0].mxu0
  %v462 = vpop.f32.mrb[0].mxu0
  %v463 = vadd.f32 %v107, %v462
  %v464 = vpop.f32.mrb[0].mxu0
  %465 = vmatprep.mubr.bf16.mxu0 0
  %466 = vmatmul.mubr.bf16.gmra.mrb[0].mxu0 %v223
  %v467 = vpop.f32.mrb[0].mxu0
  %v468 = vadd.f32 %v107, %v467
  %v469 = vpop.f32.mrb[0].mxu0
  %v470 = vpop.f32.mrb[0].mxu0
  %v471 = vadd.f32 %v107, %v470
  %v472 = vpop.f32.mrb[0].mxu0
  %473 = vmatprep.mubr.bf16.mxu0 0
  %474 = vmatmul.mubr.bf16.gmra.mrb[0].mxu0 %v224
  %v475 = vpop.f32.mrb[0].mxu0
  %v476 = vadd.f32 %v107, %v475
  %v477 = vpop.f32.mrb[0].mxu0
  %v478 = vpop.f32.mrb[0].mxu0
  %v479 = vadd.f32 %v107, %v478
  %v480 = vpop.f32.mrb[0].mxu0
  %481 = vmatprep.mubr.bf16.mxu0 0
  %482 = vmatmul.mubr.bf16.gmra.mrb[0].mxu0 %v225
  %v483 = vpop.f32.mrb[0].mxu0
  %v484 = vadd.f32 %v107, %v483
  %v485 = vpop.f32.mrb[0].mxu0
  %v486 = vpop.f32.mrb[0].mxu0
  %v487 = vadd.f32 %v107, %v486
  %v488 = vpop.f32.mrb[0].mxu0
  %489 = vmatprep.mubr.bf16.mxu0 0
  %490 = vmatmul.mubr.bf16.gmra.mrb[0].mxu0 %v226
  %v491 = vpop.f32.mrb[0].mxu0
  %v492 = vadd.f32 %v107, %v491
  %v493 = vpop.f32.mrb[0].mxu0
  %v494 = vpop.f32.mrb[0].mxu0
  %v495 = vadd.f32 %v107, %v494
  %v496 = vpop.f32.mrb[0].mxu0
  %497 = vmatprep.mubr.bf16.mxu0 0
  %498 = vmatmul.mubr.bf16.gmra.mrb[0].mxu0 %v227
  %v499 = vpop.f32.mrb[0].mxu0
  %v500 = vadd.f32 %v107, %v499
  %v501 = vpop.f32.mrb[0].mxu0
  %v502 = vpop.f32.mrb[0].mxu0
  %v503 = vadd.f32 %v107, %v502
  %v504 = vpop.f32.mrb[0].mxu0
  %505 = vmatprep.mubr.bf16.mxu0 0
  %506 = vmatmul.mubr.bf16.gmra.mrb[0].mxu0 %v228
  %v507 = vpop.f32.mrb[0].mxu0
  %v508 = vadd.f32 %v107, %v507
  %v509 = vpop.f32.mrb[0].mxu0
  %v510 = vpop.f32.mrb[0].mxu0
  %v511 = vadd.f32 %v107, %v510
  %v512 = vpop.f32.mrb[0].mxu0
  %513 = vmatprep.mubr.bf16.mxu0 0
  %514 = vmatmul.mubr.bf16.gmra.mrb[0].mxu0 %v229
  %v515 = vpop.f32.mrb[0].mxu0
  %v516 = vadd.f32 %v107, %v515
  %v517 = vpop.f32.mrb[0].mxu0
  %v518 = vpop.f32.mrb[0].mxu0
  %v519 = vadd.f32 %v107, %v518
  %v520 = vpop.f32.mrb[0].mxu0
  %521 = vmatprep.mubr.bf16.mxu0 0
  %522 = vmatmul.mubr.bf16.gmra.mrb[0].mxu0 %v230
  %v523 = vpop.f32.mrb[0].mxu0
  %v524 = vadd.f32 %v107, %v523
  %v525 = vpop.f32.mrb[0].mxu0
  %v526 = vpop.f32.mrb[0].mxu0
  %v527 = vadd.f32 %v107, %v526
  %v528 = vpop.f32.mrb[0].mxu0
  %529 = vmatprep.mubr.bf16.mxu0 0
  %530 = vmatmul.mubr.bf16.gmra.mrb[0].mxu0 %v231
  %v531 = vpop.f32.mrb[0].mxu0
  %v532 = vadd.f32 %v107, %v531
  %v533 = vpop.f32.mrb[0].mxu0
  %v534 = vpop.f32.mrb[0].mxu0
  %v535 = vpop.f32.mrb[0].mxu0
  %536 = vdwg.mxu0
  %v537 = vmax.f32 %v340, 0.0
  %v538 = vmax.f32 %v343, 0.0
  %v539 = vmax.f32 %v348, 0.0
  %v540 = vmax.f32 %v351, 0.0
  %v541 = vmax.f32 %v356, 0.0
  %v542 = vmax.f32 %v359, 0.0
  %v543 = vmax.f32 %v364, 0.0
  %v544 = vmax.f32 %v367, 0.0
  %v545 = vmax.f32 %v372, 0.0
  %v546 = vmax.f32 %v375, 0.0
  %v547 = vmax.f32 %v380, 0.0
  %v548 = vmax.f32 %v383, 0.0
  %v549 = vmax.f32 %v388, 0.0
  %v550 = vmax.f32 %v391, 0.0
  %v551 = vmax.f32 %v396, 0.0
  %v552 = vmax.f32 %v399, 0.0
  %v553 = vmax.f32 %v404, 0.0
  %v554 = vmax.f32 %v407, 0.0
  %v555 = vmax.f32 %v412, 0.0
  %v556 = vmax.f32 %v415, 0.0
  %v557 = vmax.f32 %v420, 0.0
  %v558 = vmax.f32 %v423, 0.0
  %v559 = vmax.f32 %v428, 0.0
  %v560 = vmax.f32 %v431, 0.0
  %v561 = vmax.f32 %v436, 0.0
  %v562 = vmax.f32 %v439, 0.0
  %v563 = vmax.f32 %v444, 0.0
  %v564 = vmax.f32 %v447, 0.0
  %v565 = vmax.f32 %v452, 0.0
  %v566 = vmax.f32 %v455, 0.0
  %v567 = vmax.f32 %v460, 0.0
  %v568 = vmax.f32 %v463, 0.0
  %v569 = vmax.f32 %v468, 0.0
  %v570 = vmax.f32 %v471, 0.0
  %v571 = vmax.f32 %v476, 0.0
  %v572 = vmax.f32 %v479, 0.0
  %v573 = vmax.f32 %v484, 0.0
  %v574 = vmax.f32 %v487, 0.0
  %v575 = vmax.f32 %v492, 0.0
  %v576 = vmax.f32 %v495, 0.0
  %v577 = vmax.f32 %v500, 0.0
  %v578 = vmax.f32 %v503, 0.0
  %v579 = vmax.f32 %v508, 0.0
  %v580 = vmax.f32 %v511, 0.0
  %v581 = vmax.f32 %v516, 0.0
  %v582 = vmax.f32 %v519, 0.0
  %v583 = vmax.f32 %v524, 0.0
  %v584 = vmax.f32 %v527, 0.0
  %v585 = vmax.f32 %v532, 0.0
  %v586 = vpack.c.bf16 %v538, %v537
  %v587 = vpack.c.bf16 %v540, %v539
  %v588 = vpack.c.bf16 %v542, %v541
  %v589 = vpack.c.bf16 %v544, %v543
  %v590 = vpack.c.bf16 %v546, %v545
  %v591 = vpack.c.bf16 %v548, %v547
  %v592 = vpack.c.bf16 %v550, %v549
  %v593 = vpack.c.bf16 %v552, %v551
  %v594 = vpack.c.bf16 %v554, %v553
  %v595 = vpack.c.bf16 %v556, %v555
  %v596 = vpack.c.bf16 %v558, %v557
  %v597 = vpack.c.bf16 %v560, %v559
  %v598 = vpack.c.bf16 %v562, %v561
  %v599 = vpack.c.bf16 %v564, %v563
  %v600 = vpack.c.bf16 %v566, %v565
  %v601 = vpack.c.bf16 %v568, %v567
  %v602 = vpack.c.bf16 %v570, %v569
  %v603 = vpack.c.bf16 %v572, %v571
  %v604 = vpack.c.bf16 %v574, %v573
  %v605 = vpack.c.bf16 %v576, %v575
  %v606 = vpack.c.bf16 %v578, %v577
  %v607 = vpack.c.bf16 %v580, %v579
  %v608 = vpack.c.bf16 %v582, %v581
  %v609 = vpack.c.bf16 %v584, %v583
  %v610 = vpack.c.bf16 %v585, %v585
  %v636 = vunpack.c.l.b16 %v586
  %v637 = vunpack.c.h.b16 %v586
  %v638 = vunpack.c.l.b16 %v587
  %v639 = vunpack.c.h.b16 %v587
  %v640 = vunpack.c.l.b16 %v588
  %v641 = vunpack.c.h.b16 %v588
  %v642 = vunpack.c.l.b16 %v589
  %v643 = vunpack.c.h.b16 %v589
  %v644 = vunpack.c.l.b16 %v590
  %v645 = vunpack.c.h.b16 %v590
  %v646 = vunpack.c.l.b16 %v591
  %v647 = vunpack.c.h.b16 %v591
  %v648 = vunpack.c.l.b16 %v592
  %v649 = vunpack.c.h.b16 %v592
  %v650 = vunpack.c.l.b16 %v593
  %v651 = vunpack.c.h.b16 %v593
  %v652 = vunpack.c.l.b16 %v594
  %v653 = vunpack.c.h.b16 %v594
  %v654 = vunpack.c.l.b16 %v595
  %v655 = vunpack.c.h.b16 %v595
  %v656 = vunpack.c.l.b16 %v596
  %v657 = vunpack.c.h.b16 %v596
  %v658 = vunpack.c.l.b16 %v597
  %v659 = vunpack.c.h.b16 %v597
  %v660 = vunpack.c.l.b16 %v598
  %v661 = vunpack.c.h.b16 %v598
  %v662 = vunpack.c.l.b16 %v599
  %v663 = vunpack.c.h.b16 %v599
  %v664 = vunpack.c.l.b16 %v600
  %v665 = vunpack.c.h.b16 %v600
  %v666 = vunpack.c.l.b16 %v601
  %v667 = vunpack.c.h.b16 %v601
  %v668 = vunpack.c.l.b16 %v602
  %v669 = vunpack.c.h.b16 %v602
  %v670 = vunpack.c.l.b16 %v603
  %v671 = vunpack.c.h.b16 %v603
  %v672 = vunpack.c.l.b16 %v604
  %v673 = vunpack.c.h.b16 %v604
  %v674 = vunpack.c.l.b16 %v605
  %v675 = vunpack.c.h.b16 %v605
  %v676 = vunpack.c.l.b16 %v606
  %v677 = vunpack.c.h.b16 %v606
  %v678 = vunpack.c.l.b16 %v607
  %v679 = vunpack.c.h.b16 %v607
  %v680 = vunpack.c.l.b16 %v608
  %v681 = vunpack.c.h.b16 %v608
  %v682 = vunpack.c.l.b16 %v609
  %v683 = vunpack.c.h.b16 %v609
  %v684 = vunpack.c.l.b16 %v610
  %v685 = vpack.c.b16 %v636, %v636
  %v686 = vpack.c.b16 %v637, %v637
  %v687 = vpack.c.b16 %v638, %v638
  %v688 = vpack.c.b16 %v639, %v639
  %v689 = vpack.c.b16 %v640, %v640
  %v690 = vpack.c.b16 %v641, %v641
  %v691 = vpack.c.b16 %v642, %v642
  %v692 = vpack.c.b16 %v643, %v643
  %v693 = vpack.c.b16 %v644, %v644
  %v694 = vpack.c.b16 %v645, %v645
  %v695 = vpack.c.b16 %v646, %v646
  %v696 = vpack.c.b16 %v647, %v647
  %v697 = vpack.c.b16 %v648, %v648
  %v698 = vpack.c.b16 %v649, %v649
  %v699 = vpack.c.b16 %v650, %v650
  %v700 = vpack.c.b16 %v651, %v651
  %v701 = vpack.c.b16 %v652, %v652
  %v702 = vpack.c.b16 %v653, %v653
  %v703 = vpack.c.b16 %v654, %v654
  %v704 = vpack.c.b16 %v655, %v655
  %v705 = vpack.c.b16 %v656, %v656
  %v706 = vpack.c.b16 %v657, %v657
  %v707 = vpack.c.b16 %v658, %v658
  %v708 = vpack.c.b16 %v659, %v659
  %v709 = vpack.c.b16 %v660, %v660
  %v710 = vpack.c.b16 %v661, %v661
  %v711 = vpack.c.b16 %v662, %v662
  %v712 = vpack.c.b16 %v663, %v663
  %v713 = vpack.c.b16 %v664, %v664
  %v714 = vpack.c.b16 %v665, %v665
  %v715 = vpack.c.b16 %v666, %v666
  %v716 = vpack.c.b16 %v667, %v667
  %v717 = vpack.c.b16 %v668, %v668
  %v718 = vpack.c.b16 %v669, %v669
  %v719 = vpack.c.b16 %v670, %v670
  %v720 = vpack.c.b16 %v671, %v671
  %v721 = vpack.c.b16 %v672, %v672
  %v722 = vpack.c.b16 %v673, %v673
  %v723 = vpack.c.b16 %v674, %v674
  %v724 = vpack.c.b16 %v675, %v675
  %v725 = vpack.c.b16 %v676, %v676
  %v726 = vpack.c.b16 %v677, %v677
  %v727 = vpack.c.b16 %v678, %v678
  %v728 = vpack.c.b16 %v679, %v679
  %v729 = vpack.c.b16 %v680, %v680
  %v730 = vpack.c.b16 %v681, %v681
  %v731 = vpack.c.b16 %v682, %v682
  %v732 = vpack.c.b16 %v683, %v683
  %v733 = vpack.c.b16 %v684, %v684
  %783 = vst [vmem:[%s9] sm:$0xf] %v685
  %784 = vst [vmem:[%s9 + $0x4] sm:$0xf] %v686
  %785 = vst [vmem:[%s9 + $0x8] sm:$0xf] %v687
  %786 = vst [vmem:[%s9 + $0xc] sm:$0xf] %v688
  %787 = vst [vmem:[%s9 + $0x10] sm:$0xf] %v689
  %788 = vst [vmem:[%s9 + $0x14] sm:$0xf] %v690
  %789 = vst [vmem:[%s9 + $0x18] sm:$0xf] %v691
  %790 = vst [vmem:[%s9 + $0x1c] sm:$0xf] %v692
  %791 = vst [vmem:[%s9 + $0x20] sm:$0xf] %v693
  %792 = vst [vmem:[%s9 + $0x24] sm:$0xf] %v694
  %793 = vst [vmem:[%s9 + $0x28] sm:$0xf] %v695
  %794 = vst [vmem:[%s9 + $0x2c] sm:$0xf] %v696
  %795 = vst [vmem:[%s9 + $0x30] sm:$0xf] %v697
  %796 = vst [vmem:[%s9 + $0x34] sm:$0xf] %v698
  %797 = vst [vmem:[%s9 + $0x38] sm:$0xf] %v699
  %798 = vst [vmem:[%s9 + $0x3c] sm:$0xf] %v700
  %799 = vst [vmem:[%s9 + $0x40] sm:$0xf] %v701
  %800 = vst [vmem:[%s9 + $0x44] sm:$0xf] %v702
  %801 = vst [vmem:[%s9 + $0x48] sm:$0xf] %v703
  %802 = vst [vmem:[%s9 + $0x4c] sm:$0xf] %v704
  %803 = vst [vmem:[%s9 + $0x50] sm:$0xf] %v705
  %804 = vst [vmem:[%s9 + $0x54] sm:$0xf] %v706
  %805 = vst [vmem:[%s9 + $0x58] sm:$0xf] %v707
  %806 = vst [vmem:[%s9 + $0x5c] sm:$0xf] %v708
  %807 = vst [vmem:[%s9 + $0x60] sm:$0xf] %v709
  %808 = vst [vmem:[%s9 + $0x64] sm:$0xf] %v710
  %809 = vst [vmem:[%s9 + $0x68] sm:$0xf] %v711
  %810 = vst [vmem:[%s9 + $0x6c] sm:$0xf] %v712
  %811 = vst [vmem:[%s9 + $0x70] sm:$0xf] %v713
  %812 = vst [vmem:[%s9 + $0x74] sm:$0xf] %v714
  %813 = vst [vmem:[%s9 + $0x78] sm:$0xf] %v715
  %814 = vst [vmem:[%s9 + $0x7c] sm:$0xf] %v716
  %815 = vst [vmem:[%s9 + $0x80] sm:$0xf] %v717
  %816 = vst [vmem:[%s9 + $0x84] sm:$0xf] %v718
  %817 = vst [vmem:[%s9 + $0x88] sm:$0xf] %v719
  %818 = vst [vmem:[%s9 + $0x8c] sm:$0xf] %v720
  %819 = vst [vmem:[%s9 + $0x90] sm:$0xf] %v721
  %820 = vst [vmem:[%s9 + $0x94] sm:$0xf] %v722
  %821 = vst [vmem:[%s9 + $0x98] sm:$0xf] %v723
  %822 = vst [vmem:[%s9 + $0x9c] sm:$0xf] %v724
  %823 = vst [vmem:[%s9 + $0xa0] sm:$0xf] %v725
  %824 = vst [vmem:[%s9 + $0xa4] sm:$0xf] %v726
  %825 = vst [vmem:[%s9 + $0xa8] sm:$0xf] %v727
  %826 = vst [vmem:[%s9 + $0xac] sm:$0xf] %v728
  %827 = vst [vmem:[%s9 + $0xb0] sm:$0xf] %v729
  %828 = vst [vmem:[%s9 + $0xb4] sm:$0xf] %v730
  %829 = vst [vmem:[%s9 + $0xb8] sm:$0xf] %v731
  %830 = vst [vmem:[%s9 + $0xbc] sm:$0xf] %v732
  %831 = vst [vmem:[%s9 + $0xc0] sm:$0xf] %v733
  %vm832 = vcmask 1043456
  %v833 = vrot.slane %v593, 4
  %v834 = vrot.slane %v594, 4
  %v835 = vsel %vm832, %v833, %v834
  %vm837 = vcmask 1043456
  %v840 = vsel %vm837, %v587, %v833
  %v842 = vld [vmem:[%s3] sm:$0xf]
  %v843 = vld [vmem:[%s3 + $0x4] sm:$0xf]
  %v844 = vld [vmem:[%s3 + $0x8] sm:$0xf]
  %v845 = vld [vmem:[%s3 + $0xc] sm:$0xf]
  %v846 = vld [vmem:[%s3 + $0x10] sm:$0xf]
  %v847 = vld [vmem:[%s3 + $0x14] sm:$0xf]
  %v848 = vld [vmem:[%s3 + $0x18] sm:$0xf]
  %v849 = vld [vmem:[%s3 + $0x1c] sm:$0xf]
  %v850 = vld [vmem:[%s3 + $0x20] sm:$0xf]
  %v851 = vld [vmem:[%s3 + $0x24] sm:$0xf]
  %v852 = vld [vmem:[%s3 + $0x28] sm:$0xf]
  %v853 = vld [vmem:[%s3 + $0x2c] sm:$0xf]
  %v854 = vld [vmem:[%s3 + $0x30] sm:$0xf]
  %v855 = vld [vmem:[%s3 + $0x34] sm:$0xf]
  %v856 = vld [vmem:[%s3 + $0x38] sm:$0xf]
  %v857 = vld [vmem:[%s3 + $0x3c] sm:$0xf]
  %v858 = vrot.slane %v595, 4
  %v859 = vrot.slane %v596, 4
  %v860 = vsel %vm832, %v858, %v859
  %v864 = vsel %vm837, %v589, %v858
  %s866 = scalar_lea.vmem %s3, 64
  %v867 = vld [vmem:[%s866] sm:$0xf]
  %v868 = vld [vmem:[%s866 + $0x4] sm:$0xf]
  %v869 = vld [vmem:[%s866 + $0x8] sm:$0xf]
  %v870 = vld [vmem:[%s866 + $0xc] sm:$0xf]
  %v871 = vld [vmem:[%s866 + $0x10] sm:$0xf]
  %v872 = vld [vmem:[%s866 + $0x14] sm:$0xf]
  %v873 = vld [vmem:[%s866 + $0x18] sm:$0xf]
  %v874 = vld [vmem:[%s866 + $0x1c] sm:$0xf]
  %v875 = vld [vmem:[%s866 + $0x20] sm:$0xf]
  %v876 = vld [vmem:[%s866 + $0x24] sm:$0xf]
  %v877 = vld [vmem:[%s866 + $0x28] sm:$0xf]
  %v878 = vld [vmem:[%s866 + $0x2c] sm:$0xf]
  %v879 = vld [vmem:[%s866 + $0x30] sm:$0xf]
  %v880 = vld [vmem:[%s866 + $0x34] sm:$0xf]
  %v881 = vld [vmem:[%s866 + $0x38] sm:$0xf]
  %v882 = vld [vmem:[%s866 + $0x3c] sm:$0xf]
  %v899 = vunpack.c.l.b16 %v867
  %v900 = vunpack.c.l.b16 %v868
  %v901 = vunpack.c.l.b16 %v869
  %v902 = vunpack.c.l.b16 %v870
  %v903 = vunpack.c.l.b16 %v871
  %v904 = vunpack.c.l.b16 %v872
  %v905 = vunpack.c.l.b16 %v873
  %v906 = vunpack.c.l.b16 %v874
  %v907 = vunpack.c.l.b16 %v875
  %v908 = vunpack.c.l.b16 %v876
  %v909 = vunpack.c.l.b16 %v877
  %v910 = vunpack.c.l.b16 %v878
  %v911 = vunpack.c.l.b16 %v879
  %v912 = vunpack.c.l.b16 %v880
  %v913 = vunpack.c.l.b16 %v881
  %v914 = vunpack.c.l.b16 %v882
  %v915 = vpack.c.b16 %v900, %v899
  %v916 = vpack.c.b16 %v902, %v901
  %v917 = vpack.c.b16 %v904, %v903
  %v918 = vpack.c.b16 %v906, %v905
  %v919 = vpack.c.b16 %v908, %v907
  %v920 = vpack.c.b16 %v910, %v909
  %v921 = vpack.c.b16 %v912, %v911
  %v922 = vpack.c.b16 %v914, %v913
  %931 = vmatprep.subr.bf16.mxu0 0
  %932 = vmatpush1.bf16.msra.mxu0 %v915
  %933 = vmatprep.subr.bf16.mxu0 0
  %934 = vmatpush1.bf16.msra.mxu0 %v916
  %935 = vmatprep.subr.bf16.mxu0 0
  %936 = vmatpush1.bf16.msra.mxu0 %v917
  %937 = vmatprep.subr.bf16.mxu0 0
  %938 = vmatpush1.bf16.msra.mxu0 %v918
  %939 = vmatprep.subr.bf16.mxu0 0
  %940 = vmatpush1.bf16.msra.mxu0 %v919
  %941 = vmatprep.subr.bf16.mxu0 0
  %942 = vmatpush1.bf16.msra.mxu0 %v920
  %943 = vmatprep.subr.bf16.mxu0 0
  %944 = vmatpush1.bf16.msra.mxu0 %v921
  %945 = vmatprep.subr.bf16.mxu0 0
  %946 = vmatpush1.bf16.msra.mxu0 %v922
  %947 = vmatprep.subr.bf16.mxu0 0
  %948 = vmatpush1.bf16.msra.mxu0 0
  %949 = vmatprep.subr.bf16.mxu0 0
  %950 = vmatpush1.bf16.msra.mxu0 0
  %951 = vmatprep.subr.bf16.mxu0 0
  %952 = vmatpush1.bf16.msra.mxu0 0
  %953 = vmatprep.subr.bf16.mxu0 0
  %954 = vmatpush1.bf16.msra.mxu0 0
  %955 = vmatprep.subr.bf16.mxu0 0
  %956 = vmatpush1.bf16.msra.mxu0 0
  %957 = vmatprep.subr.bf16.mxu0 0
  %958 = vmatpush1.bf16.msra.mxu0 0
  %959 = vmatprep.subr.bf16.mxu0 0
  %960 = vmatpush1.bf16.msra.mxu0 0
  %961 = vmatprep.subr.bf16.mxu0 0
  %962 = vmatpush1.bf16.msra.mxu0 0
  %963 = vmatprep.mubr.bf16.mxu0 0
  %964 = vmatmul.mubr.bf16.gmra.mrb[0].mxu0 %v588
  %v965 = vpop.f32.mrb[0].mxu0
  %v966 = vadd.f32 0.0, %v965
  %v967 = vpop.f32.mrb[0].mxu0
  %v968 = vpop.f32.mrb[0].mxu0
  %v969 = vadd.f32 0.0, %v968
  %v970 = vpop.f32.mrb[0].mxu0
  %971 = vmatprep.mubr.bf16.mxu0 0
  %972 = vmatmul.mubr.bf16.gmra.mrb[0].mxu0 %v864
  %v973 = vpop.f32.mrb[0].mxu0
  %v974 = vadd.f32 0.0, %v973
  %v975 = vpop.f32.mrb[0].mxu0
  %v976 = vpop.f32.mrb[0].mxu0
  %v977 = vadd.f32 0.0, %v976
  %v978 = vpop.f32.mrb[0].mxu0
  %979 = vmatprep.mubr.bf16.mxu0 0
  %980 = vmatmul.mubr.bf16.gmra.mrb[0].mxu0 %v860
  %v981 = vpop.f32.mrb[0].mxu0
  %v982 = vadd.f32 0.0, %v981
  %v983 = vpop.f32.mrb[0].mxu0
  %v984 = vpop.f32.mrb[0].mxu0
  %v985 = vadd.f32 0.0, %v984
  %v986 = vpop.f32.mrb[0].mxu0
  %987 = vmatprep.mubr.bf16.mxu0 0
  %988 = vmatmul.mubr.bf16.gmra.mrb[0].mxu0 %v602
  %v989 = vpop.f32.mrb[0].mxu0
  %v990 = vadd.f32 0.0, %v989
  %v991 = vpop.f32.mrb[0].mxu0
  %v992 = vpop.f32.mrb[0].mxu0
  %v993 = vadd.f32 0.0, %v992
  %v994 = vpop.f32.mrb[0].mxu0
  %995 = vmatprep.mubr.bf16.mxu0 0
  %996 = vmatmul.mubr.bf16.gmra.mrb[0].mxu0 %v603
  %v997 = vpop.f32.mrb[0].mxu0
  %v998 = vadd.f32 0.0, %v997
  %v999 = vpop.f32.mrb[0].mxu0
  %v1000 = vpop.f32.mrb[0].mxu0
  %v1001 = vpop.f32.mrb[0].mxu0
  %1002 = vdwg.mxu0
  %v1019 = vunpack.c.l.b16 %v842
  %v1020 = vunpack.c.l.b16 %v843
  %v1021 = vunpack.c.l.b16 %v844
  %v1022 = vunpack.c.l.b16 %v845
  %v1023 = vunpack.c.l.b16 %v846
  %v1024 = vunpack.c.l.b16 %v847
  %v1025 = vunpack.c.l.b16 %v848
  %v1026 = vunpack.c.l.b16 %v849
  %v1027 = vunpack.c.l.b16 %v850
  %v1028 = vunpack.c.l.b16 %v851
  %v1029 = vunpack.c.l.b16 %v852
  %v1030 = vunpack.c.l.b16 %v853
  %v1031 = vunpack.c.l.b16 %v854
  %v1032 = vunpack.c.l.b16 %v855
  %v1033 = vunpack.c.l.b16 %v856
  %v1034 = vunpack.c.l.b16 %v857
  %v1035 = vpack.c.b16 %v1020, %v1019
  %v1036 = vpack.c.b16 %v1022, %v1021
  %v1037 = vpack.c.b16 %v1024, %v1023
  %v1038 = vpack.c.b16 %v1026, %v1025
  %v1039 = vpack.c.b16 %v1028, %v1027
  %v1040 = vpack.c.b16 %v1030, %v1029
  %v1041 = vpack.c.b16 %v1032, %v1031
  %v1042 = vpack.c.b16 %v1034, %v1033
  %1051 = vmatprep.subr.bf16.mxu0 0
  %1052 = vmatpush1.bf16.msra.mxu0 %v1035
  %1053 = vmatprep.subr.bf16.mxu0 0
  %1054 = vmatpush1.bf16.msra.mxu0 %v1036
  %1055 = vmatprep.subr.bf16.mxu0 0
  %1056 = vmatpush1.bf16.msra.mxu0 %v1037
  %1057 = vmatprep.subr.bf16.mxu0 0
  %1058 = vmatpush1.bf16.msra.mxu0 %v1038
  %1059 = vmatprep.subr.bf16.mxu0 0
  %1060 = vmatpush1.bf16.msra.mxu0 %v1039
  %1061 = vmatprep.subr.bf16.mxu0 0
  %1062 = vmatpush1.bf16.msra.mxu0 %v1040
  %1063 = vmatprep.subr.bf16.mxu0 0
  %1064 = vmatpush1.bf16.msra.mxu0 %v1041
  %1065 = vmatprep.subr.bf16.mxu0 0
  %1066 = vmatpush1.bf16.msra.mxu0 %v1042
  %1067 = vmatprep.subr.bf16.mxu0 0
  %1068 = vmatpush1.bf16.msra.mxu0 0
  %1069 = vmatprep.subr.bf16.mxu0 0
  %1070 = vmatpush1.bf16.msra.mxu0 0
  %1071 = vmatprep.subr.bf16.mxu0 0
  %1072 = vmatpush1.bf16.msra.mxu0 0
  %1073 = vmatprep.subr.bf16.mxu0 0
  %1074 = vmatpush1.bf16.msra.mxu0 0
  %1075 = vmatprep.subr.bf16.mxu0 0
  %1076 = vmatpush1.bf16.msra.mxu0 0
  %1077 = vmatprep.subr.bf16.mxu0 0
  %1078 = vmatpush1.bf16.msra.mxu0 0
  %1079 = vmatprep.subr.bf16.mxu0 0
  %1080 = vmatpush1.bf16.msra.mxu0 0
  %1081 = vmatprep.subr.bf16.mxu0 0
  %1082 = vmatpush1.bf16.msra.mxu0 0
  %1083 = vmatprep.mubr.bf16.mxu0 0
  %1084 = vmatmul.mubr.bf16.gmra.mrb[0].mxu0 %v586
  %v1085 = vpop.f32.mrb[0].mxu0
  %v1086 = vadd.f32 %v966, %v1085
  %v1087 = vpop.f32.mrb[0].mxu0
  %v1088 = vpop.f32.mrb[0].mxu0
  %v1089 = vadd.f32 %v969, %v1088
  %v1090 = vpop.f32.mrb[0].mxu0
  %1091 = vmatprep.mubr.bf16.mxu0 0
  %1092 = vmatmul.mubr.bf16.gmra.mrb[0].mxu0 %v840
  %v1093 = vpop.f32.mrb[0].mxu0
  %v1094 = vadd.f32 %v974, %v1093
  %v1095 = vpop.f32.mrb[0].mxu0
  %v1096 = vpop.f32.mrb[0].mxu0
  %v1097 = vadd.f32 %v977, %v1096
  %v1098 = vpop.f32.mrb[0].mxu0
  %1099 = vmatprep.mubr.bf16.mxu0 0
  %1100 = vmatmul.mubr.bf16.gmra.mrb[0].mxu0 %v835
  %v1101 = vpop.f32.mrb[0].mxu0
  %v1102 = vadd.f32 %v982, %v1101
  %v1103 = vpop.f32.mrb[0].mxu0
  %v1104 = vpop.f32.mrb[0].mxu0
  %v1105 = vadd.f32 %v985, %v1104
  %v1106 = vpop.f32.mrb[0].mxu0
  %1107 = vmatprep.mubr.bf16.mxu0 0
  %1108 = vmatmul.mubr.bf16.gmra.mrb[0].mxu0 %v600
  %v1109 = vpop.f32.mrb[0].mxu0
  %v1110 = vadd.f32 %v990, %v1109
  %v1111 = vpop.f32.mrb[0].mxu0
  %v1112 = vpop.f32.mrb[0].mxu0
  %v1113 = vadd.f32 %v993, %v1112
  %v1114 = vpop.f32.mrb[0].mxu0
  %1115 = vmatprep.mubr.bf16.mxu0 0
  %1116 = vmatmul.mubr.bf16.gmra.mrb[0].mxu0 %v601
  %v1117 = vpop.f32.mrb[0].mxu0
  %v1118 = vadd.f32 %v998, %v1117
  %v1119 = vpop.f32.mrb[0].mxu0
  %v1120 = vpop.f32.mrb[0].mxu0
  %v1121 = vpop.f32.mrb[0].mxu0
  %1122 = vdwg.mxu0
  %v1123 = vrot.slane %v586, 4
  %v1124 = vrot.slane %v587, 4
  %v1125 = vsel %vm832, %v1123, %v1124
  %v1127 = vrot.slane %v600, 4
  %v1128 = vrot.slane %v601, 4
  %v1129 = vsel %vm832, %v1127, %v1128
  %v1134 = vsel %vm837, %v1124, %v593
  %s1136 = scalar_lea.vmem %s3, 128
  %v1137 = vld [vmem:[%s1136] sm:$0xf]
  %v1138 = vld [vmem:[%s1136 + $0x4] sm:$0xf]
  %v1139 = vld [vmem:[%s1136 + $0x8] sm:$0xf]
  %v1140 = vld [vmem:[%s1136 + $0xc] sm:$0xf]
  %v1141 = vld [vmem:[%s1136 + $0x10] sm:$0xf]
  %v1142 = vld [vmem:[%s1136 + $0x14] sm:$0xf]
  %v1143 = vld [vmem:[%s1136 + $0x18] sm:$0xf]
  %v1144 = vld [vmem:[%s1136 + $0x1c] sm:$0xf]
  %v1145 = vld [vmem:[%s1136 + $0x20] sm:$0xf]
  %v1146 = vld [vmem:[%s1136 + $0x24] sm:$0xf]
  %v1147 = vld [vmem:[%s1136 + $0x28] sm:$0xf]
  %v1148 = vld [vmem:[%s1136 + $0x2c] sm:$0xf]
  %v1149 = vld [vmem:[%s1136 + $0x30] sm:$0xf]
  %v1150 = vld [vmem:[%s1136 + $0x34] sm:$0xf]
  %v1151 = vld [vmem:[%s1136 + $0x38] sm:$0xf]
  %v1152 = vld [vmem:[%s1136 + $0x3c] sm:$0xf]
  %v1169 = vunpack.c.l.b16 %v1137
  %v1170 = vunpack.c.l.b16 %v1138
  %v1171 = vunpack.c.l.b16 %v1139
  %v1172 = vunpack.c.l.b16 %v1140
  %v1173 = vunpack.c.l.b16 %v1141
  %v1174 = vunpack.c.l.b16 %v1142
  %v1175 = vunpack.c.l.b16 %v1143
  %v1176 = vunpack.c.l.b16 %v1144
  %v1177 = vunpack.c.l.b16 %v1145
  %v1178 = vunpack.c.l.b16 %v1146
  %v1179 = vunpack.c.l.b16 %v1147
  %v1180 = vunpack.c.l.b16 %v1148
  %v1181 = vunpack.c.l.b16 %v1149
  %v1182 = vunpack.c.l.b16 %v1150
  %v1183 = vunpack.c.l.b16 %v1151
  %v1184 = vunpack.c.l.b16 %v1152
  %v1185 = vpack.c.b16 %v1170, %v1169
  %v1186 = vpack.c.b16 %v1172, %v1171
  %v1187 = vpack.c.b16 %v1174, %v1173
  %v1188 = vpack.c.b16 %v1176, %v1175
  %v1189 = vpack.c.b16 %v1178, %v1177
  %v1190 = vpack.c.b16 %v1180, %v1179
  %v1191 = vpack.c.b16 %v1182, %v1181
  %v1192 = vpack.c.b16 %v1184, %v1183
  %1201 = vmatprep.subr.bf16.mxu0 0
  %1202 = vmatpush1.bf16.msra.mxu0 %v1185
  %1203 = vmatprep.subr.bf16.mxu0 0
  %1204 = vmatpush1.bf16.msra.mxu0 %v1186
  %1205 = vmatprep.subr.bf16.mxu0 0
  %1206 = vmatpush1.bf16.msra.mxu0 %v1187
  %1207 = vmatprep.subr.bf16.mxu0 0
  %1208 = vmatpush1.bf16.msra.mxu0 %v1188
  %1209 = vmatprep.subr.bf16.mxu0 0
  %1210 = vmatpush1.bf16.msra.mxu0 %v1189
  %1211 = vmatprep.subr.bf16.mxu0 0
  %1212 = vmatpush1.bf16.msra.mxu0 %v1190
  %1213 = vmatprep.subr.bf16.mxu0 0
  %1214 = vmatpush1.bf16.msra.mxu0 %v1191
  %1215 = vmatprep.subr.bf16.mxu0 0
  %1216 = vmatpush1.bf16.msra.mxu0 %v1192
  %1217 = vmatprep.subr.bf16.mxu0 0
  %1218 = vmatpush1.bf16.msra.mxu0 0
  %1219 = vmatprep.subr.bf16.mxu0 0
  %1220 = vmatpush1.bf16.msra.mxu0 0
  %1221 = vmatprep.subr.bf16.mxu0 0
  %1222 = vmatpush1.bf16.msra.mxu0 0
  %1223 = vmatprep.subr.bf16.mxu0 0
  %1224 = vmatpush1.bf16.msra.mxu0 0
  %1225 = vmatprep.subr.bf16.mxu0 0
  %1226 = vmatpush1.bf16.msra.mxu0 0
  %1227 = vmatprep.subr.bf16.mxu0 0
  %1228 = vmatpush1.bf16.msra.mxu0 0
  %1229 = vmatprep.subr.bf16.mxu0 0
  %1230 = vmatpush1.bf16.msra.mxu0 0
  %1231 = vmatprep.subr.bf16.mxu0 0
  %1232 = vmatpush1.bf16.msra.mxu0 0
  %1233 = vmatprep.mubr.bf16.mxu0 0
  %1234 = vmatmul.mubr.bf16.gmra.mrb[0].mxu0 %v1125
  %v1235 = vpop.f32.mrb[0].mxu0
  %v1236 = vadd.f32 0.0, %v1235
  %v1237 = vpop.f32.mrb[0].mxu0
  %v1238 = vpop.f32.mrb[0].mxu0
  %v1239 = vadd.f32 0.0, %v1238
  %v1240 = vpop.f32.mrb[0].mxu0
  %1241 = vmatprep.mubr.bf16.mxu0 0
  %1242 = vmatmul.mubr.bf16.gmra.mrb[0].mxu0 %v1134
  %v1243 = vpop.f32.mrb[0].mxu0
  %v1244 = vadd.f32 0.0, %v1243
  %v1245 = vpop.f32.mrb[0].mxu0
  %v1246 = vpop.f32.mrb[0].mxu0
  %v1247 = vadd.f32 0.0, %v1246
  %v1248 = vpop.f32.mrb[0].mxu0
  %1249 = vmatprep.mubr.bf16.mxu0 0
  %1250 = vmatmul.mubr.bf16.gmra.mrb[0].mxu0 %v594
  %v1251 = vpop.f32.mrb[0].mxu0
  %v1252 = vadd.f32 0.0, %v1251
  %v1253 = vpop.f32.mrb[0].mxu0
  %v1254 = vpop.f32.mrb[0].mxu0
  %v1255 = vadd.f32 0.0, %v1254
  %v1256 = vpop.f32.mrb[0].mxu0
  %1257 = vmatprep.mubr.bf16.mxu0 0
  %1258 = vmatmul.mubr.bf16.gmra.mrb[0].mxu0 %v1129
  %v1259 = vpop.f32.mrb[0].mxu0
  %v1260 = vadd.f32 0.0, %v1259
  %v1261 = vpop.f32.mrb[0].mxu0
  %v1262 = vpop.f32.mrb[0].mxu0
  %v1263 = vadd.f32 0.0, %v1262
  %v1264 = vpop.f32.mrb[0].mxu0
  %1265 = vmatprep.mubr.bf16.mxu0 0
  %1266 = vmatmul.mubr.bf16.gmra.mrb[0].mxu0 %v1128
  %v1267 = vpop.f32.mrb[0].mxu0
  %v1268 = vadd.f32 0.0, %v1267
  %v1269 = vpop.f32.mrb[0].mxu0
  %v1270 = vpop.f32.mrb[0].mxu0
  %v1271 = vpop.f32.mrb[0].mxu0
  %1272 = vdwg.mxu0
  %v1273 = vadd.f32 %v1086, %v1236
  %v1274 = vadd.f32 %v1089, %v1239
  %v1275 = vadd.f32 %v1094, %v1244
  %v1276 = vadd.f32 %v1097, %v1247
  %v1277 = vadd.f32 %v1102, %v1252
  %v1278 = vadd.f32 %v1105, %v1255
  %v1279 = vadd.f32 %v1110, %v1260
  %v1280 = vadd.f32 %v1113, %v1263
  %v1281 = vadd.f32 %v1118, %v1268
  %v1282 = vrot.slane %v589, 4
  %v1283 = vrot.slane %v590, 4
  %v1284 = vsel %vm832, %v1282, %v1283
  %v1286 = vrot.slane %v603, 4
  %v1287 = vrot.slane %v604, 4
  %v1288 = vsel %vm832, %v1286, %v1287
  %v1293 = vsel %vm837, %v1283, %v596
  %s1295 = scalar_lea.vmem %s3, 192
  %v1296 = vld [vmem:[%s1295] sm:$0xf]
  %v1297 = vld [vmem:[%s1295 + $0x4] sm:$0xf]
  %v1298 = vld [vmem:[%s1295 + $0x8] sm:$0xf]
  %v1299 = vld [vmem:[%s1295 + $0xc] sm:$0xf]
  %v1300 = vld [vmem:[%s1295 + $0x10] sm:$0xf]
  %v1301 = vld [vmem:[%s1295 + $0x14] sm:$0xf]
  %v1302 = vld [vmem:[%s1295 + $0x18] sm:$0xf]
  %v1303 = vld [vmem:[%s1295 + $0x1c] sm:$0xf]
  %v1304 = vld [vmem:[%s1295 + $0x20] sm:$0xf]
  %v1305 = vld [vmem:[%s1295 + $0x24] sm:$0xf]
  %v1306 = vld [vmem:[%s1295 + $0x28] sm:$0xf]
  %v1307 = vld [vmem:[%s1295 + $0x2c] sm:$0xf]
  %v1308 = vld [vmem:[%s1295 + $0x30] sm:$0xf]
  %v1309 = vld [vmem:[%s1295 + $0x34] sm:$0xf]
  %v1310 = vld [vmem:[%s1295 + $0x38] sm:$0xf]
  %v1311 = vld [vmem:[%s1295 + $0x3c] sm:$0xf]
  %v1328 = vunpack.c.l.b16 %v1296
  %v1329 = vunpack.c.l.b16 %v1297
  %v1330 = vunpack.c.l.b16 %v1298
  %v1331 = vunpack.c.l.b16 %v1299
  %v1332 = vunpack.c.l.b16 %v1300
  %v1333 = vunpack.c.l.b16 %v1301
  %v1334 = vunpack.c.l.b16 %v1302
  %v1335 = vunpack.c.l.b16 %v1303
  %v1336 = vunpack.c.l.b16 %v1304
  %v1337 = vunpack.c.l.b16 %v1305
  %v1338 = vunpack.c.l.b16 %v1306
  %v1339 = vunpack.c.l.b16 %v1307
  %v1340 = vunpack.c.l.b16 %v1308
  %v1341 = vunpack.c.l.b16 %v1309
  %v1342 = vunpack.c.l.b16 %v1310
  %v1343 = vunpack.c.l.b16 %v1311
  %v1344 = vpack.c.b16 %v1329, %v1328
  %v1345 = vpack.c.b16 %v1331, %v1330
  %v1346 = vpack.c.b16 %v1333, %v1332
  %v1347 = vpack.c.b16 %v1335, %v1334
  %v1348 = vpack.c.b16 %v1337, %v1336
  %v1349 = vpack.c.b16 %v1339, %v1338
  %v1350 = vpack.c.b16 %v1341, %v1340
  %v1351 = vpack.c.b16 %v1343, %v1342
  %1360 = vmatprep.subr.bf16.mxu0 0
  %1361 = vmatpush1.bf16.msra.mxu0 %v1344
  %1362 = vmatprep.subr.bf16.mxu0 0
  %1363 = vmatpush1.bf16.msra.mxu0 %v1345
  %1364 = vmatprep.subr.bf16.mxu0 0
  %1365 = vmatpush1.bf16.msra.mxu0 %v1346
  %1366 = vmatprep.subr.bf16.mxu0 0
  %1367 = vmatpush1.bf16.msra.mxu0 %v1347
  %1368 = vmatprep.subr.bf16.mxu0 0
  %1369 = vmatpush1.bf16.msra.mxu0 %v1348
  %1370 = vmatprep.subr.bf16.mxu0 0
  %1371 = vmatpush1.bf16.msra.mxu0 %v1349
  %1372 = vmatprep.subr.bf16.mxu0 0
  %1373 = vmatpush1.bf16.msra.mxu0 %v1350
  %1374 = vmatprep.subr.bf16.mxu0 0
  %1375 = vmatpush1.bf16.msra.mxu0 %v1351
  %1376 = vmatprep.subr.bf16.mxu0 0
  %1377 = vmatpush1.bf16.msra.mxu0 0
  %1378 = vmatprep.subr.bf16.mxu0 0
  %1379 = vmatpush1.bf16.msra.mxu0 0
  %1380 = vmatprep.subr.bf16.mxu0 0
  %1381 = vmatpush1.bf16.msra.mxu0 0
  %1382 = vmatprep.subr.bf16.mxu0 0
  %1383 = vmatpush1.bf16.msra.mxu0 0
  %1384 = vmatprep.subr.bf16.mxu0 0
  %1385 = vmatpush1.bf16.msra.mxu0 0
  %1386 = vmatprep.subr.bf16.mxu0 0
  %1387 = vmatpush1.bf16.msra.mxu0 0
  %1388 = vmatprep.subr.bf16.mxu0 0
  %1389 = vmatpush1.bf16.msra.mxu0 0
  %1390 = vmatprep.subr.bf16.mxu0 0
  %1391 = vmatpush1.bf16.msra.mxu0 0
  %1392 = vmatprep.mubr.bf16.mxu0 0
  %1393 = vmatmul.mubr.bf16.gmra.mrb[0].mxu0 %v1284
  %v1394 = vpop.f32.mrb[0].mxu0
  %v1395 = vadd.f32 0.0, %v1394
  %v1396 = vpop.f32.mrb[0].mxu0
  %v1397 = vpop.f32.mrb[0].mxu0
  %v1398 = vadd.f32 0.0, %v1397
  %v1399 = vpop.f32.mrb[0].mxu0
  %1400 = vmatprep.mubr.bf16.mxu0 0
  %1401 = vmatmul.mubr.bf16.gmra.mrb[0].mxu0 %v1293
  %v1402 = vpop.f32.mrb[0].mxu0
  %v1403 = vadd.f32 0.0, %v1402
  %v1404 = vpop.f32.mrb[0].mxu0
  %v1405 = vpop.f32.mrb[0].mxu0
  %v1406 = vadd.f32 0.0, %v1405
  %v1407 = vpop.f32.mrb[0].mxu0
  %1408 = vmatprep.mubr.bf16.mxu0 0
  %1409 = vmatmul.mubr.bf16.gmra.mrb[0].mxu0 %v597
  %v1410 = vpop.f32.mrb[0].mxu0
  %v1411 = vadd.f32 0.0, %v1410
  %v1412 = vpop.f32.mrb[0].mxu0
  %v1413 = vpop.f32.mrb[0].mxu0
  %v1414 = vadd.f32 0.0, %v1413
  %v1415 = vpop.f32.mrb[0].mxu0
  %1416 = vmatprep.mubr.bf16.mxu0 0
  %1417 = vmatmul.mubr.bf16.gmra.mrb[0].mxu0 %v1288
  %v1418 = vpop.f32.mrb[0].mxu0
  %v1419 = vadd.f32 0.0, %v1418
  %v1420 = vpop.f32.mrb[0].mxu0
  %v1421 = vpop.f32.mrb[0].mxu0
  %v1422 = vadd.f32 0.0, %v1421
  %v1423 = vpop.f32.mrb[0].mxu0
  %1424 = vmatprep.mubr.bf16.mxu0 0
  %1425 = vmatmul.mubr.bf16.gmra.mrb[0].mxu0 %v1287
  %v1426 = vpop.f32.mrb[0].mxu0
  %v1427 = vadd.f32 0.0, %v1426
  %v1428 = vpop.f32.mrb[0].mxu0
  %v1429 = vpop.f32.mrb[0].mxu0
  %v1430 = vpop.f32.mrb[0].mxu0
  %1431 = vdwg.mxu0
  %v1432 = vadd.f32 %v1273, %v1395
  %v1433 = vadd.f32 %v1274, %v1398
  %v1434 = vadd.f32 %v1275, %v1403
  %v1435 = vadd.f32 %v1276, %v1406
  %v1436 = vadd.f32 %v1277, %v1411
  %v1437 = vadd.f32 %v1278, %v1414
  %v1438 = vadd.f32 %v1279, %v1419
  %v1439 = vadd.f32 %v1280, %v1422
  %v1440 = vadd.f32 %v1281, %v1427
  %v1441 = vrot.slane %v591, 4
  %v1442 = vrot.slane %v592, 4
  %v1443 = vsel %vm832, %v1441, %v1442
  %v1445 = vrot.slane %v605, 4
  %v1446 = vrot.slane %v606, 4
  %v1447 = vsel %vm832, %v1445, %v1446
  %v1452 = vsel %vm837, %v1442, %v598
  %s1454 = scalar_lea.vmem %s3, 256
  %v1455 = vld [vmem:[%s1454] sm:$0xf]
  %v1456 = vld [vmem:[%s1454 + $0x4] sm:$0xf]
  %v1457 = vld [vmem:[%s1454 + $0x8] sm:$0xf]
  %v1458 = vld [vmem:[%s1454 + $0xc] sm:$0xf]
  %v1459 = vld [vmem:[%s1454 + $0x10] sm:$0xf]
  %v1460 = vld [vmem:[%s1454 + $0x14] sm:$0xf]
  %v1461 = vld [vmem:[%s1454 + $0x18] sm:$0xf]
  %v1462 = vld [vmem:[%s1454 + $0x1c] sm:$0xf]
  %v1463 = vld [vmem:[%s1454 + $0x20] sm:$0xf]
  %v1464 = vld [vmem:[%s1454 + $0x24] sm:$0xf]
  %v1465 = vld [vmem:[%s1454 + $0x28] sm:$0xf]
  %v1466 = vld [vmem:[%s1454 + $0x2c] sm:$0xf]
  %v1467 = vld [vmem:[%s1454 + $0x30] sm:$0xf]
  %v1468 = vld [vmem:[%s1454 + $0x34] sm:$0xf]
  %v1469 = vld [vmem:[%s1454 + $0x38] sm:$0xf]
  %v1470 = vld [vmem:[%s1454 + $0x3c] sm:$0xf]
  %v1487 = vunpack.c.l.b16 %v1455
  %v1488 = vunpack.c.l.b16 %v1456
  %v1489 = vunpack.c.l.b16 %v1457
  %v1490 = vunpack.c.l.b16 %v1458
  %v1491 = vunpack.c.l.b16 %v1459
  %v1492 = vunpack.c.l.b16 %v1460
  %v1493 = vunpack.c.l.b16 %v1461
  %v1494 = vunpack.c.l.b16 %v1462
  %v1495 = vunpack.c.l.b16 %v1463
  %v1496 = vunpack.c.l.b16 %v1464
  %v1497 = vunpack.c.l.b16 %v1465
  %v1498 = vunpack.c.l.b16 %v1466
  %v1499 = vunpack.c.l.b16 %v1467
  %v1500 = vunpack.c.l.b16 %v1468
  %v1501 = vunpack.c.l.b16 %v1469
  %v1502 = vunpack.c.l.b16 %v1470
  %v1503 = vpack.c.b16 %v1488, %v1487
  %v1504 = vpack.c.b16 %v1490, %v1489
  %v1505 = vpack.c.b16 %v1492, %v1491
  %v1506 = vpack.c.b16 %v1494, %v1493
  %v1507 = vpack.c.b16 %v1496, %v1495
  %v1508 = vpack.c.b16 %v1498, %v1497
  %v1509 = vpack.c.b16 %v1500, %v1499
  %v1510 = vpack.c.b16 %v1502, %v1501
  %1519 = vmatprep.subr.bf16.mxu0 0
  %1520 = vmatpush1.bf16.msra.mxu0 %v1503
  %1521 = vmatprep.subr.bf16.mxu0 0
  %1522 = vmatpush1.bf16.msra.mxu0 %v1504
  %1523 = vmatprep.subr.bf16.mxu0 0
  %1524 = vmatpush1.bf16.msra.mxu0 %v1505
  %1525 = vmatprep.subr.bf16.mxu0 0
  %1526 = vmatpush1.bf16.msra.mxu0 %v1506
  %1527 = vmatprep.subr.bf16.mxu0 0
  %1528 = vmatpush1.bf16.msra.mxu0 %v1507
  %1529 = vmatprep.subr.bf16.mxu0 0
  %1530 = vmatpush1.bf16.msra.mxu0 %v1508
  %1531 = vmatprep.subr.bf16.mxu0 0
  %1532 = vmatpush1.bf16.msra.mxu0 %v1509
  %1533 = vmatprep.subr.bf16.mxu0 0
  %1534 = vmatpush1.bf16.msra.mxu0 %v1510
  %1535 = vmatprep.subr.bf16.mxu0 0
  %1536 = vmatpush1.bf16.msra.mxu0 0
  %1537 = vmatprep.subr.bf16.mxu0 0
  %1538 = vmatpush1.bf16.msra.mxu0 0
  %1539 = vmatprep.subr.bf16.mxu0 0
  %1540 = vmatpush1.bf16.msra.mxu0 0
  %1541 = vmatprep.subr.bf16.mxu0 0
  %1542 = vmatpush1.bf16.msra.mxu0 0
  %1543 = vmatprep.subr.bf16.mxu0 0
  %1544 = vmatpush1.bf16.msra.mxu0 0
  %1545 = vmatprep.subr.bf16.mxu0 0
  %1546 = vmatpush1.bf16.msra.mxu0 0
  %1547 = vmatprep.subr.bf16.mxu0 0
  %1548 = vmatpush1.bf16.msra.mxu0 0
  %1549 = vmatprep.subr.bf16.mxu0 0
  %1550 = vmatpush1.bf16.msra.mxu0 0
  %1551 = vmatprep.mubr.bf16.mxu0 0
  %1552 = vmatmul.mubr.bf16.gmra.mrb[0].mxu0 %v1443
  %v1553 = vpop.f32.mrb[0].mxu0
  %v1554 = vadd.f32 0.0, %v1553
  %v1555 = vpop.f32.mrb[0].mxu0
  %v1556 = vpop.f32.mrb[0].mxu0
  %v1557 = vadd.f32 0.0, %v1556
  %v1558 = vpop.f32.mrb[0].mxu0
  %1559 = vmatprep.mubr.bf16.mxu0 0
  %1560 = vmatmul.mubr.bf16.gmra.mrb[0].mxu0 %v1452
  %v1561 = vpop.f32.mrb[0].mxu0
  %v1562 = vadd.f32 0.0, %v1561
  %v1563 = vpop.f32.mrb[0].mxu0
  %v1564 = vpop.f32.mrb[0].mxu0
  %v1565 = vadd.f32 0.0, %v1564
  %v1566 = vpop.f32.mrb[0].mxu0
  %1567 = vmatprep.mubr.bf16.mxu0 0
  %1568 = vmatmul.mubr.bf16.gmra.mrb[0].mxu0 %v599
  %v1569 = vpop.f32.mrb[0].mxu0
  %v1570 = vadd.f32 0.0, %v1569
  %v1571 = vpop.f32.mrb[0].mxu0
  %v1572 = vpop.f32.mrb[0].mxu0
  %v1573 = vadd.f32 0.0, %v1572
  %v1574 = vpop.f32.mrb[0].mxu0
  %1575 = vmatprep.mubr.bf16.mxu0 0
  %1576 = vmatmul.mubr.bf16.gmra.mrb[0].mxu0 %v1447
  %v1577 = vpop.f32.mrb[0].mxu0
  %v1578 = vadd.f32 0.0, %v1577
  %v1579 = vpop.f32.mrb[0].mxu0
  %v1580 = vpop.f32.mrb[0].mxu0
  %v1581 = vadd.f32 0.0, %v1580
  %v1582 = vpop.f32.mrb[0].mxu0
  %1583 = vmatprep.mubr.bf16.mxu0 0
  %1584 = vmatmul.mubr.bf16.gmra.mrb[0].mxu0 %v1446
  %v1585 = vpop.f32.mrb[0].mxu0
  %v1586 = vadd.f32 0.0, %v1585
  %v1587 = vpop.f32.mrb[0].mxu0
  %v1588 = vpop.f32.mrb[0].mxu0
  %v1589 = vpop.f32.mrb[0].mxu0
  %1590 = vdwg.mxu0
  %v1591 = vadd.f32 %v1432, %v1554
  %v1592 = vadd.f32 %v1433, %v1557
  %v1593 = vadd.f32 %v1434, %v1562
  %v1594 = vadd.f32 %v1435, %v1565
  %v1595 = vadd.f32 %v1436, %v1570
  %v1596 = vadd.f32 %v1437, %v1573
  %v1597 = vadd.f32 %v1438, %v1578
  %v1598 = vadd.f32 %v1439, %v1581
  %v1599 = vadd.f32 %v1440, %v1586
  %v1600 = vrot.slane %v597, 4
  %v1601 = vrot.slane %v598, 4
  %v1602 = vsel %vm832, %v1600, %v1601
  %v1606 = vsel %vm837, %v591, %v1600
  %s1608 = scalar_lea.vmem %s3, 320
  %v1609 = vld [vmem:[%s1608] sm:$0xf]
  %v1610 = vld [vmem:[%s1608 + $0x4] sm:$0xf]
  %v1611 = vld [vmem:[%s1608 + $0x8] sm:$0xf]
  %v1612 = vld [vmem:[%s1608 + $0xc] sm:$0xf]
  %v1613 = vld [vmem:[%s1608 + $0x10] sm:$0xf]
  %v1614 = vld [vmem:[%s1608 + $0x14] sm:$0xf]
  %v1615 = vld [vmem:[%s1608 + $0x18] sm:$0xf]
  %v1616 = vld [vmem:[%s1608 + $0x1c] sm:$0xf]
  %v1617 = vld [vmem:[%s1608 + $0x20] sm:$0xf]
  %v1618 = vld [vmem:[%s1608 + $0x24] sm:$0xf]
  %v1619 = vld [vmem:[%s1608 + $0x28] sm:$0xf]
  %v1620 = vld [vmem:[%s1608 + $0x2c] sm:$0xf]
  %v1621 = vld [vmem:[%s1608 + $0x30] sm:$0xf]
  %v1622 = vld [vmem:[%s1608 + $0x34] sm:$0xf]
  %v1623 = vld [vmem:[%s1608 + $0x38] sm:$0xf]
  %v1624 = vld [vmem:[%s1608 + $0x3c] sm:$0xf]
  %v1641 = vunpack.c.l.b16 %v1609
  %v1642 = vunpack.c.l.b16 %v1610
  %v1643 = vunpack.c.l.b16 %v1611
  %v1644 = vunpack.c.l.b16 %v1612
  %v1645 = vunpack.c.l.b16 %v1613
  %v1646 = vunpack.c.l.b16 %v1614
  %v1647 = vunpack.c.l.b16 %v1615
  %v1648 = vunpack.c.l.b16 %v1616
  %v1649 = vunpack.c.l.b16 %v1617
  %v1650 = vunpack.c.l.b16 %v1618
  %v1651 = vunpack.c.l.b16 %v1619
  %v1652 = vunpack.c.l.b16 %v1620
  %v1653 = vunpack.c.l.b16 %v1621
  %v1654 = vunpack.c.l.b16 %v1622
  %v1655 = vunpack.c.l.b16 %v1623
  %v1656 = vunpack.c.l.b16 %v1624
  %v1657 = vpack.c.b16 %v1642, %v1641
  %v1658 = vpack.c.b16 %v1644, %v1643
  %v1659 = vpack.c.b16 %v1646, %v1645
  %v1660 = vpack.c.b16 %v1648, %v1647
  %v1661 = vpack.c.b16 %v1650, %v1649
  %v1662 = vpack.c.b16 %v1652, %v1651
  %v1663 = vpack.c.b16 %v1654, %v1653
  %v1664 = vpack.c.b16 %v1656, %v1655
  %1673 = vmatprep.subr.bf16.mxu0 0
  %1674 = vmatpush1.bf16.msra.mxu0 %v1657
  %1675 = vmatprep.subr.bf16.mxu0 0
  %1676 = vmatpush1.bf16.msra.mxu0 %v1658
  %1677 = vmatprep.subr.bf16.mxu0 0
  %1678 = vmatpush1.bf16.msra.mxu0 %v1659
  %1679 = vmatprep.subr.bf16.mxu0 0
  %1680 = vmatpush1.bf16.msra.mxu0 %v1660
  %1681 = vmatprep.subr.bf16.mxu0 0
  %1682 = vmatpush1.bf16.msra.mxu0 %v1661
  %1683 = vmatprep.subr.bf16.mxu0 0
  %1684 = vmatpush1.bf16.msra.mxu0 %v1662
  %1685 = vmatprep.subr.bf16.mxu0 0
  %1686 = vmatpush1.bf16.msra.mxu0 %v1663
  %1687 = vmatprep.subr.bf16.mxu0 0
  %1688 = vmatpush1.bf16.msra.mxu0 %v1664
  %1689 = vmatprep.subr.bf16.mxu0 0
  %1690 = vmatpush1.bf16.msra.mxu0 0
  %1691 = vmatprep.subr.bf16.mxu0 0
  %1692 = vmatpush1.bf16.msra.mxu0 0
  %1693 = vmatprep.subr.bf16.mxu0 0
  %1694 = vmatpush1.bf16.msra.mxu0 0
  %1695 = vmatprep.subr.bf16.mxu0 0
  %1696 = vmatpush1.bf16.msra.mxu0 0
  %1697 = vmatprep.subr.bf16.mxu0 0
  %1698 = vmatpush1.bf16.msra.mxu0 0
  %1699 = vmatprep.subr.bf16.mxu0 0
  %1700 = vmatpush1.bf16.msra.mxu0 0
  %1701 = vmatprep.subr.bf16.mxu0 0
  %1702 = vmatpush1.bf16.msra.mxu0 0
  %1703 = vmatprep.subr.bf16.mxu0 0
  %1704 = vmatpush1.bf16.msra.mxu0 0
  %1705 = vmatprep.mubr.bf16.mxu0 0
  %1706 = vmatmul.mubr.bf16.gmra.mrb[0].mxu0 %v590
  %v1707 = vpop.f32.mrb[0].mxu0
  %v1708 = vadd.f32 0.0, %v1707
  %v1709 = vpop.f32.mrb[0].mxu0
  %v1710 = vpop.f32.mrb[0].mxu0
  %v1711 = vadd.f32 0.0, %v1710
  %v1712 = vpop.f32.mrb[0].mxu0
  %1713 = vmatprep.mubr.bf16.mxu0 0
  %1714 = vmatmul.mubr.bf16.gmra.mrb[0].mxu0 %v1606
  %v1715 = vpop.f32.mrb[0].mxu0
  %v1716 = vadd.f32 0.0, %v1715
  %v1717 = vpop.f32.mrb[0].mxu0
  %v1718 = vpop.f32.mrb[0].mxu0
  %v1719 = vadd.f32 0.0, %v1718
  %v1720 = vpop.f32.mrb[0].mxu0
  %1721 = vmatprep.mubr.bf16.mxu0 0
  %1722 = vmatmul.mubr.bf16.gmra.mrb[0].mxu0 %v1602
  %v1723 = vpop.f32.mrb[0].mxu0
  %v1724 = vadd.f32 0.0, %v1723
  %v1725 = vpop.f32.mrb[0].mxu0
  %v1726 = vpop.f32.mrb[0].mxu0
  %v1727 = vadd.f32 0.0, %v1726
  %v1728 = vpop.f32.mrb[0].mxu0
  %1729 = vmatprep.mubr.bf16.mxu0 0
  %1730 = vmatmul.mubr.bf16.gmra.mrb[0].mxu0 %v604
  %v1731 = vpop.f32.mrb[0].mxu0
  %v1732 = vadd.f32 0.0, %v1731
  %v1733 = vpop.f32.mrb[0].mxu0
  %v1734 = vpop.f32.mrb[0].mxu0
  %v1735 = vadd.f32 0.0, %v1734
  %v1736 = vpop.f32.mrb[0].mxu0
  %1737 = vmatprep.mubr.bf16.mxu0 0
  %1738 = vmatmul.mubr.bf16.gmra.mrb[0].mxu0 %v605
  %v1739 = vpop.f32.mrb[0].mxu0
  %v1740 = vadd.f32 0.0, %v1739
  %v1741 = vpop.f32.mrb[0].mxu0
  %v1742 = vpop.f32.mrb[0].mxu0
  %v1743 = vpop.f32.mrb[0].mxu0
  %1744 = vdwg.mxu0
  %v1745 = vadd.f32 %v1591, %v1708
  %v1746 = vadd.f32 %v1592, %v1711
  %v1747 = vadd.f32 %v1593, %v1716
  %v1748 = vadd.f32 %v1594, %v1719
  %v1749 = vadd.f32 %v1595, %v1724
  %v1750 = vadd.f32 %v1596, %v1727
  %v1751 = vadd.f32 %v1597, %v1732
  %v1752 = vadd.f32 %v1598, %v1735
  %v1753 = vadd.f32 %v1599, %v1740
  %v1756 = vsel %vm837, %v594, %v1127
  %s1758 = scalar_lea.vmem %s3, 384
  %v1759 = vld [vmem:[%s1758] sm:$0xf]
  %v1760 = vld [vmem:[%s1758 + $0x4] sm:$0xf]
  %v1761 = vld [vmem:[%s1758 + $0x8] sm:$0xf]
  %v1762 = vld [vmem:[%s1758 + $0xc] sm:$0xf]
  %v1763 = vld [vmem:[%s1758 + $0x10] sm:$0xf]
  %v1764 = vld [vmem:[%s1758 + $0x14] sm:$0xf]
  %v1765 = vld [vmem:[%s1758 + $0x18] sm:$0xf]
  %v1766 = vld [vmem:[%s1758 + $0x1c] sm:$0xf]
  %v1767 = vld [vmem:[%s1758 + $0x20] sm:$0xf]
  %v1768 = vld [vmem:[%s1758 + $0x24] sm:$0xf]
  %v1769 = vld [vmem:[%s1758 + $0x28] sm:$0xf]
  %v1770 = vld [vmem:[%s1758 + $0x2c] sm:$0xf]
  %v1771 = vld [vmem:[%s1758 + $0x30] sm:$0xf]
  %v1772 = vld [vmem:[%s1758 + $0x34] sm:$0xf]
  %v1773 = vld [vmem:[%s1758 + $0x38] sm:$0xf]
  %v1774 = vld [vmem:[%s1758 + $0x3c] sm:$0xf]
  %v1791 = vunpack.c.l.b16 %v1759
  %v1792 = vunpack.c.l.b16 %v1760
  %v1793 = vunpack.c.l.b16 %v1761
  %v1794 = vunpack.c.l.b16 %v1762
  %v1795 = vunpack.c.l.b16 %v1763
  %v1796 = vunpack.c.l.b16 %v1764
  %v1797 = vunpack.c.l.b16 %v1765
  %v1798 = vunpack.c.l.b16 %v1766
  %v1799 = vunpack.c.l.b16 %v1767
  %v1800 = vunpack.c.l.b16 %v1768
  %v1801 = vunpack.c.l.b16 %v1769
  %v1802 = vunpack.c.l.b16 %v1770
  %v1803 = vunpack.c.l.b16 %v1771
  %v1804 = vunpack.c.l.b16 %v1772
  %v1805 = vunpack.c.l.b16 %v1773
  %v1806 = vunpack.c.l.b16 %v1774
  %v1807 = vpack.c.b16 %v1792, %v1791
  %v1808 = vpack.c.b16 %v1794, %v1793
  %v1809 = vpack.c.b16 %v1796, %v1795
  %v1810 = vpack.c.b16 %v1798, %v1797
  %v1811 = vpack.c.b16 %v1800, %v1799
  %v1812 = vpack.c.b16 %v1802, %v1801
  %v1813 = vpack.c.b16 %v1804, %v1803
  %v1814 = vpack.c.b16 %v1806, %v1805
  %1823 = vmatprep.subr.bf16.mxu0 0
  %1824 = vmatpush1.bf16.msra.mxu0 %v1807
  %1825 = vmatprep.subr.bf16.mxu0 0
  %1826 = vmatpush1.bf16.msra.mxu0 %v1808
  %1827 = vmatprep.subr.bf16.mxu0 0
  %1828 = vmatpush1.bf16.msra.mxu0 %v1809
  %1829 = vmatprep.subr.bf16.mxu0 0
  %1830 = vmatpush1.bf16.msra.mxu0 %v1810
  %1831 = vmatprep.subr.bf16.mxu0 0
  %1832 = vmatpush1.bf16.msra.mxu0 %v1811
  %1833 = vmatprep.subr.bf16.mxu0 0
  %1834 = vmatpush1.bf16.msra.mxu0 %v1812
  %1835 = vmatprep.subr.bf16.mxu0 0
  %1836 = vmatpush1.bf16.msra.mxu0 %v1813
  %1837 = vmatprep.subr.bf16.mxu0 0
  %1838 = vmatpush1.bf16.msra.mxu0 %v1814
  %1839 = vmatprep.subr.bf16.mxu0 0
  %1840 = vmatpush1.bf16.msra.mxu0 0
  %1841 = vmatprep.subr.bf16.mxu0 0
  %1842 = vmatpush1.bf16.msra.mxu0 0
  %1843 = vmatprep.subr.bf16.mxu0 0
  %1844 = vmatpush1.bf16.msra.mxu0 0
  %1845 = vmatprep.subr.bf16.mxu0 0
  %1846 = vmatpush1.bf16.msra.mxu0 0
  %1847 = vmatprep.subr.bf16.mxu0 0
  %1848 = vmatpush1.bf16.msra.mxu0 0
  %1849 = vmatprep.subr.bf16.mxu0 0
  %1850 = vmatpush1.bf16.msra.mxu0 0
  %1851 = vmatprep.subr.bf16.mxu0 0
  %1852 = vmatpush1.bf16.msra.mxu0 0
  %1853 = vmatprep.subr.bf16.mxu0 0
  %1854 = vmatpush1.bf16.msra.mxu0 0
  %1855 = vmatprep.mubr.bf16.mxu0 0
  %1856 = vmatmul.mubr.bf16.gmra.mrb[0].mxu0 %v593
  %v1857 = vpop.f32.mrb[0].mxu0
  %v1858 = vadd.f32 0.0, %v1857
  %v1859 = vpop.f32.mrb[0].mxu0
  %v1860 = vpop.f32.mrb[0].mxu0
  %v1861 = vadd.f32 0.0, %v1860
  %v1862 = vpop.f32.mrb[0].mxu0
  %1863 = vmatprep.mubr.bf16.mxu0 0
  %1864 = vmatmul.mubr.bf16.gmra.mrb[0].mxu0 %v1756
  %v1865 = vpop.f32.mrb[0].mxu0
  %v1866 = vadd.f32 0.0, %v1865
  %v1867 = vpop.f32.mrb[0].mxu0
  %v1868 = vpop.f32.mrb[0].mxu0
  %v1869 = vadd.f32 0.0, %v1868
  %v1870 = vpop.f32.mrb[0].mxu0
  %1871 = vmatprep.mubr.bf16.mxu0 0
  %1872 = vmatmul.mubr.bf16.gmra.mrb[0].mxu0 %v1129
  %v1873 = vpop.f32.mrb[0].mxu0
  %v1874 = vadd.f32 0.0, %v1873
  %v1875 = vpop.f32.mrb[0].mxu0
  %v1876 = vpop.f32.mrb[0].mxu0
  %v1877 = vadd.f32 0.0, %v1876
  %v1878 = vpop.f32.mrb[0].mxu0
  %1879 = vmatprep.mubr.bf16.mxu0 0
  %1880 = vmatmul.mubr.bf16.gmra.mrb[0].mxu0 %v607
  %v1881 = vpop.f32.mrb[0].mxu0
  %v1882 = vadd.f32 0.0, %v1881
  %v1883 = vpop.f32.mrb[0].mxu0
  %v1884 = vpop.f32.mrb[0].mxu0
  %v1885 = vadd.f32 0.0, %v1884
  %v1886 = vpop.f32.mrb[0].mxu0
  %1887 = vmatprep.mubr.bf16.mxu0 0
  %1888 = vmatmul.mubr.bf16.gmra.mrb[0].mxu0 %v608
  %v1889 = vpop.f32.mrb[0].mxu0
  %v1890 = vadd.f32 0.0, %v1889
  %v1891 = vpop.f32.mrb[0].mxu0
  %v1892 = vpop.f32.mrb[0].mxu0
  %v1893 = vpop.f32.mrb[0].mxu0
  %1894 = vdwg.mxu0
  %v1895 = vadd.f32 %v1745, %v1858
  %v1896 = vadd.f32 %v1746, %v1861
  %v1897 = vadd.f32 %v1747, %v1866
  %v1898 = vadd.f32 %v1748, %v1869
  %v1899 = vadd.f32 %v1749, %v1874
  %v1900 = vadd.f32 %v1750, %v1877
  %v1901 = vadd.f32 %v1751, %v1882
  %v1902 = vadd.f32 %v1752, %v1885
  %v1903 = vadd.f32 %v1753, %v1890
  %v1904 = vrot.slane %v602, 4
  %v1905 = vsel %vm832, %v1904, %v1286
  %v1908 = vsel %vm837, %v596, %v1904
  %s1910 = scalar_lea.vmem %s3, 448
  %v1911 = vld [vmem:[%s1910] sm:$0xf]
  %v1912 = vld [vmem:[%s1910 + $0x4] sm:$0xf]
  %v1913 = vld [vmem:[%s1910 + $0x8] sm:$0xf]
  %v1914 = vld [vmem:[%s1910 + $0xc] sm:$0xf]
  %v1915 = vld [vmem:[%s1910 + $0x10] sm:$0xf]
  %v1916 = vld [vmem:[%s1910 + $0x14] sm:$0xf]
  %v1917 = vld [vmem:[%s1910 + $0x18] sm:$0xf]
  %v1918 = vld [vmem:[%s1910 + $0x1c] sm:$0xf]
  %v1919 = vld [vmem:[%s1910 + $0x20] sm:$0xf]
  %v1920 = vld [vmem:[%s1910 + $0x24] sm:$0xf]
  %v1921 = vld [vmem:[%s1910 + $0x28] sm:$0xf]
  %v1922 = vld [vmem:[%s1910 + $0x2c] sm:$0xf]
  %v1923 = vld [vmem:[%s1910 + $0x30] sm:$0xf]
  %v1924 = vld [vmem:[%s1910 + $0x34] sm:$0xf]
  %v1925 = vld [vmem:[%s1910 + $0x38] sm:$0xf]
  %v1926 = vld [vmem:[%s1910 + $0x3c] sm:$0xf]
  %v1943 = vunpack.c.l.b16 %v1911
  %v1944 = vunpack.c.l.b16 %v1912
  %v1945 = vunpack.c.l.b16 %v1913
  %v1946 = vunpack.c.l.b16 %v1914
  %v1947 = vunpack.c.l.b16 %v1915
  %v1948 = vunpack.c.l.b16 %v1916
  %v1949 = vunpack.c.l.b16 %v1917
  %v1950 = vunpack.c.l.b16 %v1918
  %v1951 = vunpack.c.l.b16 %v1919
  %v1952 = vunpack.c.l.b16 %v1920
  %v1953 = vunpack.c.l.b16 %v1921
  %v1954 = vunpack.c.l.b16 %v1922
  %v1955 = vunpack.c.l.b16 %v1923
  %v1956 = vunpack.c.l.b16 %v1924
  %v1957 = vunpack.c.l.b16 %v1925
  %v1958 = vunpack.c.l.b16 %v1926
  %v1959 = vpack.c.b16 %v1944, %v1943
  %v1960 = vpack.c.b16 %v1946, %v1945
  %v1961 = vpack.c.b16 %v1948, %v1947
  %v1962 = vpack.c.b16 %v1950, %v1949
  %v1963 = vpack.c.b16 %v1952, %v1951
  %v1964 = vpack.c.b16 %v1954, %v1953
  %v1965 = vpack.c.b16 %v1956, %v1955
  %v1966 = vpack.c.b16 %v1958, %v1957
  %1975 = vmatprep.subr.bf16.mxu0 0
  %1976 = vmatpush1.bf16.msra.mxu0 %v1959
  %1977 = vmatprep.subr.bf16.mxu0 0
  %1978 = vmatpush1.bf16.msra.mxu0 %v1960
  %1979 = vmatprep.subr.bf16.mxu0 0
  %1980 = vmatpush1.bf16.msra.mxu0 %v1961
  %1981 = vmatprep.subr.bf16.mxu0 0
  %1982 = vmatpush1.bf16.msra.mxu0 %v1962
  %1983 = vmatprep.subr.bf16.mxu0 0
  %1984 = vmatpush1.bf16.msra.mxu0 %v1963
  %1985 = vmatprep.subr.bf16.mxu0 0
  %1986 = vmatpush1.bf16.msra.mxu0 %v1964
  %1987 = vmatprep.subr.bf16.mxu0 0
  %1988 = vmatpush1.bf16.msra.mxu0 %v1965
  %1989 = vmatprep.subr.bf16.mxu0 0
  %1990 = vmatpush1.bf16.msra.mxu0 %v1966
  %1991 = vmatprep.subr.bf16.mxu0 0
  %1992 = vmatpush1.bf16.msra.mxu0 0
  %1993 = vmatprep.subr.bf16.mxu0 0
  %1994 = vmatpush1.bf16.msra.mxu0 0
  %1995 = vmatprep.subr.bf16.mxu0 0
  %1996 = vmatpush1.bf16.msra.mxu0 0
  %1997 = vmatprep.subr.bf16.mxu0 0
  %1998 = vmatpush1.bf16.msra.mxu0 0
  %1999 = vmatprep.subr.bf16.mxu0 0
  %2000 = vmatpush1.bf16.msra.mxu0 0
  %2001 = vmatprep.subr.bf16.mxu0 0
  %2002 = vmatpush1.bf16.msra.mxu0 0
  %2003 = vmatprep.subr.bf16.mxu0 0
  %2004 = vmatpush1.bf16.msra.mxu0 0
  %2005 = vmatprep.subr.bf16.mxu0 0
  %2006 = vmatpush1.bf16.msra.mxu0 0
  %2007 = vmatprep.mubr.bf16.mxu0 0
  %2008 = vmatmul.mubr.bf16.gmra.mrb[0].mxu0 %v595
  %v2009 = vpop.f32.mrb[0].mxu0
  %v2010 = vadd.f32 0.0, %v2009
  %v2011 = vpop.f32.mrb[0].mxu0
  %v2012 = vpop.f32.mrb[0].mxu0
  %v2013 = vadd.f32 0.0, %v2012
  %v2014 = vpop.f32.mrb[0].mxu0
  %2015 = vmatprep.mubr.bf16.mxu0 0
  %2016 = vmatmul.mubr.bf16.gmra.mrb[0].mxu0 %v1908
  %v2017 = vpop.f32.mrb[0].mxu0
  %v2018 = vadd.f32 0.0, %v2017
  %v2019 = vpop.f32.mrb[0].mxu0
  %v2020 = vpop.f32.mrb[0].mxu0
  %v2021 = vadd.f32 0.0, %v2020
  %v2022 = vpop.f32.mrb[0].mxu0
  %2023 = vmatprep.mubr.bf16.mxu0 0
  %2024 = vmatmul.mubr.bf16.gmra.mrb[0].mxu0 %v1905
  %v2025 = vpop.f32.mrb[0].mxu0
  %v2026 = vadd.f32 0.0, %v2025
  %v2027 = vpop.f32.mrb[0].mxu0
  %v2028 = vpop.f32.mrb[0].mxu0
  %v2029 = vadd.f32 0.0, %v2028
  %v2030 = vpop.f32.mrb[0].mxu0
  %2031 = vmatprep.mubr.bf16.mxu0 0
  %2032 = vmatmul.mubr.bf16.gmra.mrb[0].mxu0 %v609
  %v2033 = vpop.f32.mrb[0].mxu0
  %v2034 = vadd.f32 0.0, %v2033
  %v2035 = vpop.f32.mrb[0].mxu0
  %v2036 = vpop.f32.mrb[0].mxu0
  %v2037 = vadd.f32 0.0, %v2036
  %v2038 = vpop.f32.mrb[0].mxu0
  %2039 = vmatprep.mubr.bf16.mxu0 0
  %2040 = vmatmul.mubr.bf16.gmra.mrb[0].mxu0 %v610
  %v2041 = vpop.f32.mrb[0].mxu0
  %v2042 = vadd.f32 0.0, %v2041
  %v2043 = vpop.f32.mrb[0].mxu0
  %v2044 = vpop.f32.mrb[0].mxu0
  %v2045 = vpop.f32.mrb[0].mxu0
  %2046 = vdwg.mxu0
  %v2047 = vadd.f32 %v1895, %v2010
  %v2048 = vadd.f32 %v1896, %v2013
  %v2049 = vadd.f32 %v1897, %v2018
  %v2050 = vadd.f32 %v1898, %v2021
  %v2051 = vadd.f32 %v1899, %v2026
  %v2052 = vadd.f32 %v1900, %v2029
  %v2053 = vadd.f32 %v1901, %v2034
  %v2054 = vadd.f32 %v1902, %v2037
  %v2055 = vadd.f32 %v1903, %v2042
  %v2056 = vrot.slane %v607, 4
  %v2057 = vrot.slane %v608, 4
  %v2058 = vsel %vm832, %v2056, %v2057
  %v2063 = vsel %vm837, %v834, %v600
  %s2065 = scalar_lea.vmem %s3, 512
  %v2066 = vld [vmem:[%s2065] sm:$0xf]
  %v2067 = vld [vmem:[%s2065 + $0x4] sm:$0xf]
  %v2068 = vld [vmem:[%s2065 + $0x8] sm:$0xf]
  %v2069 = vld [vmem:[%s2065 + $0xc] sm:$0xf]
  %v2070 = vld [vmem:[%s2065 + $0x10] sm:$0xf]
  %v2071 = vld [vmem:[%s2065 + $0x14] sm:$0xf]
  %v2072 = vld [vmem:[%s2065 + $0x18] sm:$0xf]
  %v2073 = vld [vmem:[%s2065 + $0x1c] sm:$0xf]
  %v2074 = vld [vmem:[%s2065 + $0x20] sm:$0xf]
  %v2075 = vld [vmem:[%s2065 + $0x24] sm:$0xf]
  %v2076 = vld [vmem:[%s2065 + $0x28] sm:$0xf]
  %v2077 = vld [vmem:[%s2065 + $0x2c] sm:$0xf]
  %v2078 = vld [vmem:[%s2065 + $0x30] sm:$0xf]
  %v2079 = vld [vmem:[%s2065 + $0x34] sm:$0xf]
  %v2080 = vld [vmem:[%s2065 + $0x38] sm:$0xf]
  %v2081 = vld [vmem:[%s2065 + $0x3c] sm:$0xf]
  %v2098 = vunpack.c.l.b16 %v2066
  %v2099 = vunpack.c.l.b16 %v2067
  %v2100 = vunpack.c.l.b16 %v2068
  %v2101 = vunpack.c.l.b16 %v2069
  %v2102 = vunpack.c.l.b16 %v2070
  %v2103 = vunpack.c.l.b16 %v2071
  %v2104 = vunpack.c.l.b16 %v2072
  %v2105 = vunpack.c.l.b16 %v2073
  %v2106 = vunpack.c.l.b16 %v2074
  %v2107 = vunpack.c.l.b16 %v2075
  %v2108 = vunpack.c.l.b16 %v2076
  %v2109 = vunpack.c.l.b16 %v2077
  %v2110 = vunpack.c.l.b16 %v2078
  %v2111 = vunpack.c.l.b16 %v2079
  %v2112 = vunpack.c.l.b16 %v2080
  %v2113 = vunpack.c.l.b16 %v2081
  %v2114 = vpack.c.b16 %v2099, %v2098
  %v2115 = vpack.c.b16 %v2101, %v2100
  %v2116 = vpack.c.b16 %v2103, %v2102
  %v2117 = vpack.c.b16 %v2105, %v2104
  %v2118 = vpack.c.b16 %v2107, %v2106
  %v2119 = vpack.c.b16 %v2109, %v2108
  %v2120 = vpack.c.b16 %v2111, %v2110
  %v2121 = vpack.c.b16 %v2113, %v2112
  %2130 = vmatprep.subr.bf16.mxu0 0
  %2131 = vmatpush1.bf16.msra.mxu0 %v2114
  %2132 = vmatprep.subr.bf16.mxu0 0
  %2133 = vmatpush1.bf16.msra.mxu0 %v2115
  %2134 = vmatprep.subr.bf16.mxu0 0
  %2135 = vmatpush1.bf16.msra.mxu0 %v2116
  %2136 = vmatprep.subr.bf16.mxu0 0
  %2137 = vmatpush1.bf16.msra.mxu0 %v2117
  %2138 = vmatprep.subr.bf16.mxu0 0
  %2139 = vmatpush1.bf16.msra.mxu0 %v2118
  %2140 = vmatprep.subr.bf16.mxu0 0
  %2141 = vmatpush1.bf16.msra.mxu0 %v2119
  %2142 = vmatprep.subr.bf16.mxu0 0
  %2143 = vmatpush1.bf16.msra.mxu0 %v2120
  %2144 = vmatprep.subr.bf16.mxu0 0
  %2145 = vmatpush1.bf16.msra.mxu0 %v2121
  %2146 = vmatprep.subr.bf16.mxu0 0
  %2147 = vmatpush1.bf16.msra.mxu0 0
  %2148 = vmatprep.subr.bf16.mxu0 0
  %2149 = vmatpush1.bf16.msra.mxu0 0
  %2150 = vmatprep.subr.bf16.mxu0 0
  %2151 = vmatpush1.bf16.msra.mxu0 0
  %2152 = vmatprep.subr.bf16.mxu0 0
  %2153 = vmatpush1.bf16.msra.mxu0 0
  %2154 = vmatprep.subr.bf16.mxu0 0
  %2155 = vmatpush1.bf16.msra.mxu0 0
  %2156 = vmatprep.subr.bf16.mxu0 0
  %2157 = vmatpush1.bf16.msra.mxu0 0
  %2158 = vmatprep.subr.bf16.mxu0 0
  %2159 = vmatpush1.bf16.msra.mxu0 0
  %2160 = vmatprep.subr.bf16.mxu0 0
  %2161 = vmatpush1.bf16.msra.mxu0 0
  %2162 = vmatprep.mubr.bf16.mxu0 0
  %2163 = vmatmul.mubr.bf16.gmra.mrb[0].mxu0 %v835
  %v2164 = vpop.f32.mrb[0].mxu0
  %v2165 = vadd.f32 0.0, %v2164
  %v2166 = vpop.f32.mrb[0].mxu0
  %v2167 = vpop.f32.mrb[0].mxu0
  %v2168 = vadd.f32 0.0, %v2167
  %v2169 = vpop.f32.mrb[0].mxu0
  %2170 = vmatprep.mubr.bf16.mxu0 0
  %2171 = vmatmul.mubr.bf16.gmra.mrb[0].mxu0 %v2063
  %v2172 = vpop.f32.mrb[0].mxu0
  %v2173 = vadd.f32 0.0, %v2172
  %v2174 = vpop.f32.mrb[0].mxu0
  %v2175 = vpop.f32.mrb[0].mxu0
  %v2176 = vadd.f32 0.0, %v2175
  %v2177 = vpop.f32.mrb[0].mxu0
  %2178 = vmatprep.mubr.bf16.mxu0 0
  %2179 = vmatmul.mubr.bf16.gmra.mrb[0].mxu0 %v601
  %v2180 = vpop.f32.mrb[0].mxu0
  %v2181 = vadd.f32 0.0, %v2180
  %v2182 = vpop.f32.mrb[0].mxu0
  %v2183 = vpop.f32.mrb[0].mxu0
  %v2184 = vadd.f32 0.0, %v2183
  %v2185 = vpop.f32.mrb[0].mxu0
  %2186 = vmatprep.mubr.bf16.mxu0 0
  %2187 = vmatmul.mubr.bf16.gmra.mrb[0].mxu0 %v2058
  %v2188 = vpop.f32.mrb[0].mxu0
  %v2189 = vadd.f32 0.0, %v2188
  %v2190 = vpop.f32.mrb[0].mxu0
  %v2191 = vpop.f32.mrb[0].mxu0
  %v2192 = vadd.f32 0.0, %v2191
  %v2193 = vpop.f32.mrb[0].mxu0
  %2194 = vmatprep.mubr.bf16.mxu0 0
  %2195 = vmatmul.mubr.bf16.gmra.mrb[0].mxu0 %v2057
  %v2196 = vpop.f32.mrb[0].mxu0
  %v2197 = vadd.f32 0.0, %v2196
  %v2198 = vpop.f32.mrb[0].mxu0
  %v2199 = vpop.f32.mrb[0].mxu0
  %v2200 = vpop.f32.mrb[0].mxu0
  %2201 = vdwg.mxu0
  %v2202 = vadd.f32 %v2047, %v2165
  %v2203 = vadd.f32 %v2048, %v2168
  %v2204 = vadd.f32 %v2049, %v2173
  %v2205 = vadd.f32 %v2050, %v2176
  %v2206 = vadd.f32 %v2051, %v2181
  %v2207 = vadd.f32 %v2052, %v2184
  %v2208 = vadd.f32 %v2053, %v2189
  %v2209 = vadd.f32 %v2054, %v2192
  %v2210 = vadd.f32 %v2055, %v2197
  %v2211 = vld [vmem:[%s4] sm:$0x1]
  %v2213 = vlaneseq
  %v2214 = vshrl.u32 %v2213, 7
  %v2215 = vsub.s32 0, %v2214
  %v2216 = vrot.slane %v2211, %v2215
  %v2218 = vadd.f32 %v2202, %v2216
  %v2219 = vadd.f32 %v2203, %v2216
  %v2220 = vadd.f32 %v2204, %v2216
  %v2221 = vadd.f32 %v2205, %v2216
  %v2222 = vadd.f32 %v2206, %v2216
  %v2223 = vadd.f32 %v2207, %v2216
  %v2224 = vadd.f32 %v2208, %v2216
  %v2225 = vadd.f32 %v2209, %v2216
  %v2226 = vadd.f32 %v2210, %v2216
  %v2227 = vmax.f32 %v2218, 0.0
  %v2228 = vmax.f32 %v2219, 0.0
  %v2229 = vmax.f32 %v2220, 0.0
  %v2230 = vmax.f32 %v2221, 0.0
  %v2231 = vmax.f32 %v2222, 0.0
  %v2232 = vmax.f32 %v2223, 0.0
  %v2233 = vmax.f32 %v2224, 0.0
  %v2234 = vmax.f32 %v2225, 0.0
  %v2235 = vmax.f32 %v2226, 0.0
  %v2236 = vpack.c.bf16 %v2228, %v2227
  %v2237 = vpack.c.bf16 %v2230, %v2229
  %v2238 = vpack.c.bf16 %v2232, %v2231
  %v2239 = vpack.c.bf16 %v2234, %v2233
  %v2240 = vpack.c.bf16 %v2235, %v2235
  %v2246 = vunpack.c.l.b16 %v2236
  %v2247 = vunpack.c.h.b16 %v2236
  %v2248 = vunpack.c.l.b16 %v2237
  %v2249 = vunpack.c.h.b16 %v2237
  %v2250 = vunpack.c.l.b16 %v2238
  %v2251 = vunpack.c.h.b16 %v2238
  %v2252 = vunpack.c.l.b16 %v2239
  %v2253 = vunpack.c.h.b16 %v2239
  %v2254 = vunpack.c.l.b16 %v2240
  %v2255 = vpack.c.b16 %v2246, %v2246
  %v2256 = vpack.c.b16 %v2247, %v2247
  %v2257 = vpack.c.b16 %v2248, %v2248
  %v2258 = vpack.c.b16 %v2249, %v2249
  %v2259 = vpack.c.b16 %v2250, %v2250
  %v2260 = vpack.c.b16 %v2251, %v2251
  %v2261 = vpack.c.b16 %v2252, %v2252
  %v2262 = vpack.c.b16 %v2253, %v2253
  %v2263 = vpack.c.b16 %v2254, %v2254
  %2273 = vst [vmem:[%s10] sm:$0xf] %v2255
  %2274 = vst [vmem:[%s10 + $0x4] sm:$0xf] %v2256
  %2275 = vst [vmem:[%s10 + $0x8] sm:$0xf] %v2257
  %2276 = vst [vmem:[%s10 + $0xc] sm:$0xf] %v2258
  %2277 = vst [vmem:[%s10 + $0x10] sm:$0xf] %v2259
  %2278 = vst [vmem:[%s10 + $0x14] sm:$0xf] %v2260
  %2279 = vst [vmem:[%s10 + $0x18] sm:$0xf] %v2261
  %2280 = vst [vmem:[%s10 + $0x1c] sm:$0xf] %v2262
  %2281 = vst [vmem:[%s10 + $0x20] sm:$0xf] %v2263
  %v2282 = vld [vmem:[%s5] sm:$0xf]
  %v2283 = vld [vmem:[%s5 + $0x4] sm:$0xf]
  %v2284 = vld [vmem:[%s5 + $0x8] sm:$0xf]
  %v2285 = vld [vmem:[%s5 + $0xc] sm:$0xf]
  %v2286 = vld [vmem:[%s5 + $0x10] sm:$0xf]
  %v2287 = vld [vmem:[%s5 + $0x14] sm:$0xf]
  %v2288 = vld [vmem:[%s5 + $0x18] sm:$0xf]
  %v2289 = vld [vmem:[%s5 + $0x1c] sm:$0xf]
  %v2290 = vld [vmem:[%s5 + $0x20] sm:$0xf]
  %v2291 = vld [vmem:[%s5 + $0x24] sm:$0xf]
  %v2292 = vld [vmem:[%s5 + $0x28] sm:$0xf]
  %v2293 = vld [vmem:[%s5 + $0x2c] sm:$0xf]
  %v2294 = vld [vmem:[%s5 + $0x30] sm:$0xf]
  %v2295 = vld [vmem:[%s5 + $0x34] sm:$0xf]
  %v2296 = vld [vmem:[%s5 + $0x38] sm:$0xf]
  %v2297 = vld [vmem:[%s5 + $0x3c] sm:$0xf]
  %s2298 = scalar_lea.vmem %s5, 64
  %v2299 = vld [vmem:[%s2298] sm:$0xf]
  %v2300 = vld [vmem:[%s2298 + $0x4] sm:$0xf]
  %v2301 = vld [vmem:[%s2298 + $0x8] sm:$0xf]
  %v2302 = vld [vmem:[%s2298 + $0xc] sm:$0xf]
  %v2303 = vld [vmem:[%s2298 + $0x10] sm:$0xf]
  %v2304 = vld [vmem:[%s2298 + $0x14] sm:$0xf]
  %v2305 = vld [vmem:[%s2298 + $0x18] sm:$0xf]
  %v2306 = vld [vmem:[%s2298 + $0x1c] sm:$0xf]
  %v2307 = vld [vmem:[%s2298 + $0x20] sm:$0xf]
  %v2308 = vld [vmem:[%s2298 + $0x24] sm:$0xf]
  %v2309 = vld [vmem:[%s2298 + $0x28] sm:$0xf]
  %v2310 = vld [vmem:[%s2298 + $0x2c] sm:$0xf]
  %v2311 = vld [vmem:[%s2298 + $0x30] sm:$0xf]
  %v2312 = vld [vmem:[%s2298 + $0x34] sm:$0xf]
  %v2313 = vld [vmem:[%s2298 + $0x38] sm:$0xf]
  %v2314 = vld [vmem:[%s2298 + $0x3c] sm:$0xf]
  %v2315 = vrot.slane %v2236, 4
  %v2333 = vunpack.c.l.b16 %v2299
  %v2334 = vunpack.c.l.b16 %v2300
  %v2335 = vunpack.c.l.b16 %v2301
  %v2336 = vunpack.c.l.b16 %v2302
  %v2337 = vunpack.c.l.b16 %v2303
  %v2338 = vunpack.c.l.b16 %v2304
  %v2339 = vunpack.c.l.b16 %v2305
  %v2340 = vunpack.c.l.b16 %v2306
  %v2341 = vunpack.c.l.b16 %v2307
  %v2342 = vunpack.c.l.b16 %v2308
  %v2343 = vunpack.c.l.b16 %v2309
  %v2344 = vunpack.c.l.b16 %v2310
  %v2345 = vunpack.c.l.b16 %v2311
  %v2346 = vunpack.c.l.b16 %v2312
  %v2347 = vunpack.c.l.b16 %v2313
  %v2348 = vunpack.c.l.b16 %v2314
  %v2349 = vpack.c.b16 %v2334, %v2333
  %v2350 = vpack.c.b16 %v2336, %v2335
  %v2351 = vpack.c.b16 %v2338, %v2337
  %v2352 = vpack.c.b16 %v2340, %v2339
  %v2353 = vpack.c.b16 %v2342, %v2341
  %v2354 = vpack.c.b16 %v2344, %v2343
  %v2355 = vpack.c.b16 %v2346, %v2345
  %v2356 = vpack.c.b16 %v2348, %v2347
  %2365 = vmatprep.subr.bf16.mxu0 0
  %2366 = vmatpush1.bf16.msra.mxu0 %v2349
  %2367 = vmatprep.subr.bf16.mxu0 0
  %2368 = vmatpush1.bf16.msra.mxu0 %v2350
  %2369 = vmatprep.subr.bf16.mxu0 0
  %2370 = vmatpush1.bf16.msra.mxu0 %v2351
  %2371 = vmatprep.subr.bf16.mxu0 0
  %2372 = vmatpush1.bf16.msra.mxu0 %v2352
  %2373 = vmatprep.subr.bf16.mxu0 0
  %2374 = vmatpush1.bf16.msra.mxu0 %v2353
  %2375 = vmatprep.subr.bf16.mxu0 0
  %2376 = vmatpush1.bf16.msra.mxu0 %v2354
  %2377 = vmatprep.subr.bf16.mxu0 0
  %2378 = vmatpush1.bf16.msra.mxu0 %v2355
  %2379 = vmatprep.subr.bf16.mxu0 0
  %2380 = vmatpush1.bf16.msra.mxu0 %v2356
  %2381 = vmatprep.subr.bf16.mxu0 0
  %2382 = vmatpush1.bf16.msra.mxu0 0
  %2383 = vmatprep.subr.bf16.mxu0 0
  %2384 = vmatpush1.bf16.msra.mxu0 0
  %2385 = vmatprep.subr.bf16.mxu0 0
  %2386 = vmatpush1.bf16.msra.mxu0 0
  %2387 = vmatprep.subr.bf16.mxu0 0
  %2388 = vmatpush1.bf16.msra.mxu0 0
  %2389 = vmatprep.subr.bf16.mxu0 0
  %2390 = vmatpush1.bf16.msra.mxu0 0
  %2391 = vmatprep.subr.bf16.mxu0 0
  %2392 = vmatpush1.bf16.msra.mxu0 0
  %2393 = vmatprep.subr.bf16.mxu0 0
  %2394 = vmatpush1.bf16.msra.mxu0 0
  %2395 = vmatprep.subr.bf16.mxu0 0
  %2396 = vmatpush1.bf16.msra.mxu0 0
  %2397 = vmatprep.mubr.bf16.mxu0 0
  %2398 = vmatmul.mubr.bf16.gmra.mrb[0].mxu0 %v2315
  %v2399 = vpop.f32.mrb[0].mxu0
  %v2400 = vadd.f32 0.0, %v2399
  %v2401 = vpop.f32.mrb[0].mxu0
  %v2402 = vpop.f32.mrb[0].mxu0
  %v2403 = vpop.f32.mrb[0].mxu0
  %2404 = vdwg.mxu0
  %v2421 = vunpack.c.l.b16 %v2282
  %v2422 = vunpack.c.l.b16 %v2283
  %v2423 = vunpack.c.l.b16 %v2284
  %v2424 = vunpack.c.l.b16 %v2285
  %v2425 = vunpack.c.l.b16 %v2286
  %v2426 = vunpack.c.l.b16 %v2287
  %v2427 = vunpack.c.l.b16 %v2288
  %v2428 = vunpack.c.l.b16 %v2289
  %v2429 = vunpack.c.l.b16 %v2290
  %v2430 = vunpack.c.l.b16 %v2291
  %v2431 = vunpack.c.l.b16 %v2292
  %v2432 = vunpack.c.l.b16 %v2293
  %v2433 = vunpack.c.l.b16 %v2294
  %v2434 = vunpack.c.l.b16 %v2295
  %v2435 = vunpack.c.l.b16 %v2296
  %v2436 = vunpack.c.l.b16 %v2297
  %v2437 = vpack.c.b16 %v2422, %v2421
  %v2438 = vpack.c.b16 %v2424, %v2423
  %v2439 = vpack.c.b16 %v2426, %v2425
  %v2440 = vpack.c.b16 %v2428, %v2427
  %v2441 = vpack.c.b16 %v2430, %v2429
  %v2442 = vpack.c.b16 %v2432, %v2431
  %v2443 = vpack.c.b16 %v2434, %v2433
  %v2444 = vpack.c.b16 %v2436, %v2435
  %2453 = vmatprep.subr.bf16.mxu0 0
  %2454 = vmatpush1.bf16.msra.mxu0 %v2437
  %2455 = vmatprep.subr.bf16.mxu0 0
  %2456 = vmatpush1.bf16.msra.mxu0 %v2438
  %2457 = vmatprep.subr.bf16.mxu0 0
  %2458 = vmatpush1.bf16.msra.mxu0 %v2439
  %2459 = vmatprep.subr.bf16.mxu0 0
  %2460 = vmatpush1.bf16.msra.mxu0 %v2440
  %2461 = vmatprep.subr.bf16.mxu0 0
  %2462 = vmatpush1.bf16.msra.mxu0 %v2441
  %2463 = vmatprep.subr.bf16.mxu0 0
  %2464 = vmatpush1.bf16.msra.mxu0 %v2442
  %2465 = vmatprep.subr.bf16.mxu0 0
  %2466 = vmatpush1.bf16.msra.mxu0 %v2443
  %2467 = vmatprep.subr.bf16.mxu0 0
  %2468 = vmatpush1.bf16.msra.mxu0 %v2444
  %2469 = vmatprep.subr.bf16.mxu0 0
  %2470 = vmatpush1.bf16.msra.mxu0 0
  %2471 = vmatprep.subr.bf16.mxu0 0
  %2472 = vmatpush1.bf16.msra.mxu0 0
  %2473 = vmatprep.subr.bf16.mxu0 0
  %2474 = vmatpush1.bf16.msra.mxu0 0
  %2475 = vmatprep.subr.bf16.mxu0 0
  %2476 = vmatpush1.bf16.msra.mxu0 0
  %2477 = vmatprep.subr.bf16.mxu0 0
  %2478 = vmatpush1.bf16.msra.mxu0 0
  %2479 = vmatprep.subr.bf16.mxu0 0
  %2480 = vmatpush1.bf16.msra.mxu0 0
  %2481 = vmatprep.subr.bf16.mxu0 0
  %2482 = vmatpush1.bf16.msra.mxu0 0
  %2483 = vmatprep.subr.bf16.mxu0 0
  %2484 = vmatpush1.bf16.msra.mxu0 0
  %2485 = vmatprep.mubr.bf16.mxu0 0
  %2486 = vmatmul.mubr.bf16.gmra.mrb[0].mxu0 %v2236
  %v2487 = vpop.f32.mrb[0].mxu0
  %v2488 = vadd.f32 %v2400, %v2487
  %v2489 = vpop.f32.mrb[0].mxu0
  %v2490 = vpop.f32.mrb[0].mxu0
  %v2491 = vpop.f32.mrb[0].mxu0
  %2492 = vdwg.mxu0
  %s2493 = scalar_lea.vmem %s5, 128
  %v2494 = vld [vmem:[%s2493] sm:$0xf]
  %v2495 = vld [vmem:[%s2493 + $0x4] sm:$0xf]
  %v2496 = vld [vmem:[%s2493 + $0x8] sm:$0xf]
  %v2497 = vld [vmem:[%s2493 + $0xc] sm:$0xf]
  %v2498 = vld [vmem:[%s2493 + $0x10] sm:$0xf]
  %v2499 = vld [vmem:[%s2493 + $0x14] sm:$0xf]
  %v2500 = vld [vmem:[%s2493 + $0x18] sm:$0xf]
  %v2501 = vld [vmem:[%s2493 + $0x1c] sm:$0xf]
  %v2502 = vld [vmem:[%s2493 + $0x20] sm:$0xf]
  %v2503 = vld [vmem:[%s2493 + $0x24] sm:$0xf]
  %v2504 = vld [vmem:[%s2493 + $0x28] sm:$0xf]
  %v2505 = vld [vmem:[%s2493 + $0x2c] sm:$0xf]
  %v2506 = vld [vmem:[%s2493 + $0x30] sm:$0xf]
  %v2507 = vld [vmem:[%s2493 + $0x34] sm:$0xf]
  %v2508 = vld [vmem:[%s2493 + $0x38] sm:$0xf]
  %v2509 = vld [vmem:[%s2493 + $0x3c] sm:$0xf]
  %v2526 = vunpack.c.l.b16 %v2494
  %v2527 = vunpack.c.l.b16 %v2495
  %v2528 = vunpack.c.l.b16 %v2496
  %v2529 = vunpack.c.l.b16 %v2497
  %v2530 = vunpack.c.l.b16 %v2498
  %v2531 = vunpack.c.l.b16 %v2499
  %v2532 = vunpack.c.l.b16 %v2500
  %v2533 = vunpack.c.l.b16 %v2501
  %v2534 = vunpack.c.l.b16 %v2502
  %v2535 = vunpack.c.l.b16 %v2503
  %v2536 = vunpack.c.l.b16 %v2504
  %v2537 = vunpack.c.l.b16 %v2505
  %v2538 = vunpack.c.l.b16 %v2506
  %v2539 = vunpack.c.l.b16 %v2507
  %v2540 = vunpack.c.l.b16 %v2508
  %v2541 = vunpack.c.l.b16 %v2509
  %v2542 = vpack.c.b16 %v2527, %v2526
  %v2543 = vpack.c.b16 %v2529, %v2528
  %v2544 = vpack.c.b16 %v2531, %v2530
  %v2545 = vpack.c.b16 %v2533, %v2532
  %v2546 = vpack.c.b16 %v2535, %v2534
  %v2547 = vpack.c.b16 %v2537, %v2536
  %v2548 = vpack.c.b16 %v2539, %v2538
  %v2549 = vpack.c.b16 %v2541, %v2540
  %2558 = vmatprep.subr.bf16.mxu0 0
  %2559 = vmatpush1.bf16.msra.mxu0 %v2542
  %2560 = vmatprep.subr.bf16.mxu0 0
  %2561 = vmatpush1.bf16.msra.mxu0 %v2543
  %2562 = vmatprep.subr.bf16.mxu0 0
  %2563 = vmatpush1.bf16.msra.mxu0 %v2544
  %2564 = vmatprep.subr.bf16.mxu0 0
  %2565 = vmatpush1.bf16.msra.mxu0 %v2545
  %2566 = vmatprep.subr.bf16.mxu0 0
  %2567 = vmatpush1.bf16.msra.mxu0 %v2546
  %2568 = vmatprep.subr.bf16.mxu0 0
  %2569 = vmatpush1.bf16.msra.mxu0 %v2547
  %2570 = vmatprep.subr.bf16.mxu0 0
  %2571 = vmatpush1.bf16.msra.mxu0 %v2548
  %2572 = vmatprep.subr.bf16.mxu0 0
  %2573 = vmatpush1.bf16.msra.mxu0 %v2549
  %2574 = vmatprep.subr.bf16.mxu0 0
  %2575 = vmatpush1.bf16.msra.mxu0 0
  %2576 = vmatprep.subr.bf16.mxu0 0
  %2577 = vmatpush1.bf16.msra.mxu0 0
  %2578 = vmatprep.subr.bf16.mxu0 0
  %2579 = vmatpush1.bf16.msra.mxu0 0
  %2580 = vmatprep.subr.bf16.mxu0 0
  %2581 = vmatpush1.bf16.msra.mxu0 0
  %2582 = vmatprep.subr.bf16.mxu0 0
  %2583 = vmatpush1.bf16.msra.mxu0 0
  %2584 = vmatprep.subr.bf16.mxu0 0
  %2585 = vmatpush1.bf16.msra.mxu0 0
  %2586 = vmatprep.subr.bf16.mxu0 0
  %2587 = vmatpush1.bf16.msra.mxu0 0
  %2588 = vmatprep.subr.bf16.mxu0 0
  %2589 = vmatpush1.bf16.msra.mxu0 0
  %2590 = vmatprep.mubr.bf16.mxu0 0
  %2591 = vmatmul.mubr.bf16.gmra.mrb[0].mxu0 %v2237
  %v2592 = vpop.f32.mrb[0].mxu0
  %v2593 = vadd.f32 0.0, %v2592
  %v2594 = vpop.f32.mrb[0].mxu0
  %v2595 = vpop.f32.mrb[0].mxu0
  %v2596 = vpop.f32.mrb[0].mxu0
  %2597 = vdwg.mxu0
  %v2598 = vadd.f32 %v2488, %v2593
  %s2599 = scalar_lea.vmem %s5, 192
  %v2600 = vld [vmem:[%s2599] sm:$0xf]
  %v2601 = vld [vmem:[%s2599 + $0x4] sm:$0xf]
  %v2602 = vld [vmem:[%s2599 + $0x8] sm:$0xf]
  %v2603 = vld [vmem:[%s2599 + $0xc] sm:$0xf]
  %v2604 = vld [vmem:[%s2599 + $0x10] sm:$0xf]
  %v2605 = vld [vmem:[%s2599 + $0x14] sm:$0xf]
  %v2606 = vld [vmem:[%s2599 + $0x18] sm:$0xf]
  %v2607 = vld [vmem:[%s2599 + $0x1c] sm:$0xf]
  %v2608 = vld [vmem:[%s2599 + $0x20] sm:$0xf]
  %v2609 = vld [vmem:[%s2599 + $0x24] sm:$0xf]
  %v2610 = vld [vmem:[%s2599 + $0x28] sm:$0xf]
  %v2611 = vld [vmem:[%s2599 + $0x2c] sm:$0xf]
  %v2612 = vld [vmem:[%s2599 + $0x30] sm:$0xf]
  %v2613 = vld [vmem:[%s2599 + $0x34] sm:$0xf]
  %v2614 = vld [vmem:[%s2599 + $0x38] sm:$0xf]
  %v2615 = vld [vmem:[%s2599 + $0x3c] sm:$0xf]
  %v2616 = vrot.slane %v2237, 4
  %v2634 = vunpack.c.l.b16 %v2600
  %v2635 = vunpack.c.l.b16 %v2601
  %v2636 = vunpack.c.l.b16 %v2602
  %v2637 = vunpack.c.l.b16 %v2603
  %v2638 = vunpack.c.l.b16 %v2604
  %v2639 = vunpack.c.l.b16 %v2605
  %v2640 = vunpack.c.l.b16 %v2606
  %v2641 = vunpack.c.l.b16 %v2607
  %v2642 = vunpack.c.l.b16 %v2608
  %v2643 = vunpack.c.l.b16 %v2609
  %v2644 = vunpack.c.l.b16 %v2610
  %v2645 = vunpack.c.l.b16 %v2611
  %v2646 = vunpack.c.l.b16 %v2612
  %v2647 = vunpack.c.l.b16 %v2613
  %v2648 = vunpack.c.l.b16 %v2614
  %v2649 = vunpack.c.l.b16 %v2615
  %v2650 = vpack.c.b16 %v2635, %v2634
  %v2651 = vpack.c.b16 %v2637, %v2636
  %v2652 = vpack.c.b16 %v2639, %v2638
  %v2653 = vpack.c.b16 %v2641, %v2640
  %v2654 = vpack.c.b16 %v2643, %v2642
  %v2655 = vpack.c.b16 %v2645, %v2644
  %v2656 = vpack.c.b16 %v2647, %v2646
  %v2657 = vpack.c.b16 %v2649, %v2648
  %2666 = vmatprep.subr.bf16.mxu0 0
  %2667 = vmatpush1.bf16.msra.mxu0 %v2650
  %2668 = vmatprep.subr.bf16.mxu0 0
  %2669 = vmatpush1.bf16.msra.mxu0 %v2651
  %2670 = vmatprep.subr.bf16.mxu0 0
  %2671 = vmatpush1.bf16.msra.mxu0 %v2652
  %2672 = vmatprep.subr.bf16.mxu0 0
  %2673 = vmatpush1.bf16.msra.mxu0 %v2653
  %2674 = vmatprep.subr.bf16.mxu0 0
  %2675 = vmatpush1.bf16.msra.mxu0 %v2654
  %2676 = vmatprep.subr.bf16.mxu0 0
  %2677 = vmatpush1.bf16.msra.mxu0 %v2655
  %2678 = vmatprep.subr.bf16.mxu0 0
  %2679 = vmatpush1.bf16.msra.mxu0 %v2656
  %2680 = vmatprep.subr.bf16.mxu0 0
  %2681 = vmatpush1.bf16.msra.mxu0 %v2657
  %2682 = vmatprep.subr.bf16.mxu0 0
  %2683 = vmatpush1.bf16.msra.mxu0 0
  %2684 = vmatprep.subr.bf16.mxu0 0
  %2685 = vmatpush1.bf16.msra.mxu0 0
  %2686 = vmatprep.subr.bf16.mxu0 0
  %2687 = vmatpush1.bf16.msra.mxu0 0
  %2688 = vmatprep.subr.bf16.mxu0 0
  %2689 = vmatpush1.bf16.msra.mxu0 0
  %2690 = vmatprep.subr.bf16.mxu0 0
  %2691 = vmatpush1.bf16.msra.mxu0 0
  %2692 = vmatprep.subr.bf16.mxu0 0
  %2693 = vmatpush1.bf16.msra.mxu0 0
  %2694 = vmatprep.subr.bf16.mxu0 0
  %2695 = vmatpush1.bf16.msra.mxu0 0
  %2696 = vmatprep.subr.bf16.mxu0 0
  %2697 = vmatpush1.bf16.msra.mxu0 0
  %2698 = vmatprep.mubr.bf16.mxu0 0
  %2699 = vmatmul.mubr.bf16.gmra.mrb[0].mxu0 %v2616
  %v2700 = vpop.f32.mrb[0].mxu0
  %v2701 = vadd.f32 0.0, %v2700
  %v2702 = vpop.f32.mrb[0].mxu0
  %v2703 = vpop.f32.mrb[0].mxu0
  %v2704 = vpop.f32.mrb[0].mxu0
  %2705 = vdwg.mxu0
  %v2706 = vadd.f32 %v2598, %v2701
  %s2707 = scalar_lea.vmem %s5, 256
  %v2708 = vld [vmem:[%s2707] sm:$0xf]
  %v2709 = vld [vmem:[%s2707 + $0x4] sm:$0xf]
  %v2710 = vld [vmem:[%s2707 + $0x8] sm:$0xf]
  %v2711 = vld [vmem:[%s2707 + $0xc] sm:$0xf]
  %v2712 = vld [vmem:[%s2707 + $0x10] sm:$0xf]
  %v2713 = vld [vmem:[%s2707 + $0x14] sm:$0xf]
  %v2714 = vld [vmem:[%s2707 + $0x18] sm:$0xf]
  %v2715 = vld [vmem:[%s2707 + $0x1c] sm:$0xf]
  %v2716 = vld [vmem:[%s2707 + $0x20] sm:$0xf]
  %v2717 = vld [vmem:[%s2707 + $0x24] sm:$0xf]
  %v2718 = vld [vmem:[%s2707 + $0x28] sm:$0xf]
  %v2719 = vld [vmem:[%s2707 + $0x2c] sm:$0xf]
  %v2720 = vld [vmem:[%s2707 + $0x30] sm:$0xf]
  %v2721 = vld [vmem:[%s2707 + $0x34] sm:$0xf]
  %v2722 = vld [vmem:[%s2707 + $0x38] sm:$0xf]
  %v2723 = vld [vmem:[%s2707 + $0x3c] sm:$0xf]
  %v2740 = vunpack.c.l.b16 %v2708
  %v2741 = vunpack.c.l.b16 %v2709
  %v2742 = vunpack.c.l.b16 %v2710
  %v2743 = vunpack.c.l.b16 %v2711
  %v2744 = vunpack.c.l.b16 %v2712
  %v2745 = vunpack.c.l.b16 %v2713
  %v2746 = vunpack.c.l.b16 %v2714
  %v2747 = vunpack.c.l.b16 %v2715
  %v2748 = vunpack.c.l.b16 %v2716
  %v2749 = vunpack.c.l.b16 %v2717
  %v2750 = vunpack.c.l.b16 %v2718
  %v2751 = vunpack.c.l.b16 %v2719
  %v2752 = vunpack.c.l.b16 %v2720
  %v2753 = vunpack.c.l.b16 %v2721
  %v2754 = vunpack.c.l.b16 %v2722
  %v2755 = vunpack.c.l.b16 %v2723
  %v2756 = vpack.c.b16 %v2741, %v2740
  %v2757 = vpack.c.b16 %v2743, %v2742
  %v2758 = vpack.c.b16 %v2745, %v2744
  %v2759 = vpack.c.b16 %v2747, %v2746
  %v2760 = vpack.c.b16 %v2749, %v2748
  %v2761 = vpack.c.b16 %v2751, %v2750
  %v2762 = vpack.c.b16 %v2753, %v2752
  %v2763 = vpack.c.b16 %v2755, %v2754
  %2772 = vmatprep.subr.bf16.mxu0 0
  %2773 = vmatpush1.bf16.msra.mxu0 %v2756
  %2774 = vmatprep.subr.bf16.mxu0 0
  %2775 = vmatpush1.bf16.msra.mxu0 %v2757
  %2776 = vmatprep.subr.bf16.mxu0 0
  %2777 = vmatpush1.bf16.msra.mxu0 %v2758
  %2778 = vmatprep.subr.bf16.mxu0 0
  %2779 = vmatpush1.bf16.msra.mxu0 %v2759
  %2780 = vmatprep.subr.bf16.mxu0 0
  %2781 = vmatpush1.bf16.msra.mxu0 %v2760
  %2782 = vmatprep.subr.bf16.mxu0 0
  %2783 = vmatpush1.bf16.msra.mxu0 %v2761
  %2784 = vmatprep.subr.bf16.mxu0 0
  %2785 = vmatpush1.bf16.msra.mxu0 %v2762
  %2786 = vmatprep.subr.bf16.mxu0 0
  %2787 = vmatpush1.bf16.msra.mxu0 %v2763
  %2788 = vmatprep.subr.bf16.mxu0 0
  %2789 = vmatpush1.bf16.msra.mxu0 0
  %2790 = vmatprep.subr.bf16.mxu0 0
  %2791 = vmatpush1.bf16.msra.mxu0 0
  %2792 = vmatprep.subr.bf16.mxu0 0
  %2793 = vmatpush1.bf16.msra.mxu0 0
  %2794 = vmatprep.subr.bf16.mxu0 0
  %2795 = vmatpush1.bf16.msra.mxu0 0
  %2796 = vmatprep.subr.bf16.mxu0 0
  %2797 = vmatpush1.bf16.msra.mxu0 0
  %2798 = vmatprep.subr.bf16.mxu0 0
  %2799 = vmatpush1.bf16.msra.mxu0 0
  %2800 = vmatprep.subr.bf16.mxu0 0
  %2801 = vmatpush1.bf16.msra.mxu0 0
  %2802 = vmatprep.subr.bf16.mxu0 0
  %2803 = vmatpush1.bf16.msra.mxu0 0
  %2804 = vmatprep.mubr.bf16.mxu0 0
  %2805 = vmatmul.mubr.bf16.gmra.mrb[0].mxu0 %v2238
  %v2806 = vpop.f32.mrb[0].mxu0
  %v2807 = vadd.f32 0.0, %v2806
  %v2808 = vpop.f32.mrb[0].mxu0
  %v2809 = vpop.f32.mrb[0].mxu0
  %v2810 = vpop.f32.mrb[0].mxu0
  %2811 = vdwg.mxu0
  %v2812 = vadd.f32 %v2706, %v2807
  %s2813 = scalar_lea.vmem %s5, 320
  %v2814 = vld [vmem:[%s2813] sm:$0xf]
  %v2815 = vld [vmem:[%s2813 + $0x4] sm:$0xf]
  %v2816 = vld [vmem:[%s2813 + $0x8] sm:$0xf]
  %v2817 = vld [vmem:[%s2813 + $0xc] sm:$0xf]
  %v2818 = vld [vmem:[%s2813 + $0x10] sm:$0xf]
  %v2819 = vld [vmem:[%s2813 + $0x14] sm:$0xf]
  %v2820 = vld [vmem:[%s2813 + $0x18] sm:$0xf]
  %v2821 = vld [vmem:[%s2813 + $0x1c] sm:$0xf]
  %v2822 = vld [vmem:[%s2813 + $0x20] sm:$0xf]
  %v2823 = vld [vmem:[%s2813 + $0x24] sm:$0xf]
  %v2824 = vld [vmem:[%s2813 + $0x28] sm:$0xf]
  %v2825 = vld [vmem:[%s2813 + $0x2c] sm:$0xf]
  %v2826 = vld [vmem:[%s2813 + $0x30] sm:$0xf]
  %v2827 = vld [vmem:[%s2813 + $0x34] sm:$0xf]
  %v2828 = vld [vmem:[%s2813 + $0x38] sm:$0xf]
  %v2829 = vld [vmem:[%s2813 + $0x3c] sm:$0xf]
  %v2830 = vrot.slane %v2238, 4
  %v2848 = vunpack.c.l.b16 %v2814
  %v2849 = vunpack.c.l.b16 %v2815
  %v2850 = vunpack.c.l.b16 %v2816
  %v2851 = vunpack.c.l.b16 %v2817
  %v2852 = vunpack.c.l.b16 %v2818
  %v2853 = vunpack.c.l.b16 %v2819
  %v2854 = vunpack.c.l.b16 %v2820
  %v2855 = vunpack.c.l.b16 %v2821
  %v2856 = vunpack.c.l.b16 %v2822
  %v2857 = vunpack.c.l.b16 %v2823
  %v2858 = vunpack.c.l.b16 %v2824
  %v2859 = vunpack.c.l.b16 %v2825
  %v2860 = vunpack.c.l.b16 %v2826
  %v2861 = vunpack.c.l.b16 %v2827
  %v2862 = vunpack.c.l.b16 %v2828
  %v2863 = vunpack.c.l.b16 %v2829
  %v2864 = vpack.c.b16 %v2849, %v2848
  %v2865 = vpack.c.b16 %v2851, %v2850
  %v2866 = vpack.c.b16 %v2853, %v2852
  %v2867 = vpack.c.b16 %v2855, %v2854
  %v2868 = vpack.c.b16 %v2857, %v2856
  %v2869 = vpack.c.b16 %v2859, %v2858
  %v2870 = vpack.c.b16 %v2861, %v2860
  %v2871 = vpack.c.b16 %v2863, %v2862
  %2880 = vmatprep.subr.bf16.mxu0 0
  %2881 = vmatpush1.bf16.msra.mxu0 %v2864
  %2882 = vmatprep.subr.bf16.mxu0 0
  %2883 = vmatpush1.bf16.msra.mxu0 %v2865
  %2884 = vmatprep.subr.bf16.mxu0 0
  %2885 = vmatpush1.bf16.msra.mxu0 %v2866
  %2886 = vmatprep.subr.bf16.mxu0 0
  %2887 = vmatpush1.bf16.msra.mxu0 %v2867
  %2888 = vmatprep.subr.bf16.mxu0 0
  %2889 = vmatpush1.bf16.msra.mxu0 %v2868
  %2890 = vmatprep.subr.bf16.mxu0 0
  %2891 = vmatpush1.bf16.msra.mxu0 %v2869
  %2892 = vmatprep.subr.bf16.mxu0 0
  %2893 = vmatpush1.bf16.msra.mxu0 %v2870
  %2894 = vmatprep.subr.bf16.mxu0 0
  %2895 = vmatpush1.bf16.msra.mxu0 %v2871
  %2896 = vmatprep.subr.bf16.mxu0 0
  %2897 = vmatpush1.bf16.msra.mxu0 0
  %2898 = vmatprep.subr.bf16.mxu0 0
  %2899 = vmatpush1.bf16.msra.mxu0 0
  %2900 = vmatprep.subr.bf16.mxu0 0
  %2901 = vmatpush1.bf16.msra.mxu0 0
  %2902 = vmatprep.subr.bf16.mxu0 0
  %2903 = vmatpush1.bf16.msra.mxu0 0
  %2904 = vmatprep.subr.bf16.mxu0 0
  %2905 = vmatpush1.bf16.msra.mxu0 0
  %2906 = vmatprep.subr.bf16.mxu0 0
  %2907 = vmatpush1.bf16.msra.mxu0 0
  %2908 = vmatprep.subr.bf16.mxu0 0
  %2909 = vmatpush1.bf16.msra.mxu0 0
  %2910 = vmatprep.subr.bf16.mxu0 0
  %2911 = vmatpush1.bf16.msra.mxu0 0
  %2912 = vmatprep.mubr.bf16.mxu0 0
  %2913 = vmatmul.mubr.bf16.gmra.mrb[0].mxu0 %v2830
  %v2914 = vpop.f32.mrb[0].mxu0
  %v2915 = vadd.f32 0.0, %v2914
  %v2916 = vpop.f32.mrb[0].mxu0
  %v2917 = vpop.f32.mrb[0].mxu0
  %v2918 = vpop.f32.mrb[0].mxu0
  %2919 = vdwg.mxu0
  %v2920 = vadd.f32 %v2812, %v2915
  %s2921 = scalar_lea.vmem %s5, 384
  %v2922 = vld [vmem:[%s2921] sm:$0xf]
  %v2923 = vld [vmem:[%s2921 + $0x4] sm:$0xf]
  %v2924 = vld [vmem:[%s2921 + $0x8] sm:$0xf]
  %v2925 = vld [vmem:[%s2921 + $0xc] sm:$0xf]
  %v2926 = vld [vmem:[%s2921 + $0x10] sm:$0xf]
  %v2927 = vld [vmem:[%s2921 + $0x14] sm:$0xf]
  %v2928 = vld [vmem:[%s2921 + $0x18] sm:$0xf]
  %v2929 = vld [vmem:[%s2921 + $0x1c] sm:$0xf]
  %v2930 = vld [vmem:[%s2921 + $0x20] sm:$0xf]
  %v2931 = vld [vmem:[%s2921 + $0x24] sm:$0xf]
  %v2932 = vld [vmem:[%s2921 + $0x28] sm:$0xf]
  %v2933 = vld [vmem:[%s2921 + $0x2c] sm:$0xf]
  %v2934 = vld [vmem:[%s2921 + $0x30] sm:$0xf]
  %v2935 = vld [vmem:[%s2921 + $0x34] sm:$0xf]
  %v2936 = vld [vmem:[%s2921 + $0x38] sm:$0xf]
  %v2937 = vld [vmem:[%s2921 + $0x3c] sm:$0xf]
  %v2954 = vunpack.c.l.b16 %v2922
  %v2955 = vunpack.c.l.b16 %v2923
  %v2956 = vunpack.c.l.b16 %v2924
  %v2957 = vunpack.c.l.b16 %v2925
  %v2958 = vunpack.c.l.b16 %v2926
  %v2959 = vunpack.c.l.b16 %v2927
  %v2960 = vunpack.c.l.b16 %v2928
  %v2961 = vunpack.c.l.b16 %v2929
  %v2962 = vunpack.c.l.b16 %v2930
  %v2963 = vunpack.c.l.b16 %v2931
  %v2964 = vunpack.c.l.b16 %v2932
  %v2965 = vunpack.c.l.b16 %v2933
  %v2966 = vunpack.c.l.b16 %v2934
  %v2967 = vunpack.c.l.b16 %v2935
  %v2968 = vunpack.c.l.b16 %v2936
  %v2969 = vunpack.c.l.b16 %v2937
  %v2970 = vpack.c.b16 %v2955, %v2954
  %v2971 = vpack.c.b16 %v2957, %v2956
  %v2972 = vpack.c.b16 %v2959, %v2958
  %v2973 = vpack.c.b16 %v2961, %v2960
  %v2974 = vpack.c.b16 %v2963, %v2962
  %v2975 = vpack.c.b16 %v2965, %v2964
  %v2976 = vpack.c.b16 %v2967, %v2966
  %v2977 = vpack.c.b16 %v2969, %v2968
  %2986 = vmatprep.subr.bf16.mxu0 0
  %2987 = vmatpush1.bf16.msra.mxu0 %v2970
  %2988 = vmatprep.subr.bf16.mxu0 0
  %2989 = vmatpush1.bf16.msra.mxu0 %v2971
  %2990 = vmatprep.subr.bf16.mxu0 0
  %2991 = vmatpush1.bf16.msra.mxu0 %v2972
  %2992 = vmatprep.subr.bf16.mxu0 0
  %2993 = vmatpush1.bf16.msra.mxu0 %v2973
  %2994 = vmatprep.subr.bf16.mxu0 0
  %2995 = vmatpush1.bf16.msra.mxu0 %v2974
  %2996 = vmatprep.subr.bf16.mxu0 0
  %2997 = vmatpush1.bf16.msra.mxu0 %v2975
  %2998 = vmatprep.subr.bf16.mxu0 0
  %2999 = vmatpush1.bf16.msra.mxu0 %v2976
  %3000 = vmatprep.subr.bf16.mxu0 0
  %3001 = vmatpush1.bf16.msra.mxu0 %v2977
  %3002 = vmatprep.subr.bf16.mxu0 0
  %3003 = vmatpush1.bf16.msra.mxu0 0
  %3004 = vmatprep.subr.bf16.mxu0 0
  %3005 = vmatpush1.bf16.msra.mxu0 0
  %3006 = vmatprep.subr.bf16.mxu0 0
  %3007 = vmatpush1.bf16.msra.mxu0 0
  %3008 = vmatprep.subr.bf16.mxu0 0
  %3009 = vmatpush1.bf16.msra.mxu0 0
  %3010 = vmatprep.subr.bf16.mxu0 0
  %3011 = vmatpush1.bf16.msra.mxu0 0
  %3012 = vmatprep.subr.bf16.mxu0 0
  %3013 = vmatpush1.bf16.msra.mxu0 0
  %3014 = vmatprep.subr.bf16.mxu0 0
  %3015 = vmatpush1.bf16.msra.mxu0 0
  %3016 = vmatprep.subr.bf16.mxu0 0
  %3017 = vmatpush1.bf16.msra.mxu0 0
  %3018 = vmatprep.mubr.bf16.mxu0 0
  %3019 = vmatmul.mubr.bf16.gmra.mrb[0].mxu0 %v2239
  %v3020 = vpop.f32.mrb[0].mxu0
  %v3021 = vadd.f32 0.0, %v3020
  %v3022 = vpop.f32.mrb[0].mxu0
  %v3023 = vpop.f32.mrb[0].mxu0
  %v3024 = vpop.f32.mrb[0].mxu0
  %3025 = vdwg.mxu0
  %v3026 = vadd.f32 %v2920, %v3021
  %s3027 = scalar_lea.vmem %s5, 448
  %v3028 = vld [vmem:[%s3027] sm:$0xf]
  %v3029 = vld [vmem:[%s3027 + $0x4] sm:$0xf]
  %v3030 = vld [vmem:[%s3027 + $0x8] sm:$0xf]
  %v3031 = vld [vmem:[%s3027 + $0xc] sm:$0xf]
  %v3032 = vld [vmem:[%s3027 + $0x10] sm:$0xf]
  %v3033 = vld [vmem:[%s3027 + $0x14] sm:$0xf]
  %v3034 = vld [vmem:[%s3027 + $0x18] sm:$0xf]
  %v3035 = vld [vmem:[%s3027 + $0x1c] sm:$0xf]
  %v3036 = vld [vmem:[%s3027 + $0x20] sm:$0xf]
  %v3037 = vld [vmem:[%s3027 + $0x24] sm:$0xf]
  %v3038 = vld [vmem:[%s3027 + $0x28] sm:$0xf]
  %v3039 = vld [vmem:[%s3027 + $0x2c] sm:$0xf]
  %v3040 = vld [vmem:[%s3027 + $0x30] sm:$0xf]
  %v3041 = vld [vmem:[%s3027 + $0x34] sm:$0xf]
  %v3042 = vld [vmem:[%s3027 + $0x38] sm:$0xf]
  %v3043 = vld [vmem:[%s3027 + $0x3c] sm:$0xf]
  %v3044 = vrot.slane %v2239, 4
  %v3062 = vunpack.c.l.b16 %v3028
  %v3063 = vunpack.c.l.b16 %v3029
  %v3064 = vunpack.c.l.b16 %v3030
  %v3065 = vunpack.c.l.b16 %v3031
  %v3066 = vunpack.c.l.b16 %v3032
  %v3067 = vunpack.c.l.b16 %v3033
  %v3068 = vunpack.c.l.b16 %v3034
  %v3069 = vunpack.c.l.b16 %v3035
  %v3070 = vunpack.c.l.b16 %v3036
  %v3071 = vunpack.c.l.b16 %v3037
  %v3072 = vunpack.c.l.b16 %v3038
  %v3073 = vunpack.c.l.b16 %v3039
  %v3074 = vunpack.c.l.b16 %v3040
  %v3075 = vunpack.c.l.b16 %v3041
  %v3076 = vunpack.c.l.b16 %v3042
  %v3077 = vunpack.c.l.b16 %v3043
  %v3078 = vpack.c.b16 %v3063, %v3062
  %v3079 = vpack.c.b16 %v3065, %v3064
  %v3080 = vpack.c.b16 %v3067, %v3066
  %v3081 = vpack.c.b16 %v3069, %v3068
  %v3082 = vpack.c.b16 %v3071, %v3070
  %v3083 = vpack.c.b16 %v3073, %v3072
  %v3084 = vpack.c.b16 %v3075, %v3074
  %v3085 = vpack.c.b16 %v3077, %v3076
  %3094 = vmatprep.subr.bf16.mxu0 0
  %3095 = vmatpush1.bf16.msra.mxu0 %v3078
  %3096 = vmatprep.subr.bf16.mxu0 0
  %3097 = vmatpush1.bf16.msra.mxu0 %v3079
  %3098 = vmatprep.subr.bf16.mxu0 0
  %3099 = vmatpush1.bf16.msra.mxu0 %v3080
  %3100 = vmatprep.subr.bf16.mxu0 0
  %3101 = vmatpush1.bf16.msra.mxu0 %v3081
  %3102 = vmatprep.subr.bf16.mxu0 0
  %3103 = vmatpush1.bf16.msra.mxu0 %v3082
  %3104 = vmatprep.subr.bf16.mxu0 0
  %3105 = vmatpush1.bf16.msra.mxu0 %v3083
  %3106 = vmatprep.subr.bf16.mxu0 0
  %3107 = vmatpush1.bf16.msra.mxu0 %v3084
  %3108 = vmatprep.subr.bf16.mxu0 0
  %3109 = vmatpush1.bf16.msra.mxu0 %v3085
  %3110 = vmatprep.subr.bf16.mxu0 0
  %3111 = vmatpush1.bf16.msra.mxu0 0
  %3112 = vmatprep.subr.bf16.mxu0 0
  %3113 = vmatpush1.bf16.msra.mxu0 0
  %3114 = vmatprep.subr.bf16.mxu0 0
  %3115 = vmatpush1.bf16.msra.mxu0 0
  %3116 = vmatprep.subr.bf16.mxu0 0
  %3117 = vmatpush1.bf16.msra.mxu0 0
  %3118 = vmatprep.subr.bf16.mxu0 0
  %3119 = vmatpush1.bf16.msra.mxu0 0
  %3120 = vmatprep.subr.bf16.mxu0 0
  %3121 = vmatpush1.bf16.msra.mxu0 0
  %3122 = vmatprep.subr.bf16.mxu0 0
  %3123 = vmatpush1.bf16.msra.mxu0 0
  %3124 = vmatprep.subr.bf16.mxu0 0
  %3125 = vmatpush1.bf16.msra.mxu0 0
  %3126 = vmatprep.mubr.bf16.mxu0 0
  %3127 = vmatmul.mubr.bf16.gmra.mrb[0].mxu0 %v3044
  %v3128 = vpop.f32.mrb[0].mxu0
  %v3129 = vadd.f32 0.0, %v3128
  %v3130 = vpop.f32.mrb[0].mxu0
  %v3131 = vpop.f32.mrb[0].mxu0
  %v3132 = vpop.f32.mrb[0].mxu0
  %3133 = vdwg.mxu0
  %v3134 = vadd.f32 %v3026, %v3129
  %s3135 = scalar_lea.vmem %s5, 512
  %v3136 = vld [vmem:[%s3135] sm:$0xf]
  %v3137 = vld [vmem:[%s3135 + $0x4] sm:$0xf]
  %v3138 = vld [vmem:[%s3135 + $0x8] sm:$0xf]
  %v3139 = vld [vmem:[%s3135 + $0xc] sm:$0xf]
  %v3140 = vld [vmem:[%s3135 + $0x10] sm:$0xf]
  %v3141 = vld [vmem:[%s3135 + $0x14] sm:$0xf]
  %v3142 = vld [vmem:[%s3135 + $0x18] sm:$0xf]
  %v3143 = vld [vmem:[%s3135 + $0x1c] sm:$0xf]
  %v3144 = vld [vmem:[%s3135 + $0x20] sm:$0xf]
  %v3145 = vld [vmem:[%s3135 + $0x24] sm:$0xf]
  %v3146 = vld [vmem:[%s3135 + $0x28] sm:$0xf]
  %v3147 = vld [vmem:[%s3135 + $0x2c] sm:$0xf]
  %v3148 = vld [vmem:[%s3135 + $0x30] sm:$0xf]
  %v3149 = vld [vmem:[%s3135 + $0x34] sm:$0xf]
  %v3150 = vld [vmem:[%s3135 + $0x38] sm:$0xf]
  %v3151 = vld [vmem:[%s3135 + $0x3c] sm:$0xf]
  %v3168 = vunpack.c.l.b16 %v3136
  %v3169 = vunpack.c.l.b16 %v3137
  %v3170 = vunpack.c.l.b16 %v3138
  %v3171 = vunpack.c.l.b16 %v3139
  %v3172 = vunpack.c.l.b16 %v3140
  %v3173 = vunpack.c.l.b16 %v3141
  %v3174 = vunpack.c.l.b16 %v3142
  %v3175 = vunpack.c.l.b16 %v3143
  %v3176 = vunpack.c.l.b16 %v3144
  %v3177 = vunpack.c.l.b16 %v3145
  %v3178 = vunpack.c.l.b16 %v3146
  %v3179 = vunpack.c.l.b16 %v3147
  %v3180 = vunpack.c.l.b16 %v3148
  %v3181 = vunpack.c.l.b16 %v3149
  %v3182 = vunpack.c.l.b16 %v3150
  %v3183 = vunpack.c.l.b16 %v3151
  %v3184 = vpack.c.b16 %v3169, %v3168
  %v3185 = vpack.c.b16 %v3171, %v3170
  %v3186 = vpack.c.b16 %v3173, %v3172
  %v3187 = vpack.c.b16 %v3175, %v3174
  %v3188 = vpack.c.b16 %v3177, %v3176
  %v3189 = vpack.c.b16 %v3179, %v3178
  %v3190 = vpack.c.b16 %v3181, %v3180
  %v3191 = vpack.c.b16 %v3183, %v3182
  %3200 = vmatprep.subr.bf16.mxu0 0
  %3201 = vmatpush1.bf16.msra.mxu0 %v3184
  %3202 = vmatprep.subr.bf16.mxu0 0
  %3203 = vmatpush1.bf16.msra.mxu0 %v3185
  %3204 = vmatprep.subr.bf16.mxu0 0
  %3205 = vmatpush1.bf16.msra.mxu0 %v3186
  %3206 = vmatprep.subr.bf16.mxu0 0
  %3207 = vmatpush1.bf16.msra.mxu0 %v3187
  %3208 = vmatprep.subr.bf16.mxu0 0
  %3209 = vmatpush1.bf16.msra.mxu0 %v3188
  %3210 = vmatprep.subr.bf16.mxu0 0
  %3211 = vmatpush1.bf16.msra.mxu0 %v3189
  %3212 = vmatprep.subr.bf16.mxu0 0
  %3213 = vmatpush1.bf16.msra.mxu0 %v3190
  %3214 = vmatprep.subr.bf16.mxu0 0
  %3215 = vmatpush1.bf16.msra.mxu0 %v3191
  %3216 = vmatprep.subr.bf16.mxu0 0
  %3217 = vmatpush1.bf16.msra.mxu0 0
  %3218 = vmatprep.subr.bf16.mxu0 0
  %3219 = vmatpush1.bf16.msra.mxu0 0
  %3220 = vmatprep.subr.bf16.mxu0 0
  %3221 = vmatpush1.bf16.msra.mxu0 0
  %3222 = vmatprep.subr.bf16.mxu0 0
  %3223 = vmatpush1.bf16.msra.mxu0 0
  %3224 = vmatprep.subr.bf16.mxu0 0
  %3225 = vmatpush1.bf16.msra.mxu0 0
  %3226 = vmatprep.subr.bf16.mxu0 0
  %3227 = vmatpush1.bf16.msra.mxu0 0
  %3228 = vmatprep.subr.bf16.mxu0 0
  %3229 = vmatpush1.bf16.msra.mxu0 0
  %3230 = vmatprep.subr.bf16.mxu0 0
  %3231 = vmatpush1.bf16.msra.mxu0 0
  %3232 = vmatprep.mubr.bf16.mxu0 0
  %3233 = vmatmul.mubr.bf16.gmra.mrb[0].mxu0 %v2240
  %v3234 = vpop.f32.mrb[0].mxu0
  %v3235 = vadd.f32 0.0, %v3234
  %v3236 = vpop.f32.mrb[0].mxu0
  %v3237 = vpop.f32.mrb[0].mxu0
  %v3238 = vpop.f32.mrb[0].mxu0
  %3239 = vdwg.mxu0
  %v3240 = vadd.f32 %v3134, %v3235
  %v3241 = vld [vmem:[%s6] sm:$0x1]
  %v3243 = vlaneseq
  %v3244 = vshrl.u32 %v3243, 7
  %v3245 = vsub.s32 0, %v3244
  %v3246 = vrot.slane %v3241, %v3245
  %v3248 = vadd.f32 %v3240, %v3246
  %v3249 = vmax.f32 %v3248, 0.0
  %v3250 = vpack.c.bf16 %v3249, %v3249
  %3251 = vst [vmem:[%s11] sm:$0xf] %v3250
  %v3252 = vld [vmem:[%s7] sm:$0xf]
  %v3253 = vld [vmem:[%s7 + $0x4] sm:$0xf]
  %v3254 = vld [vmem:[%s7 + $0x8] sm:$0xf]
  %v3255 = vld [vmem:[%s7 + $0xc] sm:$0xf]
  %v3256 = vld [vmem:[%s7 + $0x10] sm:$0xf]
  %v3257 = vld [vmem:[%s7 + $0x14] sm:$0xf]
  %v3258 = vld [vmem:[%s7 + $0x18] sm:$0xf]
  %v3259 = vld [vmem:[%s7 + $0x1c] sm:$0xf]
  %v3260 = vld [vmem:[%s7 + $0x20] sm:$0xf]
  %v3261 = vld [vmem:[%s7 + $0x24] sm:$0xf]
  %v3262 = vld [vmem:[%s7 + $0x28] sm:$0xf]
  %v3263 = vld [vmem:[%s7 + $0x2c] sm:$0xf]
  %v3264 = vld [vmem:[%s7 + $0x30] sm:$0xf]
  %v3265 = vld [vmem:[%s7 + $0x34] sm:$0xf]
  %v3266 = vld [vmem:[%s7 + $0x38] sm:$0xf]
  %v3267 = vld [vmem:[%s7 + $0x3c] sm:$0xf]
  %v3268 = vld [vmem:[%s8] sm:$0x1]
  %v3270 = vlaneseq
  %v3271 = vshrl.u32 %v3270, 7
  %v3272 = vsub.s32 0, %v3271
  %v3273 = vrot.slane %v3268, %v3272
  %v3291 = vunpack.c.l.b16 %v3252
  %v3292 = vunpack.c.l.b16 %v3253
  %v3293 = vunpack.c.l.b16 %v3254
  %v3294 = vunpack.c.l.b16 %v3255
  %v3295 = vunpack.c.l.b16 %v3256
  %v3296 = vunpack.c.l.b16 %v3257
  %v3297 = vunpack.c.l.b16 %v3258
  %v3298 = vunpack.c.l.b16 %v3259
  %v3299 = vunpack.c.l.b16 %v3260
  %v3300 = vunpack.c.l.b16 %v3261
  %v3301 = vunpack.c.l.b16 %v3262
  %v3302 = vunpack.c.l.b16 %v3263
  %v3303 = vunpack.c.l.b16 %v3264
  %v3304 = vunpack.c.l.b16 %v3265
  %v3305 = vunpack.c.l.b16 %v3266
  %v3306 = vunpack.c.l.b16 %v3267
  %v3307 = vpack.c.b16 %v3292, %v3291
  %v3308 = vpack.c.b16 %v3294, %v3293
  %v3309 = vpack.c.b16 %v3296, %v3295
  %v3310 = vpack.c.b16 %v3298, %v3297
  %v3311 = vpack.c.b16 %v3300, %v3299
  %v3312 = vpack.c.b16 %v3302, %v3301
  %v3313 = vpack.c.b16 %v3304, %v3303
  %v3314 = vpack.c.b16 %v3306, %v3305
  %3323 = vmatprep.subr.bf16.mxu0 0
  %3324 = vmatpush1.bf16.msra.mxu0 %v3307
  %3325 = vmatprep.subr.bf16.mxu0 0
  %3326 = vmatpush1.bf16.msra.mxu0 %v3308
  %3327 = vmatprep.subr.bf16.mxu0 0
  %3328 = vmatpush1.bf16.msra.mxu0 %v3309
  %3329 = vmatprep.subr.bf16.mxu0 0
  %3330 = vmatpush1.bf16.msra.mxu0 %v3310
  %3331 = vmatprep.subr.bf16.mxu0 0
  %3332 = vmatpush1.bf16.msra.mxu0 %v3311
  %3333 = vmatprep.subr.bf16.mxu0 0
  %3334 = vmatpush1.bf16.msra.mxu0 %v3312
  %3335 = vmatprep.subr.bf16.mxu0 0
  %3336 = vmatpush1.bf16.msra.mxu0 %v3313
  %3337 = vmatprep.subr.bf16.mxu0 0
  %3338 = vmatpush1.bf16.msra.mxu0 %v3314
  %3339 = vmatprep.subr.bf16.mxu0 0
  %3340 = vmatpush1.bf16.msra.mxu0 0
  %3341 = vmatprep.subr.bf16.mxu0 0
  %3342 = vmatpush1.bf16.msra.mxu0 0
  %3343 = vmatprep.subr.bf16.mxu0 0
  %3344 = vmatpush1.bf16.msra.mxu0 0
  %3345 = vmatprep.subr.bf16.mxu0 0
  %3346 = vmatpush1.bf16.msra.mxu0 0
  %3347 = vmatprep.subr.bf16.mxu0 0
  %3348 = vmatpush1.bf16.msra.mxu0 0
  %3349 = vmatprep.subr.bf16.mxu0 0
  %3350 = vmatpush1.bf16.msra.mxu0 0
  %3351 = vmatprep.subr.bf16.mxu0 0
  %3352 = vmatpush1.bf16.msra.mxu0 0
  %3353 = vmatprep.subr.bf16.mxu0 0
  %3354 = vmatpush1.bf16.msra.mxu0 0
  %3355 = vmatprep.mubr.bf16.mxu0 0
  %3356 = vmatmul.mubr.bf16.gmra.mrb[0].mxu0 %v3250
  %v3357 = vpop.f32.mrb[0].mxu0
  %v3358 = vadd.f32 %v3273, %v3357
  %v3359 = vpop.f32.mrb[0].mxu0
  %v3360 = vpop.f32.mrb[0].mxu0
  %v3361 = vpop.f32.mrb[0].mxu0
  %3362 = vdwg.mxu0
  %3363 = vst [vmem:[%s12] sm:$0xff] %v3358
  // Predicated region
  $region38: #{pnnbase_forward.1} parent=0 // pred_check
    _
  $region39: #{pnnbase_forward.1} parent=0 // pred_check_branch
    %3365 = sbr.rel (0) target = $region41
  $region40: #{pnnbase_forward.1} parent=0 // pred_region
    _
  $region41: #{pnnbase_forward.1} parent=0 // pred_fallthru
    _
  // Predicated region
  $region42: #{pnnbase_forward.1} parent=0 // pred_check
    _
  $region43: #{pnnbase_forward.1} parent=0 // pred_check_branch
    %3367 = sbr.rel (0) target = $region45
  $region44: #{pnnbase_forward.1} parent=0 // pred_region
    _
  $region45: #{pnnbase_forward.1} parent=0 // pred_fallthru
    _
  // Predicated region
  $region46: #{pnnbase_forward.1} parent=0 // pred_check
    _
  $region47: #{pnnbase_forward.1} parent=0 // pred_check_branch
    %3369 = sbr.rel (0) target = $region49
  $region48: #{pnnbase_forward.1} parent=0 // pred_region
    _
  $region49: #{pnnbase_forward.1} parent=0 // pred_fallthru
    _
  // Predicated region
  $region50: #{pnnbase_forward.1} parent=0 // pred_check
    _
  $region51: #{pnnbase_forward.1} parent=0 // pred_check_branch
    %3371 = sbr.rel (0) target = $region53
  $region52: #{pnnbase_forward.1} parent=0 // pred_region
    _
  $region53: #{pnnbase_forward.1} parent=0 // pred_fallthru
    _
  // Predicated region
  $region54: #{pnnbase_forward.1} parent=0 // pred_check
    _
  $region55: #{pnnbase_forward.1} parent=0 // pred_check_branch
    %3373 = sbr.rel (0) target = $region57
  $region56: #{pnnbase_forward.1} parent=0 // pred_region
    _
  $region57: #{pnnbase_forward.1} parent=0 // pred_fallthru
    _
  // Predicated region
  $region58: #{pnnbase_forward.1} parent=0 // pred_check
    _
  $region59: #{pnnbase_forward.1} parent=0 // pred_check_branch
    %3375 = sbr.rel (0) target = $region61
  $region60: #{pnnbase_forward.1} parent=0 // pred_region
    _
  $region61: #{pnnbase_forward.1} parent=0 // pred_fallthru
    _
  // Predicated region
  $region62: #{pnnbase_forward.1} parent=0 // pred_check
    _
  $region63: #{pnnbase_forward.1} parent=0 // pred_check_branch
    %3377 = sbr.rel (0) target = $region65
  $region64: #{pnnbase_forward.1} parent=0 // pred_region
    _
  $region65: #{pnnbase_forward.1} parent=0 // pred_fallthru
    _
  // Predicated region
  $region66: #{pnnbase_forward.1} parent=0 // pred_check
    _
  $region67: #{pnnbase_forward.1} parent=0 // pred_check_branch
    %3379 = sbr.rel (0) target = $region69
  $region68: #{pnnbase_forward.1} parent=0 // pred_region
    _
  $region69: #{pnnbase_forward.1} parent=0 // pred_fallthru
    _

</llo_original>
